<compile_context>
chip_gen: v6e
topology: v6e:2x2x1
jax: 0.10.0
libtpu: 0.0.40
codegen_flags: <defaults>
</compile_context>

<pallas_src>
import functools

import jax
import jax.numpy as jnp
from jax.experimental import pallas as pl
from jax.experimental.pallas import tpu as pltpu

EPS = 1e-5


# --------------------------- fused forward kernel ---------------------------
def _fused_kernel(x1_ref, w1_ref, b1_ref, g1_ref, be1_ref,
                  w2a_ref, w2b_ref, b2_ref, g2_ref, be2_ref,
                  o_ref, *, N, H, W):
    """conv1a(1x1) + bn1a + conv2a(3x3 VALID, split concat) + bn2a + softmax.

    x1_ref : (M, C1)   channels-last rows, row m = n*H*W + h*W + w
    w1_ref : (C1, C2)  1x1 conv weight
    w2a_ref: (9, C1)   3x3 conv weight, x1-channel part, row t = kh*3 + kw
    w2b_ref: (9, C2)   3x3 conv weight, x2-channel part
    o_ref  : (N, OH, OW, 1)
    """
    OH, OW = H - 2, W - 2

    x1 = x1_ref[...]                                            # (M, C1)

    # ---- conv1a: 1x1 conv == channel matmul on the MXU ---------------------
    y = jnp.dot(x1, w1_ref[...],
                preferred_element_type=jnp.float32) + b1_ref[...]   # (M, C2)

    # ---- bn1a: training-mode batch stats over all M rows (f32) -------------
    mu = jnp.mean(y, axis=0, keepdims=True)                     # (1, C2)
    d = y - mu
    var = jnp.mean(d * d, axis=0, keepdims=True)                # biased var
    x2 = d * (g1_ref[...] * jax.lax.rsqrt(var + EPS)) + be1_ref[...]

    # ---- conv2a: 3x3 VALID conv, 1 output channel --------------------------
    # Channel contraction first (tap-major weights, contraction on lanes):
    #   s[m, t] = x1[m, :] . w2a[t, :] + x2[m, :] . w2b[t, :]
    dn = (((1,), (1,)), ((), ()))
    s = (jax.lax.dot_general(x1, w2a_ref[...], dn,
                             preferred_element_type=jnp.float32)
         + jax.lax.dot_general(x2, w2b_ref[...], dn,
                               preferred_element_type=jnp.float32))  # (M, 9)
    s4 = s.reshape(N, H, W, 9)

    # Spatial shift-and-add over the 9 taps (VALID window).
    x4 = s4[:, 0:OH, 0:OW, 0:1]                                 # (N, OH, OW, 1)
    for kh in range(3):
        for kw in range(3):
            if kh == 0 and kw == 0:
                continue
            t = kh * 3 + kw
            x4 = x4 + s4[:, kh:kh + OH, kw:kw + OW, t:t + 1]
    x4 = x4 + b2_ref[...]

    # ---- bn2a: single channel -> global batch stats ------------------------
    mu2 = jnp.mean(jnp.mean(jnp.mean(x4, axis=2, keepdims=True),
                            axis=1, keepdims=True), axis=0, keepdims=True)
    d2 = x4 - mu2
    var2 = jnp.mean(jnp.mean(jnp.mean(d2 * d2, axis=2, keepdims=True),
                             axis=1, keepdims=True), axis=0, keepdims=True)
    z = d2 * (g2_ref[...] * jax.lax.rsqrt(var2 + EPS)) + be2_ref[...]

    # ---- softmax over the W axis (axis=-1 of the NCHW output) --------------
    m = jnp.max(z, axis=2, keepdims=True)
    e = jnp.exp(z - m)
    o_ref[...] = (e / jnp.sum(e, axis=2, keepdims=True)).astype(o_ref.dtype)


# --------------------------- wrapper ----------------------------------------
def coarse_ap_forward(x1_nchw, params):
    (w1, b1, g1, be1, w2, b2, g2, be2) = params
    N, C1, H, W = x1_nchw.shape                       # C1 == 1000
    C2 = w1.shape[0]                                  # 256
    OH, OW = H - 2, W - 2
    M = N * H * W

    # channels-last, flattened rows (row m = n*H*W + h*W + w)
    x1_2d = jnp.transpose(x1_nchw, (0, 2, 3, 1)).reshape(M, C1)

    # conv1a weight: (Cout, Cin, 1, 1) -> (Cin, Cout)
    w1_mat = jnp.transpose(w1[:, :, 0, 0], (1, 0))                 # (1000, 256)

    # conv2a weight: (1, C1+C2, 3, 3) -> tap-major (9, C1+C2); split the
    # concat channels into the x1 part and the x2 part (concat never built).
    w2_taps = jnp.transpose(w2[0].reshape(C1 + C2, 9), (1, 0))     # (9, 1256)
    w2a = w2_taps[:, :C1]                                          # (9, 1000)
    w2b = w2_taps[:, C1:]                                          # (9, 256)

    kernel = functools.partial(_fused_kernel, N=N, H=H, W=W)

    out4 = pl.pallas_call(
        kernel,
        out_shape=jax.ShapeDtypeStruct((N, OH, OW, 1), jnp.float32),
        grid=(1,),
        in_specs=[
            pl.BlockSpec((M, C1), lambda i: (0, 0)),
            pl.BlockSpec((C1, C2), lambda i: (0, 0)),
            pl.BlockSpec((1, C2), lambda i: (0, 0)),
            pl.BlockSpec((1, C2), lambda i: (0, 0)),
            pl.BlockSpec((1, C2), lambda i: (0, 0)),
            pl.BlockSpec((9, C1), lambda i: (0, 0)),
            pl.BlockSpec((9, C2), lambda i: (0, 0)),
            pl.BlockSpec((1, 1), lambda i: (0, 0)),
            pl.BlockSpec((1, 1), lambda i: (0, 0)),
            pl.BlockSpec((1, 1), lambda i: (0, 0)),
        ],
        out_specs=pl.BlockSpec((N, OH, OW, 1), lambda i: (0, 0, 0, 0)),
        compiler_params=pltpu.CompilerParams(
            dimension_semantics=("arbitrary",)),
        cost_estimate=pl.CostEstimate(
            flops=2 * M * C1 * C2 + 2 * M * (C1 + C2) * 9,
            transcendentals=N * OH * OW + C2,
            bytes_accessed=4 * (M * C1 + C1 * C2 + 9 * (C1 + C2)
                                + 3 * C2 + 3 + N * OH * OW)),
    )(x1_2d, w1_mat,
      b1.reshape(1, C2), g1.reshape(1, C2), be1.reshape(1, C2),
      w2a, w2b,
      b2.reshape(1, 1), g2.reshape(1, 1), be2.reshape(1, 1))

    return jnp.transpose(out4, (0, 3, 1, 2))          # (N, 1, OH, OW), NCHW


# ----------------- pure-JAX reference (for correctness check) ---------------
def reference(x1_nchw, params):
    (w1, b1, g1, be1, w2, b2, g2, be2) = params
    hp = jax.lax.Precision.HIGHEST
    x2 = jax.lax.conv_general_dilated(
        x1_nchw, w1, (1, 1), 'VALID',
        dimension_numbers=('NCHW', 'OIHW', 'NCHW'),
        precision=hp) + b1[None, :, None, None]
    m = jnp.mean(x2, axis=(0, 2, 3), keepdims=True)
    v = jnp.var(x2, axis=(0, 2, 3), keepdims=True)
    x2 = (x2 - m) / jnp.sqrt(v + EPS) * g1[None, :, None, None] \
        + be1[None, :, None, None]
    x3 = jnp.concatenate([x1_nchw, x2], axis=1)
    x4 = jax.lax.conv_general_dilated(
        x3, w2, (1, 1), 'VALID',
        dimension_numbers=('NCHW', 'OIHW', 'NCHW'),
        precision=hp) + b2[None, :, None, None]
    m2 = jnp.mean(x4)
    v2 = jnp.var(x4)
    x4 = (x4 - m2) / jnp.sqrt(v2 + EPS) * g2[None, :, None, None] \
        + be2[None, :, None, None]
    return jax.nn.softmax(x4, axis=-1)


if __name__ == "__main__":
    key = jax.random.PRNGKey(0)
    kx, k1, k2, k3, k4 = jax.random.split(key, 5)

    N, C_IN, H, W = 2, 1000, 8, 8
    x1 = jax.random.normal(kx, (N, C_IN, H, W), jnp.float32)

    # Deterministic synthetic parameters (shapes from the module's __init__)
    w1 = jax.random.normal(k1, (256, 1000, 1, 1), jnp.float32) * 0.02
    b1 = jax.random.normal(k2, (256,), jnp.float32) * 0.02
    g1 = jnp.ones((256,), jnp.float32)
    be1 = jnp.zeros((256,), jnp.float32)
    w2 = jax.random.normal(k3, (1, 1256, 3, 3), jnp.float32) * 0.02
    b2 = jax.random.normal(k4, (1,), jnp.float32) * 0.02
    g2 = jnp.ones((1,), jnp.float32)
    be2 = jnp.zeros((1,), jnp.float32)

    params = (w1, b1, g1, be1, w2, b2, g2, be2)

    out = coarse_ap_forward(x1, params)
    out = jax.block_until_ready(out)

    ref = reference(x1, params)
    assert out.shape == ref.shape == (N, 1, H - 2, W - 2), (out.shape, ref.shape)
    assert jnp.allclose(jnp.sum(out, axis=-1), 1.0, atol=1e-4)
    assert jnp.allclose(out, ref, atol=5e-3, rtol=0.0), \
        float(jnp.max(jnp.abs(out - ref)))

    print("KERNEL_OK")
</pallas_src>

<mosaic_0001>
module attributes {stable_mosaic.version = 11 : i64} {
  func.func @_fused_kernel(%arg0: i32, %arg1: memref<128x1000xf32, #tpu.memory_space<vmem>>, %arg2: memref<1000x256xf32, #tpu.memory_space<vmem>>, %arg3: memref<1x256xf32, #tpu.memory_space<vmem>>, %arg4: memref<1x256xf32, #tpu.memory_space<vmem>>, %arg5: memref<1x256xf32, #tpu.memory_space<vmem>>, %arg6: memref<9x1000xf32, #tpu.memory_space<vmem>>, %arg7: memref<9x256xf32, #tpu.memory_space<vmem>>, %arg8: memref<1x1xf32, #tpu.memory_space<vmem>>, %arg9: memref<1x1xf32, #tpu.memory_space<vmem>>, %arg10: memref<1x1xf32, #tpu.memory_space<vmem>>, %arg11: memref<2x6x6x1xf32, #tpu.memory_space<vmem>>) attributes {dimension_semantics = [#tpu.dimension_semantics<arbitrary>], iteration_bounds = array<i64: 1>, scalar_prefetch = 0 : i64, scratch_operands = 0 : i64, tpu.core_type = #tpu.core_type<tc>, window_params = [{pipeline_mode = #tpu.pipeline_mode<synchronous>, transform_indices = @transform_0, window_bounds = array<i64: 128, 1000>}, {pipeline_mode = #tpu.pipeline_mode<synchronous>, transform_indices = @transform_1, window_bounds = array<i64: 1000, 256>}, {pipeline_mode = #tpu.pipeline_mode<synchronous>, transform_indices = @transform_2, window_bounds = array<i64: 1, 256>}, {pipeline_mode = #tpu.pipeline_mode<synchronous>, transform_indices = @transform_3, window_bounds = array<i64: 1, 256>}, {pipeline_mode = #tpu.pipeline_mode<synchronous>, transform_indices = @transform_4, window_bounds = array<i64: 1, 256>}, {pipeline_mode = #tpu.pipeline_mode<synchronous>, transform_indices = @transform_5, window_bounds = array<i64: 9, 1000>}, {pipeline_mode = #tpu.pipeline_mode<synchronous>, transform_indices = @transform_6, window_bounds = array<i64: 9, 256>}, {pipeline_mode = #tpu.pipeline_mode<synchronous>, transform_indices = @transform_7, window_bounds = array<i64: 1, 1>}, {pipeline_mode = #tpu.pipeline_mode<synchronous>, transform_indices = @transform_8, window_bounds = array<i64: 1, 1>}, {pipeline_mode = #tpu.pipeline_mode<synchronous>, transform_indices = @transform_9, window_bounds = array<i64: 1, 1>}, {pipeline_mode = #tpu.pipeline_mode<synchronous>, transform_indices = @transform_10, window_bounds = array<i64: 2, 6, 6, 1>}]} {
    %c0 = arith.constant 0 : index
    %c0_0 = arith.constant 0 : index
    %0 = vector.load %arg1[%c0, %c0_0] : memref<128x1000xf32, #tpu.memory_space<vmem>>, vector<128x1000xf32>
    %c0_1 = arith.constant 0 : index
    %c0_2 = arith.constant 0 : index
    %1 = vector.load %arg2[%c0_1, %c0_2] : memref<1000x256xf32, #tpu.memory_space<vmem>>, vector<1000x256xf32>
    %cst = arith.constant dense<0.000000e+00> : vector<128x256xf32>
    %2 = tpu.matmul %0, %1, %cst {dimension_numbers = #tpu.dot_dimension_numbers<[1], [0], [0], [1], [0, 0, 1, 1], [], []>} : vector<128x1000xf32>, vector<1000x256xf32>, vector<128x256xf32> -> vector<128x256xf32>
    %c0_3 = arith.constant 0 : index
    %c0_4 = arith.constant 0 : index
    %3 = vector.load %arg3[%c0_3, %c0_4] : memref<1x256xf32, #tpu.memory_space<vmem>>, vector<1x256xf32>
    %4 = vector.broadcast %3 : vector<1x256xf32> to vector<128x256xf32>
    %5 = arith.addf %2, %4 : vector<128x256xf32>
    %cst_5 = arith.constant dense<0.000000e+00> : vector<256xf32>
    %6 = vector.multi_reduction <add>, %5, %cst_5 [0] : vector<128x256xf32> to vector<256xf32>
    %7 = vector.shape_cast %6 : vector<256xf32> to vector<1x256xf32>
    %cst_6 = arith.constant 1.280000e+02 : f32
    %8 = vector.broadcast %cst_6 : f32 to vector<1x256xf32>
    %9 = arith.divf %7, %8 : vector<1x256xf32>
    %10 = vector.broadcast %9 : vector<1x256xf32> to vector<128x256xf32>
    %11 = arith.subf %5, %10 : vector<128x256xf32>
    %12 = arith.mulf %11, %11 : vector<128x256xf32>
    %cst_7 = arith.constant dense<0.000000e+00> : vector<256xf32>
    %13 = vector.multi_reduction <add>, %12, %cst_7 [0] : vector<128x256xf32> to vector<256xf32>
    %14 = vector.shape_cast %13 : vector<256xf32> to vector<1x256xf32>
    %cst_8 = arith.constant 1.280000e+02 : f32
    %15 = vector.broadcast %cst_8 : f32 to vector<1x256xf32>
    %16 = arith.divf %14, %15 : vector<1x256xf32>
    %c0_9 = arith.constant 0 : index
    %c0_10 = arith.constant 0 : index
    %17 = vector.load %arg4[%c0_9, %c0_10] : memref<1x256xf32, #tpu.memory_space<vmem>>, vector<1x256xf32>
    %cst_11 = arith.constant 9.99999974E-6 : f32
    %18 = vector.broadcast %cst_11 : f32 to vector<1x256xf32>
    %19 = arith.addf %16, %18 : vector<1x256xf32>
    %20 = math.rsqrt %19 : vector<1x256xf32>
    %21 = arith.mulf %17, %20 : vector<1x256xf32>
    %22 = vector.broadcast %21 : vector<1x256xf32> to vector<128x256xf32>
    %23 = arith.mulf %11, %22 : vector<128x256xf32>
    %c0_12 = arith.constant 0 : index
    %c0_13 = arith.constant 0 : index
    %24 = vector.load %arg5[%c0_12, %c0_13] : memref<1x256xf32, #tpu.memory_space<vmem>>, vector<1x256xf32>
    %25 = vector.broadcast %24 : vector<1x256xf32> to vector<128x256xf32>
    %26 = arith.addf %23, %25 : vector<128x256xf32>
    %c0_14 = arith.constant 0 : index
    %c0_15 = arith.constant 0 : index
    %27 = vector.load %arg6[%c0_14, %c0_15] : memref<9x1000xf32, #tpu.memory_space<vmem>>, vector<9x1000xf32>
    %cst_16 = arith.constant dense<0.000000e+00> : vector<128x9xf32>
    %28 = tpu.matmul %0, %27, %cst_16 {dimension_numbers = #tpu.dot_dimension_numbers<[1], [1], [0], [0], [0, 0, 1, 0], [], []>} : vector<128x1000xf32>, vector<9x1000xf32>, vector<128x9xf32> -> vector<128x9xf32>
    %c0_17 = arith.constant 0 : index
    %c0_18 = arith.constant 0 : index
    %29 = vector.load %arg7[%c0_17, %c0_18] : memref<9x256xf32, #tpu.memory_space<vmem>>, vector<9x256xf32>
    %cst_19 = arith.constant dense<0.000000e+00> : vector<128x9xf32>
    %30 = tpu.matmul %26, %29, %cst_19 {dimension_numbers = #tpu.dot_dimension_numbers<[1], [1], [0], [0], [0, 0, 1, 0], [], []>} : vector<128x256xf32>, vector<9x256xf32>, vector<128x9xf32> -> vector<128x9xf32>
    %31 = arith.addf %28, %30 : vector<128x9xf32>
    %32 = vector.shape_cast %31 : vector<128x9xf32> to vector<2x8x8x9xf32>
    %33 = vector.extract_strided_slice %32 {offsets = [0, 0, 0, 0], sizes = [2, 6, 6, 1], strides = [1, 1, 1, 1]} : vector<2x8x8x9xf32> to vector<2x6x6x1xf32>
    %34 = vector.extract_strided_slice %32 {offsets = [0, 0, 1, 1], sizes = [2, 6, 6, 1], strides = [1, 1, 1, 1]} : vector<2x8x8x9xf32> to vector<2x6x6x1xf32>
    %35 = arith.addf %33, %34 : vector<2x6x6x1xf32>
    %36 = vector.extract_strided_slice %32 {offsets = [0, 0, 2, 2], sizes = [2, 6, 6, 1], strides = [1, 1, 1, 1]} : vector<2x8x8x9xf32> to vector<2x6x6x1xf32>
    %37 = arith.addf %35, %36 : vector<2x6x6x1xf32>
    %38 = vector.extract_strided_slice %32 {offsets = [0, 1, 0, 3], sizes = [2, 6, 6, 1], strides = [1, 1, 1, 1]} : vector<2x8x8x9xf32> to vector<2x6x6x1xf32>
    %39 = arith.addf %37, %38 : vector<2x6x6x1xf32>
    %40 = vector.extract_strided_slice %32 {offsets = [0, 1, 1, 4], sizes = [2, 6, 6, 1], strides = [1, 1, 1, 1]} : vector<2x8x8x9xf32> to vector<2x6x6x1xf32>
    %41 = arith.addf %39, %40 : vector<2x6x6x1xf32>
    %42 = vector.extract_strided_slice %32 {offsets = [0, 1, 2, 5], sizes = [2, 6, 6, 1], strides = [1, 1, 1, 1]} : vector<2x8x8x9xf32> to vector<2x6x6x1xf32>
    %43 = arith.addf %41, %42 : vector<2x6x6x1xf32>
    %44 = vector.extract_strided_slice %32 {offsets = [0, 2, 0, 6], sizes = [2, 6, 6, 1], strides = [1, 1, 1, 1]} : vector<2x8x8x9xf32> to vector<2x6x6x1xf32>
    %45 = arith.addf %43, %44 : vector<2x6x6x1xf32>
    %46 = vector.extract_strided_slice %32 {offsets = [0, 2, 1, 7], sizes = [2, 6, 6, 1], strides = [1, 1, 1, 1]} : vector<2x8x8x9xf32> to vector<2x6x6x1xf32>
    %47 = arith.addf %45, %46 : vector<2x6x6x1xf32>
    %48 = vector.extract_strided_slice %32 {offsets = [0, 2, 2, 8], sizes = [2, 6, 6, 1], strides = [1, 1, 1, 1]} : vector<2x8x8x9xf32> to vector<2x6x6x1xf32>
    %49 = arith.addf %47, %48 : vector<2x6x6x1xf32>
    %c0_20 = arith.constant 0 : index
    %c0_21 = arith.constant 0 : index
    %50 = vector.load %arg8[%c0_20, %c0_21] : memref<1x1xf32, #tpu.memory_space<vmem>>, vector<1x1xf32>
    %51 = vector.shape_cast %50 : vector<1x1xf32> to vector<1x1x1x1xf32>
    %52 = vector.broadcast %51 : vector<1x1x1x1xf32> to vector<2x6x6x1xf32>
    %53 = arith.addf %49, %52 : vector<2x6x6x1xf32>
    %cst_22 = arith.constant dense<0.000000e+00> : vector<2x6x1xf32>
    %54 = vector.multi_reduction <add>, %53, %cst_22 [2] : vector<2x6x6x1xf32> to vector<2x6x1xf32>
    %55 = vector.shape_cast %54 : vector<2x6x1xf32> to vector<2x6x1x1xf32>
    %cst_23 = arith.constant 6.000000e+00 : f32
    %56 = vector.broadcast %cst_23 : f32 to vector<2x6x1x1xf32>
    %57 = arith.divf %55, %56 : vector<2x6x1x1xf32>
    %cst_24 = arith.constant dense<0.000000e+00> : vector<2x1x1xf32>
    %58 = vector.multi_reduction <add>, %57, %cst_24 [1] : vector<2x6x1x1xf32> to vector<2x1x1xf32>
    %59 = vector.shape_cast %58 : vector<2x1x1xf32> to vector<2x1x1x1xf32>
    %cst_25 = arith.constant 6.000000e+00 : f32
    %60 = vector.broadcast %cst_25 : f32 to vector<2x1x1x1xf32>
    %61 = arith.divf %59, %60 : vector<2x1x1x1xf32>
    %cst_26 = arith.constant dense<0.000000e+00> : vector<1x1x1xf32>
    %62 = vector.multi_reduction <add>, %61, %cst_26 [0] : vector<2x1x1x1xf32> to vector<1x1x1xf32>
    %63 = vector.shape_cast %62 : vector<1x1x1xf32> to vector<1x1x1x1xf32>
    %cst_27 = arith.constant 2.000000e+00 : f32
    %64 = vector.broadcast %cst_27 : f32 to vector<1x1x1x1xf32>
    %65 = arith.divf %63, %64 : vector<1x1x1x1xf32>
    %66 = vector.broadcast %65 : vector<1x1x1x1xf32> to vector<2x6x6x1xf32>
    %67 = arith.subf %53, %66 : vector<2x6x6x1xf32>
    %68 = arith.mulf %67, %67 : vector<2x6x6x1xf32>
    %cst_28 = arith.constant dense<0.000000e+00> : vector<2x6x1xf32>
    %69 = vector.multi_reduction <add>, %68, %cst_28 [2] : vector<2x6x6x1xf32> to vector<2x6x1xf32>
    %70 = vector.shape_cast %69 : vector<2x6x1xf32> to vector<2x6x1x1xf32>
    %cst_29 = arith.constant 6.000000e+00 : f32
    %71 = vector.broadcast %cst_29 : f32 to vector<2x6x1x1xf32>
    %72 = arith.divf %70, %71 : vector<2x6x1x1xf32>
    %cst_30 = arith.constant dense<0.000000e+00> : vector<2x1x1xf32>
    %73 = vector.multi_reduction <add>, %72, %cst_30 [1] : vector<2x6x1x1xf32> to vector<2x1x1xf32>
    %74 = vector.shape_cast %73 : vector<2x1x1xf32> to vector<2x1x1x1xf32>
    %cst_31 = arith.constant 6.000000e+00 : f32
    %75 = vector.broadcast %cst_31 : f32 to vector<2x1x1x1xf32>
    %76 = arith.divf %74, %75 : vector<2x1x1x1xf32>
    %cst_32 = arith.constant dense<0.000000e+00> : vector<1x1x1xf32>
    %77 = vector.multi_reduction <add>, %76, %cst_32 [0] : vector<2x1x1x1xf32> to vector<1x1x1xf32>
    %78 = vector.shape_cast %77 : vector<1x1x1xf32> to vector<1x1x1x1xf32>
    %cst_33 = arith.constant 2.000000e+00 : f32
    %79 = vector.broadcast %cst_33 : f32 to vector<1x1x1x1xf32>
    %80 = arith.divf %78, %79 : vector<1x1x1x1xf32>
    %c0_34 = arith.constant 0 : index
    %c0_35 = arith.constant 0 : index
    %81 = vector.load %arg9[%c0_34, %c0_35] : memref<1x1xf32, #tpu.memory_space<vmem>>, vector<1x1xf32>
    %cst_36 = arith.constant 9.99999974E-6 : f32
    %82 = vector.broadcast %cst_36 : f32 to vector<1x1x1x1xf32>
    %83 = arith.addf %80, %82 : vector<1x1x1x1xf32>
    %84 = math.rsqrt %83 : vector<1x1x1x1xf32>
    %85 = vector.shape_cast %81 : vector<1x1xf32> to vector<1x1x1x1xf32>
    %86 = arith.mulf %85, %84 : vector<1x1x1x1xf32>
    %87 = vector.broadcast %86 : vector<1x1x1x1xf32> to vector<2x6x6x1xf32>
    %88 = arith.mulf %67, %87 : vector<2x6x6x1xf32>
    %c0_37 = arith.constant 0 : index
    %c0_38 = arith.constant 0 : index
    %89 = vector.load %arg10[%c0_37, %c0_38] : memref<1x1xf32, #tpu.memory_space<vmem>>, vector<1x1xf32>
    %90 = vector.shape_cast %89 : vector<1x1xf32> to vector<1x1x1x1xf32>
    %91 = vector.broadcast %90 : vector<1x1x1x1xf32> to vector<2x6x6x1xf32>
    %92 = arith.addf %88, %91 : vector<2x6x6x1xf32>
    %cst_39 = arith.constant dense<0xFF800000> : vector<2x6x1xf32>
    %93 = vector.multi_reduction <maximumf>, %92, %cst_39 [2] : vector<2x6x6x1xf32> to vector<2x6x1xf32>
    %94 = vector.shape_cast %93 : vector<2x6x1xf32> to vector<2x6x1x1xf32>
    %95 = vector.broadcast %94 : vector<2x6x1x1xf32> to vector<2x6x6x1xf32>
    %96 = arith.subf %92, %95 : vector<2x6x6x1xf32>
    %97 = math.exp %96 : vector<2x6x6x1xf32>
    %cst_40 = arith.constant dense<0.000000e+00> : vector<2x6x1xf32>
    %98 = vector.multi_reduction <add>, %97, %cst_40 [2] : vector<2x6x6x1xf32> to vector<2x6x1xf32>
    %99 = vector.shape_cast %98 : vector<2x6x1xf32> to vector<2x6x1x1xf32>
    %100 = vector.broadcast %99 : vector<2x6x1x1xf32> to vector<2x6x6x1xf32>
    %101 = arith.divf %97, %100 : vector<2x6x6x1xf32>
    %c0_41 = arith.constant 0 : index
    %c0_42 = arith.constant 0 : index
    %c0_43 = arith.constant 0 : index
    %c0_44 = arith.constant 0 : index
    %102 = vector.load %arg11[%c0_41, %c0_42, %c0_43, %c0_44] : memref<2x6x6x1xf32, #tpu.memory_space<vmem>>, vector<2x6x6x1xf32>
    tpu.vector_store %arg11[%c0_41, %c0_42, %c0_43, %c0_44], %101 {strides = array<i32>} : memref<2x6x6x1xf32, #tpu.memory_space<vmem>>, vector<2x6x6x1xf32>,
    return
  }
  func.func @transform_0(%arg0: i32) -> (i32, i32) {
    %c0_i32 = arith.constant 0 : i32
    %c0_i32_0 = arith.constant 0 : i32
    %c0_i32_1 = arith.constant 0 : i32
    return %c0_i32, %c0_i32_0 : i32, i32
  }
  func.func @transform_1(%arg0: i32) -> (i32, i32) {
    %c0_i32 = arith.constant 0 : i32
    %c0_i32_0 = arith.constant 0 : i32
    %c0_i32_1 = arith.constant 0 : i32
    return %c0_i32, %c0_i32_0 : i32, i32
  }
  func.func @transform_2(%arg0: i32) -> (i32, i32) {
    %c0_i32 = arith.constant 0 : i32
    %c0_i32_0 = arith.constant 0 : i32
    %c0_i32_1 = arith.constant 0 : i32
    return %c0_i32, %c0_i32_0 : i32, i32
  }
  func.func @transform_3(%arg0: i32) -> (i32, i32) {
    %c0_i32 = arith.constant 0 : i32
    %c0_i32_0 = arith.constant 0 : i32
    %c0_i32_1 = arith.constant 0 : i32
    return %c0_i32, %c0_i32_0 : i32, i32
  }
  func.func @transform_4(%arg0: i32) -> (i32, i32) {
    %c0_i32 = arith.constant 0 : i32
    %c0_i32_0 = arith.constant 0 : i32
    %c0_i32_1 = arith.constant 0 : i32
    return %c0_i32, %c0_i32_0 : i32, i32
  }
  func.func @transform_5(%arg0: i32) -> (i32, i32) {
    %c0_i32 = arith.constant 0 : i32
    %c0_i32_0 = arith.constant 0 : i32
    %c0_i32_1 = arith.constant 0 : i32
    return %c0_i32, %c0_i32_0 : i32, i32
  }
  func.func @transform_6(%arg0: i32) -> (i32, i32) {
    %c0_i32 = arith.constant 0 : i32
    %c0_i32_0 = arith.constant 0 : i32
    %c0_i32_1 = arith.constant 0 : i32
    return %c0_i32, %c0_i32_0 : i32, i32
  }
  func.func @transform_7(%arg0: i32) -> (i32, i32) {
    %c0_i32 = arith.constant 0 : i32
    %c0_i32_0 = arith.constant 0 : i32
    %c0_i32_1 = arith.constant 0 : i32
    return %c0_i32, %c0_i32_0 : i32, i32
  }
  func.func @transform_8(%arg0: i32) -> (i32, i32) {
    %c0_i32 = arith.constant 0 : i32
    %c0_i32_0 = arith.constant 0 : i32
    %c0_i32_1 = arith.constant 0 : i32
    return %c0_i32, %c0_i32_0 : i32, i32
  }
  func.func @transform_9(%arg0: i32) -> (i32, i32) {
    %c0_i32 = arith.constant 0 : i32
    %c0_i32_0 = arith.constant 0 : i32
    %c0_i32_1 = arith.constant 0 : i32
    return %c0_i32, %c0_i32_0 : i32, i32
  }
  func.func @transform_10(%arg0: i32) -> (i32, i32, i32, i32) {
    %c0_i32 = arith.constant 0 : i32
    %c0_i32_0 = arith.constant 0 : i32
    %c0_i32_1 = arith.constant 0 : i32
    %c0_i32_2 = arith.constant 0 : i32
    %c0_i32_3 = arith.constant 0 : i32
    return %c0_i32, %c0_i32_0, %c0_i32_1, %c0_i32_2 : i32, i32, i32, i32
  }
}

</mosaic_0001>

<llo_original>
// kernel: tpu_custom_call.1
$region0: #{tpu_custom_call.1}
  #allocation0 [shape = 'u32[]', space=smem, size = 0x4, offset = 0x4, fixed_abs, tag = 'smem constant byte address 0x4 - core index']
  #allocation1 [shape = 'u32[144,128]{1,0:T(1,128)}', space=vmem, size = 0x12000, scoped, tag = 'internal scratch']
  #allocation2 [shape = 'f32[1,1]{1,0:T(1,128)S(1)}', space=vmem, size = 0x200, scoped, tag = 'scoped memory for tpu_custom_call.1']
  #allocation3 [shape = 'f32[1,1]{1,0:T(1,128)S(1)}', space=vmem, size = 0x200, scoped, tag = 'scoped memory for tpu_custom_call.1']
  #allocation4 [shape = 'f32[1,1]{1,0:T(1,128)S(1)}', space=vmem, size = 0x200, scoped, tag = 'scoped memory for tpu_custom_call.1']
  %s0 = inlined_call_operand.vmem [shape: f32[128,1000], index: 0, kind: input, shape index: {}]
  %s1 = inlined_call_operand.vmem [shape: f32[1000,256], index: 1, kind: input, shape index: {}]
  %s2 = inlined_call_operand.vmem [shape: f32[1,256], index: 2, kind: input, shape index: {}]
  %s3 = inlined_call_operand.vmem [shape: f32[1,256], index: 3, kind: input, shape index: {}]
  %s4 = inlined_call_operand.vmem [shape: f32[1,256], index: 4, kind: input, shape index: {}]
  %s5 = inlined_call_operand.hbm [shape: f32[9,1000], index: 5, kind: input, shape index: {}]
  %s6 = inlined_call_operand.hbm [shape: f32[9,256], index: 6, kind: input, shape index: {}]
  %s7 = inlined_call_operand.<no memory space> [shape: f32[1,1], index: 7, kind: input, shape index: {}]
  %s8 = inlined_call_operand.<no memory space> [shape: f32[1,1], index: 8, kind: input, shape index: {}]
  %s9 = inlined_call_operand.<no memory space> [shape: f32[1,1], index: 9, kind: input, shape index: {}]
  %s10 = inlined_call_operand.vmem [shape: f32[2,6,6,1], index: 10, kind: output, shape index: {}]
  %s11 = sld [smem:[#allocation0]]
  $region58: #{tpu_custom_call.1} parent=0
    _
  %s13 = ssub.s32 1, %s11
  %s14 = scalar_select 0, %s13, %s11
  %v15 = vstv %s7
  %16 = vst [vmem:[#allocation2] sm:$0x1] %v15
  %v17 = vstv %s8
  %18 = vst [vmem:[#allocation3] sm:$0x1] %v17
  %v19 = vstv %s9
  %20 = vst [vmem:[#allocation4] sm:$0x1] %v19
  $region1: #{tpu_custom_call.1} parent=0
    #allocation5 [shape = 'u8[65536]{0}', space=vmem, size = 0x10000, scoped, tag = 'input window, operand 5, single buffered']
    #allocation6 [shape = 's32[1]{0}', space=sflag, size = 0x4, scoped, tag = 'scoped memory for tpu_custom_call.1']
    #allocation7 [shape = 'u8[16384]{0}', space=vmem, size = 0x4000, scoped, tag = 'input window, operand 6, single buffered']
    #allocation8 [shape = 's32[1]{0}', space=sflag, size = 0x4, scoped, tag = 'scoped memory for tpu_custom_call.1']
    %21 = vsyncpa [#allocation6], 0
    %22 = vsyncpa [#allocation8], 0
    // Predicated region
    $region2: #{tpu_custom_call.1} parent=1 // pred_check
      _
    $region3: #{tpu_custom_call.1} parent=1 // pred_check_branch
      %24 = sbr.rel (0) target = $region5
    $region4: #{tpu_custom_call.1} parent=1 // pred_region
      _
    $region5: #{tpu_custom_call.1} parent=1 // pred_fallthru
      _
    // Predicated region
    $region6: #{tpu_custom_call.1} parent=1 // pred_check
      _
    $region7: #{tpu_custom_call.1} parent=1 // pred_check_branch
      %26 = sbr.rel (0) target = $region9
    $region8: #{tpu_custom_call.1} parent=1 // pred_region
      _
    $region9: #{tpu_custom_call.1} parent=1 // pred_fallthru
      _
    // Predicated region
    $region10: #{tpu_custom_call.1} parent=1 // pred_check
      _
    $region11: #{tpu_custom_call.1} parent=1 // pred_check_branch
      %28 = sbr.rel (0) target = $region13
    $region12: #{tpu_custom_call.1} parent=1 // pred_region
      _
    $region13: #{tpu_custom_call.1} parent=1 // pred_fallthru
      _
    // Predicated region
    $region14: #{tpu_custom_call.1} parent=1 // pred_check
      _
    $region15: #{tpu_custom_call.1} parent=1 // pred_check_branch
      %30 = sbr.rel (0) target = $region17
    $region16: #{tpu_custom_call.1} parent=1 // pred_region
      _
    $region17: #{tpu_custom_call.1} parent=1 // pred_fallthru
      _
    // Predicated region
    $region18: #{tpu_custom_call.1} parent=1 // pred_check
      _
    $region19: #{tpu_custom_call.1} parent=1 // pred_check_branch
      %32 = sbr.rel (0) target = $region21
    $region20: #{tpu_custom_call.1} parent=1 // pred_region
      _
    $region21: #{tpu_custom_call.1} parent=1 // pred_fallthru
      _
    // Predicated region
    $region22: #{tpu_custom_call.1} parent=1 // pred_check
      _
    $region23: #{tpu_custom_call.1} parent=1 // pred_check_branch
      %34 = sbr.rel (0) target = $region25
    $region24: #{tpu_custom_call.1} parent=1 // pred_region
      %s36 = ssub.s32 2048, 2048
      %37 = vsyncadd [#allocation6], %s36
      %s38 = sshll.u32 [#allocation5], 4
      %s39 = int_to_ptr.vmem [resolvable:$true] %s38
      %44 = dma.hbm_to_vmem [thread:$0]  %s5, 2048, %s39, [#allocation6], 1024, 1024, 64
    $region25: #{tpu_custom_call.1} parent=1 // pred_fallthru
      _
    // Predicated region
    $region26: #{tpu_custom_call.1} parent=1 // pred_check
      _
    $region27: #{tpu_custom_call.1} parent=1 // pred_check_branch
      %46 = sbr.rel (0) target = $region29
    $region28: #{tpu_custom_call.1} parent=1 // pred_region
      %s48 = ssub.s32 512, 512
      %49 = vsyncadd [#allocation8], %s48
      %s50 = sshll.u32 [#allocation7], 4
      %s51 = int_to_ptr.vmem [resolvable:$true] %s50
      %56 = dma.hbm_to_vmem [thread:$0]  %s6, 512, %s51, [#allocation8], 256, 256, 16
    $region29: #{tpu_custom_call.1} parent=1 // pred_fallthru
      _
    // Predicated region
    $region30: #{tpu_custom_call.1} parent=1 // pred_check
      _
    $region31: #{tpu_custom_call.1} parent=1 // pred_check_branch
      %58 = sbr.rel (0) target = $region33
    $region32: #{tpu_custom_call.1} parent=1 // pred_region
      _
    $region33: #{tpu_custom_call.1} parent=1 // pred_fallthru
      _
    // Predicated region
    $region34: #{tpu_custom_call.1} parent=1 // pred_check
      _
    $region35: #{tpu_custom_call.1} parent=1 // pred_check_branch
      %60 = sbr.rel (0) target = $region37
    $region36: #{tpu_custom_call.1} parent=1 // pred_region
      _
    $region37: #{tpu_custom_call.1} parent=1 // pred_fallthru
      _
    // Predicated region
    $region38: #{tpu_custom_call.1} parent=1 // pred_check
      _
    $region39: #{tpu_custom_call.1} parent=1 // pred_check_branch
      %62 = sbr.rel (0) target = $region41
    $region40: #{tpu_custom_call.1} parent=1 // pred_region
      _
    $region41: #{tpu_custom_call.1} parent=1 // pred_fallthru
      _
    // Predicated region
    $region42: #{tpu_custom_call.1} parent=1 // pred_check
      _
    $region43: #{tpu_custom_call.1} parent=1 // pred_check_branch
      %64 = sbr.rel (0) target = $region45
    $region44: #{tpu_custom_call.1} parent=1 // pred_region
      %65 = dma.done [#allocation6], 2048
    $region45: #{tpu_custom_call.1} parent=1 // pred_fallthru
      _
    // Predicated region
    $region46: #{tpu_custom_call.1} parent=1 // pred_check
      _
    $region47: #{tpu_custom_call.1} parent=1 // pred_check_branch
      %67 = sbr.rel (0) target = $region49
    $region48: #{tpu_custom_call.1} parent=1 // pred_region
      %68 = dma.done [#allocation8], 512
    $region49: #{tpu_custom_call.1} parent=1 // pred_fallthru
      _
    %v69 = vld [vmem:[%s0] sm:$0xff]
    %v70 = vld [vmem:[%s0 + $0x8] sm:$0xff]
    %v71 = vld [vmem:[%s0 + $0x10] sm:$0xff]
    %v72 = vld [vmem:[%s0 + $0x18] sm:$0xff]
    %v73 = vld [vmem:[%s0 + $0x20] sm:$0xff]
    %v74 = vld [vmem:[%s0 + $0x28] sm:$0xff]
    %v75 = vld [vmem:[%s0 + $0x30] sm:$0xff]
    %v76 = vld [vmem:[%s0 + $0x38] sm:$0xff]
    %v77 = vld [vmem:[%s0 + $0x40] sm:$0xff]
    %v78 = vld [vmem:[%s0 + $0x48] sm:$0xff]
    %v79 = vld [vmem:[%s0 + $0x50] sm:$0xff]
    %v80 = vld [vmem:[%s0 + $0x58] sm:$0xff]
    %v81 = vld [vmem:[%s0 + $0x60] sm:$0xff]
    %v82 = vld [vmem:[%s0 + $0x68] sm:$0xff]
    %v83 = vld [vmem:[%s0 + $0x70] sm:$0xff]
    %v84 = vld [vmem:[%s0 + $0x78] sm:$0xff]
    %v85 = vld [vmem:[%s0 + $0x80] sm:$0xff]
    %v86 = vld [vmem:[%s0 + $0x88] sm:$0xff]
    %v87 = vld [vmem:[%s0 + $0x90] sm:$0xff]
    %v88 = vld [vmem:[%s0 + $0x98] sm:$0xff]
    %v89 = vld [vmem:[%s0 + $0xa0] sm:$0xff]
    %v90 = vld [vmem:[%s0 + $0xa8] sm:$0xff]
    %v91 = vld [vmem:[%s0 + $0xb0] sm:$0xff]
    %v92 = vld [vmem:[%s0 + $0xb8] sm:$0xff]
    %v93 = vld [vmem:[%s0 + $0xc0] sm:$0xff]
    %v94 = vld [vmem:[%s0 + $0xc8] sm:$0xff]
    %v95 = vld [vmem:[%s0 + $0xd0] sm:$0xff]
    %v96 = vld [vmem:[%s0 + $0xd8] sm:$0xff]
    %v97 = vld [vmem:[%s0 + $0xe0] sm:$0xff]
    %v98 = vld [vmem:[%s0 + $0xe8] sm:$0xff]
    %v99 = vld [vmem:[%s0 + $0xf0] sm:$0xff]
    %v100 = vld [vmem:[%s0 + $0xf8] sm:$0xff]
    %v101 = vld [vmem:[%s0 + $0x100] sm:$0xff]
    %v102 = vld [vmem:[%s0 + $0x108] sm:$0xff]
    %v103 = vld [vmem:[%s0 + $0x110] sm:$0xff]
    %v104 = vld [vmem:[%s0 + $0x118] sm:$0xff]
    %v105 = vld [vmem:[%s0 + $0x120] sm:$0xff]
    %v106 = vld [vmem:[%s0 + $0x128] sm:$0xff]
    %v107 = vld [vmem:[%s0 + $0x130] sm:$0xff]
    %v108 = vld [vmem:[%s0 + $0x138] sm:$0xff]
    %v109 = vld [vmem:[%s0 + $0x140] sm:$0xff]
    %v110 = vld [vmem:[%s0 + $0x148] sm:$0xff]
    %v111 = vld [vmem:[%s0 + $0x150] sm:$0xff]
    %v112 = vld [vmem:[%s0 + $0x158] sm:$0xff]
    %v113 = vld [vmem:[%s0 + $0x160] sm:$0xff]
    %v114 = vld [vmem:[%s0 + $0x168] sm:$0xff]
    %v115 = vld [vmem:[%s0 + $0x170] sm:$0xff]
    %v116 = vld [vmem:[%s0 + $0x178] sm:$0xff]
    %v117 = vld [vmem:[%s0 + $0x180] sm:$0xff]
    %v118 = vld [vmem:[%s0 + $0x188] sm:$0xff]
    %v119 = vld [vmem:[%s0 + $0x190] sm:$0xff]
    %v120 = vld [vmem:[%s0 + $0x198] sm:$0xff]
    %v121 = vld [vmem:[%s0 + $0x1a0] sm:$0xff]
    %v122 = vld [vmem:[%s0 + $0x1a8] sm:$0xff]
    %v123 = vld [vmem:[%s0 + $0x1b0] sm:$0xff]
    %v124 = vld [vmem:[%s0 + $0x1b8] sm:$0xff]
    %v125 = vld [vmem:[%s0 + $0x1c0] sm:$0xff]
    %v126 = vld [vmem:[%s0 + $0x1c8] sm:$0xff]
    %v127 = vld [vmem:[%s0 + $0x1d0] sm:$0xff]
    %v128 = vld [vmem:[%s0 + $0x1d8] sm:$0xff]
    %v129 = vld [vmem:[%s0 + $0x1e0] sm:$0xff]
    %v130 = vld [vmem:[%s0 + $0x1e8] sm:$0xff]
    %v131 = vld [vmem:[%s0 + $0x1f0] sm:$0xff]
    %v132 = vld [vmem:[%s0 + $0x1f8] sm:$0xff]
    %v133 = vld [vmem:[%s0 + $0x200] sm:$0xff]
    %v134 = vld [vmem:[%s0 + $0x208] sm:$0xff]
    %v135 = vld [vmem:[%s0 + $0x210] sm:$0xff]
    %v136 = vld [vmem:[%s0 + $0x218] sm:$0xff]
    %v137 = vld [vmem:[%s0 + $0x220] sm:$0xff]
    %v138 = vld [vmem:[%s0 + $0x228] sm:$0xff]
    %v139 = vld [vmem:[%s0 + $0x230] sm:$0xff]
    %v140 = vld [vmem:[%s0 + $0x238] sm:$0xff]
    %v141 = vld [vmem:[%s0 + $0x240] sm:$0xff]
    %v142 = vld [vmem:[%s0 + $0x248] sm:$0xff]
    %v143 = vld [vmem:[%s0 + $0x250] sm:$0xff]
    %v144 = vld [vmem:[%s0 + $0x258] sm:$0xff]
    %v145 = vld [vmem:[%s0 + $0x260] sm:$0xff]
    %v146 = vld [vmem:[%s0 + $0x268] sm:$0xff]
    %v147 = vld [vmem:[%s0 + $0x270] sm:$0xff]
    %v148 = vld [vmem:[%s0 + $0x278] sm:$0xff]
    %v149 = vld [vmem:[%s0 + $0x280] sm:$0xff]
    %v150 = vld [vmem:[%s0 + $0x288] sm:$0xff]
    %v151 = vld [vmem:[%s0 + $0x290] sm:$0xff]
    %v152 = vld [vmem:[%s0 + $0x298] sm:$0xff]
    %v153 = vld [vmem:[%s0 + $0x2a0] sm:$0xff]
    %v154 = vld [vmem:[%s0 + $0x2a8] sm:$0xff]
    %v155 = vld [vmem:[%s0 + $0x2b0] sm:$0xff]
    %v156 = vld [vmem:[%s0 + $0x2b8] sm:$0xff]
    %v157 = vld [vmem:[%s0 + $0x2c0] sm:$0xff]
    %v158 = vld [vmem:[%s0 + $0x2c8] sm:$0xff]
    %v159 = vld [vmem:[%s0 + $0x2d0] sm:$0xff]
    %v160 = vld [vmem:[%s0 + $0x2d8] sm:$0xff]
    %v161 = vld [vmem:[%s0 + $0x2e0] sm:$0xff]
    %v162 = vld [vmem:[%s0 + $0x2e8] sm:$0xff]
    %v163 = vld [vmem:[%s0 + $0x2f0] sm:$0xff]
    %v164 = vld [vmem:[%s0 + $0x2f8] sm:$0xff]
    %v165 = vld [vmem:[%s0 + $0x300] sm:$0xff]
    %v166 = vld [vmem:[%s0 + $0x308] sm:$0xff]
    %v167 = vld [vmem:[%s0 + $0x310] sm:$0xff]
    %v168 = vld [vmem:[%s0 + $0x318] sm:$0xff]
    %v169 = vld [vmem:[%s0 + $0x320] sm:$0xff]
    %v170 = vld [vmem:[%s0 + $0x328] sm:$0xff]
    %v171 = vld [vmem:[%s0 + $0x330] sm:$0xff]
    %v172 = vld [vmem:[%s0 + $0x338] sm:$0xff]
    %v173 = vld [vmem:[%s0 + $0x340] sm:$0xff]
    %v174 = vld [vmem:[%s0 + $0x348] sm:$0xff]
    %v175 = vld [vmem:[%s0 + $0x350] sm:$0xff]
    %v176 = vld [vmem:[%s0 + $0x358] sm:$0xff]
    %v177 = vld [vmem:[%s0 + $0x360] sm:$0xff]
    %v178 = vld [vmem:[%s0 + $0x368] sm:$0xff]
    %v179 = vld [vmem:[%s0 + $0x370] sm:$0xff]
    %v180 = vld [vmem:[%s0 + $0x378] sm:$0xff]
    %v181 = vld [vmem:[%s0 + $0x380] sm:$0xff]
    %v182 = vld [vmem:[%s0 + $0x388] sm:$0xff]
    %v183 = vld [vmem:[%s0 + $0x390] sm:$0xff]
    %v184 = vld [vmem:[%s0 + $0x398] sm:$0xff]
    %v185 = vld [vmem:[%s0 + $0x3a0] sm:$0xff]
    %v186 = vld [vmem:[%s0 + $0x3a8] sm:$0xff]
    %v187 = vld [vmem:[%s0 + $0x3b0] sm:$0xff]
    %v188 = vld [vmem:[%s0 + $0x3b8] sm:$0xff]
    %v189 = vld [vmem:[%s0 + $0x3c0] sm:$0xff]
    %v190 = vld [vmem:[%s0 + $0x3c8] sm:$0xff]
    %v191 = vld [vmem:[%s0 + $0x3d0] sm:$0xff]
    %v192 = vld [vmem:[%s0 + $0x3d8] sm:$0xff]
    %v193 = vld [vmem:[%s0 + $0x3e0] sm:$0xff]
    %v194 = vld [vmem:[%s0 + $0x3e8] sm:$0xff]
    %v195 = vld [vmem:[%s0 + $0x3f0] sm:$0xff]
    %v196 = vld [vmem:[%s0 + $0x3f8] sm:$0xff]
    %v197 = vld [vmem:[%s1] sm:$0xff]
    %v198 = vld [vmem:[%s1 + $0x8] sm:$0xff]
    %v199 = vld [vmem:[%s1 + $0x10] sm:$0xff]
    %v200 = vld [vmem:[%s1 + $0x18] sm:$0xff]
    %v201 = vld [vmem:[%s1 + $0x20] sm:$0xff]
    %v202 = vld [vmem:[%s1 + $0x28] sm:$0xff]
    %v203 = vld [vmem:[%s1 + $0x30] sm:$0xff]
    %v204 = vld [vmem:[%s1 + $0x38] sm:$0xff]
    %v205 = vld [vmem:[%s1 + $0x40] sm:$0xff]
    %v206 = vld [vmem:[%s1 + $0x48] sm:$0xff]
    %v207 = vld [vmem:[%s1 + $0x50] sm:$0xff]
    %v208 = vld [vmem:[%s1 + $0x58] sm:$0xff]
    %v209 = vld [vmem:[%s1 + $0x60] sm:$0xff]
    %v210 = vld [vmem:[%s1 + $0x68] sm:$0xff]
    %v211 = vld [vmem:[%s1 + $0x70] sm:$0xff]
    %v212 = vld [vmem:[%s1 + $0x78] sm:$0xff]
    %v213 = vld [vmem:[%s1 + $0x80] sm:$0xff]
    %v214 = vld [vmem:[%s1 + $0x88] sm:$0xff]
    %v215 = vld [vmem:[%s1 + $0x90] sm:$0xff]
    %v216 = vld [vmem:[%s1 + $0x98] sm:$0xff]
    %v217 = vld [vmem:[%s1 + $0xa0] sm:$0xff]
    %v218 = vld [vmem:[%s1 + $0xa8] sm:$0xff]
    %v219 = vld [vmem:[%s1 + $0xb0] sm:$0xff]
    %v220 = vld [vmem:[%s1 + $0xb8] sm:$0xff]
    %v221 = vld [vmem:[%s1 + $0xc0] sm:$0xff]
    %v222 = vld [vmem:[%s1 + $0xc8] sm:$0xff]
    %v223 = vld [vmem:[%s1 + $0xd0] sm:$0xff]
    %v224 = vld [vmem:[%s1 + $0xd8] sm:$0xff]
    %v225 = vld [vmem:[%s1 + $0xe0] sm:$0xff]
    %v226 = vld [vmem:[%s1 + $0xe8] sm:$0xff]
    %v227 = vld [vmem:[%s1 + $0xf0] sm:$0xff]
    %v228 = vld [vmem:[%s1 + $0xf8] sm:$0xff]
    %v229 = vld [vmem:[%s1 + $0x100] sm:$0xff]
    %v230 = vld [vmem:[%s1 + $0x108] sm:$0xff]
    %v231 = vld [vmem:[%s1 + $0x110] sm:$0xff]
    %v232 = vld [vmem:[%s1 + $0x118] sm:$0xff]
    %v233 = vld [vmem:[%s1 + $0x120] sm:$0xff]
    %v234 = vld [vmem:[%s1 + $0x128] sm:$0xff]
    %v235 = vld [vmem:[%s1 + $0x130] sm:$0xff]
    %v236 = vld [vmem:[%s1 + $0x138] sm:$0xff]
    %v237 = vld [vmem:[%s1 + $0x140] sm:$0xff]
    %v238 = vld [vmem:[%s1 + $0x148] sm:$0xff]
    %v239 = vld [vmem:[%s1 + $0x150] sm:$0xff]
    %v240 = vld [vmem:[%s1 + $0x158] sm:$0xff]
    %v241 = vld [vmem:[%s1 + $0x160] sm:$0xff]
    %v242 = vld [vmem:[%s1 + $0x168] sm:$0xff]
    %v243 = vld [vmem:[%s1 + $0x170] sm:$0xff]
    %v244 = vld [vmem:[%s1 + $0x178] sm:$0xff]
    %v245 = vld [vmem:[%s1 + $0x180] sm:$0xff]
    %v246 = vld [vmem:[%s1 + $0x188] sm:$0xff]
    %v247 = vld [vmem:[%s1 + $0x190] sm:$0xff]
    %v248 = vld [vmem:[%s1 + $0x198] sm:$0xff]
    %v249 = vld [vmem:[%s1 + $0x1a0] sm:$0xff]
    %v250 = vld [vmem:[%s1 + $0x1a8] sm:$0xff]
    %v251 = vld [vmem:[%s1 + $0x1b0] sm:$0xff]
    %v252 = vld [vmem:[%s1 + $0x1b8] sm:$0xff]
    %v253 = vld [vmem:[%s1 + $0x1c0] sm:$0xff]
    %v254 = vld [vmem:[%s1 + $0x1c8] sm:$0xff]
    %v255 = vld [vmem:[%s1 + $0x1d0] sm:$0xff]
    %v256 = vld [vmem:[%s1 + $0x1d8] sm:$0xff]
    %v257 = vld [vmem:[%s1 + $0x1e0] sm:$0xff]
    %v258 = vld [vmem:[%s1 + $0x1e8] sm:$0xff]
    %v259 = vld [vmem:[%s1 + $0x1f0] sm:$0xff]
    %v260 = vld [vmem:[%s1 + $0x1f8] sm:$0xff]
    %v261 = vld [vmem:[%s1 + $0x200] sm:$0xff]
    %v262 = vld [vmem:[%s1 + $0x208] sm:$0xff]
    %v263 = vld [vmem:[%s1 + $0x210] sm:$0xff]
    %v264 = vld [vmem:[%s1 + $0x218] sm:$0xff]
    %v265 = vld [vmem:[%s1 + $0x220] sm:$0xff]
    %v266 = vld [vmem:[%s1 + $0x228] sm:$0xff]
    %v267 = vld [vmem:[%s1 + $0x230] sm:$0xff]
    %v268 = vld [vmem:[%s1 + $0x238] sm:$0xff]
    %v269 = vld [vmem:[%s1 + $0x240] sm:$0xff]
    %v270 = vld [vmem:[%s1 + $0x248] sm:$0xff]
    %v271 = vld [vmem:[%s1 + $0x250] sm:$0xff]
    %v272 = vld [vmem:[%s1 + $0x258] sm:$0xff]
    %v273 = vld [vmem:[%s1 + $0x260] sm:$0xff]
    %v274 = vld [vmem:[%s1 + $0x268] sm:$0xff]
    %v275 = vld [vmem:[%s1 + $0x270] sm:$0xff]
    %v276 = vld [vmem:[%s1 + $0x278] sm:$0xff]
    %v277 = vld [vmem:[%s1 + $0x280] sm:$0xff]
    %v278 = vld [vmem:[%s1 + $0x288] sm:$0xff]
    %v279 = vld [vmem:[%s1 + $0x290] sm:$0xff]
    %v280 = vld [vmem:[%s1 + $0x298] sm:$0xff]
    %v281 = vld [vmem:[%s1 + $0x2a0] sm:$0xff]
    %v282 = vld [vmem:[%s1 + $0x2a8] sm:$0xff]
    %v283 = vld [vmem:[%s1 + $0x2b0] sm:$0xff]
    %v284 = vld [vmem:[%s1 + $0x2b8] sm:$0xff]
    %v285 = vld [vmem:[%s1 + $0x2c0] sm:$0xff]
    %v286 = vld [vmem:[%s1 + $0x2c8] sm:$0xff]
    %v287 = vld [vmem:[%s1 + $0x2d0] sm:$0xff]
    %v288 = vld [vmem:[%s1 + $0x2d8] sm:$0xff]
    %v289 = vld [vmem:[%s1 + $0x2e0] sm:$0xff]
    %v290 = vld [vmem:[%s1 + $0x2e8] sm:$0xff]
    %v291 = vld [vmem:[%s1 + $0x2f0] sm:$0xff]
    %v292 = vld [vmem:[%s1 + $0x2f8] sm:$0xff]
    %v293 = vld [vmem:[%s1 + $0x300] sm:$0xff]
    %v294 = vld [vmem:[%s1 + $0x308] sm:$0xff]
    %v295 = vld [vmem:[%s1 + $0x310] sm:$0xff]
    %v296 = vld [vmem:[%s1 + $0x318] sm:$0xff]
    %v297 = vld [vmem:[%s1 + $0x320] sm:$0xff]
    %v298 = vld [vmem:[%s1 + $0x328] sm:$0xff]
    %v299 = vld [vmem:[%s1 + $0x330] sm:$0xff]
    %v300 = vld [vmem:[%s1 + $0x338] sm:$0xff]
    %v301 = vld [vmem:[%s1 + $0x340] sm:$0xff]
    %v302 = vld [vmem:[%s1 + $0x348] sm:$0xff]
    %v303 = vld [vmem:[%s1 + $0x350] sm:$0xff]
    %v304 = vld [vmem:[%s1 + $0x358] sm:$0xff]
    %v305 = vld [vmem:[%s1 + $0x360] sm:$0xff]
    %v306 = vld [vmem:[%s1 + $0x368] sm:$0xff]
    %v307 = vld [vmem:[%s1 + $0x370] sm:$0xff]
    %v308 = vld [vmem:[%s1 + $0x378] sm:$0xff]
    %v309 = vld [vmem:[%s1 + $0x380] sm:$0xff]
    %v310 = vld [vmem:[%s1 + $0x388] sm:$0xff]
    %v311 = vld [vmem:[%s1 + $0x390] sm:$0xff]
    %v312 = vld [vmem:[%s1 + $0x398] sm:$0xff]
    %v313 = vld [vmem:[%s1 + $0x3a0] sm:$0xff]
    %v314 = vld [vmem:[%s1 + $0x3a8] sm:$0xff]
    %v315 = vld [vmem:[%s1 + $0x3b0] sm:$0xff]
    %v316 = vld [vmem:[%s1 + $0x3b8] sm:$0xff]
    %v317 = vld [vmem:[%s1 + $0x3c0] sm:$0xff]
    %v318 = vld [vmem:[%s1 + $0x3c8] sm:$0xff]
    %v319 = vld [vmem:[%s1 + $0x3d0] sm:$0xff]
    %v320 = vld [vmem:[%s1 + $0x3d8] sm:$0xff]
    %v321 = vld [vmem:[%s1 + $0x3e0] sm:$0xff]
    %v322 = vld [vmem:[%s1 + $0x3e8] sm:$0xff]
    %v323 = vld [vmem:[%s1 + $0x3f0] sm:$0xff]
    %v324 = vld [vmem:[%s1 + $0x3f8] sm:$0xff]
    %v325 = vld [vmem:[%s1 + $0x400] sm:$0xff]
    %v326 = vld [vmem:[%s1 + $0x408] sm:$0xff]
    %v327 = vld [vmem:[%s1 + $0x410] sm:$0xff]
    %v328 = vld [vmem:[%s1 + $0x418] sm:$0xff]
    %v329 = vld [vmem:[%s1 + $0x420] sm:$0xff]
    %v330 = vld [vmem:[%s1 + $0x428] sm:$0xff]
    %v331 = vld [vmem:[%s1 + $0x430] sm:$0xff]
    %v332 = vld [vmem:[%s1 + $0x438] sm:$0xff]
    %v333 = vld [vmem:[%s1 + $0x440] sm:$0xff]
    %v334 = vld [vmem:[%s1 + $0x448] sm:$0xff]
    %v335 = vld [vmem:[%s1 + $0x450] sm:$0xff]
    %v336 = vld [vmem:[%s1 + $0x458] sm:$0xff]
    %v337 = vld [vmem:[%s1 + $0x460] sm:$0xff]
    %v338 = vld [vmem:[%s1 + $0x468] sm:$0xff]
    %v339 = vld [vmem:[%s1 + $0x470] sm:$0xff]
    %v340 = vld [vmem:[%s1 + $0x478] sm:$0xff]
    %v341 = vld [vmem:[%s1 + $0x480] sm:$0xff]
    %v342 = vld [vmem:[%s1 + $0x488] sm:$0xff]
    %v343 = vld [vmem:[%s1 + $0x490] sm:$0xff]
    %v344 = vld [vmem:[%s1 + $0x498] sm:$0xff]
    %v345 = vld [vmem:[%s1 + $0x4a0] sm:$0xff]
    %v346 = vld [vmem:[%s1 + $0x4a8] sm:$0xff]
    %v347 = vld [vmem:[%s1 + $0x4b0] sm:$0xff]
    %v348 = vld [vmem:[%s1 + $0x4b8] sm:$0xff]
    %v349 = vld [vmem:[%s1 + $0x4c0] sm:$0xff]
    %v350 = vld [vmem:[%s1 + $0x4c8] sm:$0xff]
    %v351 = vld [vmem:[%s1 + $0x4d0] sm:$0xff]
    %v352 = vld [vmem:[%s1 + $0x4d8] sm:$0xff]
    %v353 = vld [vmem:[%s1 + $0x4e0] sm:$0xff]
    %v354 = vld [vmem:[%s1 + $0x4e8] sm:$0xff]
    %v355 = vld [vmem:[%s1 + $0x4f0] sm:$0xff]
    %v356 = vld [vmem:[%s1 + $0x4f8] sm:$0xff]
    %v357 = vld [vmem:[%s1 + $0x500] sm:$0xff]
    %v358 = vld [vmem:[%s1 + $0x508] sm:$0xff]
    %v359 = vld [vmem:[%s1 + $0x510] sm:$0xff]
    %v360 = vld [vmem:[%s1 + $0x518] sm:$0xff]
    %v361 = vld [vmem:[%s1 + $0x520] sm:$0xff]
    %v362 = vld [vmem:[%s1 + $0x528] sm:$0xff]
    %v363 = vld [vmem:[%s1 + $0x530] sm:$0xff]
    %v364 = vld [vmem:[%s1 + $0x538] sm:$0xff]
    %v365 = vld [vmem:[%s1 + $0x540] sm:$0xff]
    %v366 = vld [vmem:[%s1 + $0x548] sm:$0xff]
    %v367 = vld [vmem:[%s1 + $0x550] sm:$0xff]
    %v368 = vld [vmem:[%s1 + $0x558] sm:$0xff]
    %v369 = vld [vmem:[%s1 + $0x560] sm:$0xff]
    %v370 = vld [vmem:[%s1 + $0x568] sm:$0xff]
    %v371 = vld [vmem:[%s1 + $0x570] sm:$0xff]
    %v372 = vld [vmem:[%s1 + $0x578] sm:$0xff]
    %v373 = vld [vmem:[%s1 + $0x580] sm:$0xff]
    %v374 = vld [vmem:[%s1 + $0x588] sm:$0xff]
    %v375 = vld [vmem:[%s1 + $0x590] sm:$0xff]
    %v376 = vld [vmem:[%s1 + $0x598] sm:$0xff]
    %v377 = vld [vmem:[%s1 + $0x5a0] sm:$0xff]
    %v378 = vld [vmem:[%s1 + $0x5a8] sm:$0xff]
    %v379 = vld [vmem:[%s1 + $0x5b0] sm:$0xff]
    %v380 = vld [vmem:[%s1 + $0x5b8] sm:$0xff]
    %v381 = vld [vmem:[%s1 + $0x5c0] sm:$0xff]
    %v382 = vld [vmem:[%s1 + $0x5c8] sm:$0xff]
    %v383 = vld [vmem:[%s1 + $0x5d0] sm:$0xff]
    %v384 = vld [vmem:[%s1 + $0x5d8] sm:$0xff]
    %v385 = vld [vmem:[%s1 + $0x5e0] sm:$0xff]
    %v386 = vld [vmem:[%s1 + $0x5e8] sm:$0xff]
    %v387 = vld [vmem:[%s1 + $0x5f0] sm:$0xff]
    %v388 = vld [vmem:[%s1 + $0x5f8] sm:$0xff]
    %v389 = vld [vmem:[%s1 + $0x600] sm:$0xff]
    %v390 = vld [vmem:[%s1 + $0x608] sm:$0xff]
    %v391 = vld [vmem:[%s1 + $0x610] sm:$0xff]
    %v392 = vld [vmem:[%s1 + $0x618] sm:$0xff]
    %v393 = vld [vmem:[%s1 + $0x620] sm:$0xff]
    %v394 = vld [vmem:[%s1 + $0x628] sm:$0xff]
    %v395 = vld [vmem:[%s1 + $0x630] sm:$0xff]
    %v396 = vld [vmem:[%s1 + $0x638] sm:$0xff]
    %v397 = vld [vmem:[%s1 + $0x640] sm:$0xff]
    %v398 = vld [vmem:[%s1 + $0x648] sm:$0xff]
    %v399 = vld [vmem:[%s1 + $0x650] sm:$0xff]
    %v400 = vld [vmem:[%s1 + $0x658] sm:$0xff]
    %v401 = vld [vmem:[%s1 + $0x660] sm:$0xff]
    %v402 = vld [vmem:[%s1 + $0x668] sm:$0xff]
    %v403 = vld [vmem:[%s1 + $0x670] sm:$0xff]
    %v404 = vld [vmem:[%s1 + $0x678] sm:$0xff]
    %v405 = vld [vmem:[%s1 + $0x680] sm:$0xff]
    %v406 = vld [vmem:[%s1 + $0x688] sm:$0xff]
    %v407 = vld [vmem:[%s1 + $0x690] sm:$0xff]
    %v408 = vld [vmem:[%s1 + $0x698] sm:$0xff]
    %v409 = vld [vmem:[%s1 + $0x6a0] sm:$0xff]
    %v410 = vld [vmem:[%s1 + $0x6a8] sm:$0xff]
    %v411 = vld [vmem:[%s1 + $0x6b0] sm:$0xff]
    %v412 = vld [vmem:[%s1 + $0x6b8] sm:$0xff]
    %v413 = vld [vmem:[%s1 + $0x6c0] sm:$0xff]
    %v414 = vld [vmem:[%s1 + $0x6c8] sm:$0xff]
    %v415 = vld [vmem:[%s1 + $0x6d0] sm:$0xff]
    %v416 = vld [vmem:[%s1 + $0x6d8] sm:$0xff]
    %v417 = vld [vmem:[%s1 + $0x6e0] sm:$0xff]
    %v418 = vld [vmem:[%s1 + $0x6e8] sm:$0xff]
    %v419 = vld [vmem:[%s1 + $0x6f0] sm:$0xff]
    %v420 = vld [vmem:[%s1 + $0x6f8] sm:$0xff]
    %v421 = vld [vmem:[%s1 + $0x700] sm:$0xff]
    %v422 = vld [vmem:[%s1 + $0x708] sm:$0xff]
    %v423 = vld [vmem:[%s1 + $0x710] sm:$0xff]
    %v424 = vld [vmem:[%s1 + $0x718] sm:$0xff]
    %v425 = vld [vmem:[%s1 + $0x720] sm:$0xff]
    %v426 = vld [vmem:[%s1 + $0x728] sm:$0xff]
    %v427 = vld [vmem:[%s1 + $0x730] sm:$0xff]
    %v428 = vld [vmem:[%s1 + $0x738] sm:$0xff]
    %v429 = vld [vmem:[%s1 + $0x740] sm:$0xff]
    %v430 = vld [vmem:[%s1 + $0x748] sm:$0xff]
    %v431 = vld [vmem:[%s1 + $0x750] sm:$0xff]
    %v432 = vld [vmem:[%s1 + $0x758] sm:$0xff]
    %v433 = vld [vmem:[%s1 + $0x760] sm:$0xff]
    %v434 = vld [vmem:[%s1 + $0x768] sm:$0xff]
    %v435 = vld [vmem:[%s1 + $0x770] sm:$0xff]
    %v436 = vld [vmem:[%s1 + $0x778] sm:$0xff]
    %v437 = vld [vmem:[%s1 + $0x780] sm:$0xff]
    %v438 = vld [vmem:[%s1 + $0x788] sm:$0xff]
    %v439 = vld [vmem:[%s1 + $0x790] sm:$0xff]
    %v440 = vld [vmem:[%s1 + $0x798] sm:$0xff]
    %v441 = vld [vmem:[%s1 + $0x7a0] sm:$0xff]
    %v442 = vld [vmem:[%s1 + $0x7a8] sm:$0xff]
    %v443 = vld [vmem:[%s1 + $0x7b0] sm:$0xff]
    %v444 = vld [vmem:[%s1 + $0x7b8] sm:$0xff]
    %v445 = vld [vmem:[%s1 + $0x7c0] sm:$0xff]
    %v446 = vld [vmem:[%s1 + $0x7c8] sm:$0xff]
    %v447 = vld [vmem:[%s2] sm:$0x3]
    %v449 = vlaneseq
    %v450 = vshrl.u32 %v449, 7
    %v451 = vsub.s32 0, %v450
    %v452 = vrot.slane %v447, %v451
    %v453 = vlaneseq
    %v454 = vshrl.u32 %v453, 7
    %v455 = vsub.s32 1, %v454
    %v456 = vrot.slane %v447, %v455
    %vm459 = vcmask 850944
    %v461 = vsel %vm459, %v76, 0
    %v464 = vsel %vm459, %v84, 0
    %v467 = vsel %vm459, %v92, 0
    %v470 = vsel %vm459, %v100, 0
    %v473 = vsel %vm459, %v108, 0
    %v476 = vsel %vm459, %v116, 0
    %v479 = vsel %vm459, %v124, 0
    %v482 = vsel %vm459, %v132, 0
    %v485 = vsel %vm459, %v140, 0
    %v488 = vsel %vm459, %v148, 0
    %v491 = vsel %vm459, %v156, 0
    %v494 = vsel %vm459, %v164, 0
    %v497 = vsel %vm459, %v172, 0
    %v500 = vsel %vm459, %v180, 0
    %v503 = vsel %vm459, %v188, 0
    %v506 = vsel %vm459, %v196, 0
    %508 = vmatprep.subr.mxu0 %v228
    %509 = vmatpush1.msra.mxu0 %v227
    %510 = vmatprep.subr.mxu0 %v226
    %511 = vmatpush1.msra.mxu0 %v225
    %512 = vmatprep.subr.mxu0 %v224
    %513 = vmatpush1.msra.mxu0 %v223
    %514 = vmatprep.subr.mxu0 %v222
    %515 = vmatpush1.msra.mxu0 %v221
    %516 = vmatprep.subr.mxu0 %v220
    %517 = vmatpush1.msra.mxu0 %v219
    %518 = vmatprep.subr.mxu0 %v218
    %519 = vmatpush1.msra.mxu0 %v217
    %520 = vmatprep.subr.mxu0 %v216
    %521 = vmatpush1.msra.mxu0 %v215
    %522 = vmatprep.subr.mxu0 %v214
    %523 = vmatpush1.msra.mxu0 %v213
    %524 = vmatprep.subr.mxu0 %v212
    %525 = vmatpush1.msra.mxu0 %v211
    %526 = vmatprep.subr.mxu0 %v210
    %527 = vmatpush1.msra.mxu0 %v209
    %528 = vmatprep.subr.mxu0 %v208
    %529 = vmatpush1.msra.mxu0 %v207
    %530 = vmatprep.subr.mxu0 %v206
    %531 = vmatpush1.msra.mxu0 %v205
    %532 = vmatprep.subr.mxu0 %v204
    %533 = vmatpush1.msra.mxu0 %v203
    %534 = vmatprep.subr.mxu0 %v202
    %535 = vmatpush1.msra.mxu0 %v201
    %536 = vmatprep.subr.mxu0 %v200
    %537 = vmatpush1.msra.mxu0 %v199
    %538 = vmatprep.subr.mxu0 %v198
    %539 = vmatpush1.msra.mxu0 %v197
    %540 = vmatprep.subr.mxu0 %v260
    %541 = vmatpush2.msra.mxu0 %v259
    %542 = vmatprep.subr.mxu0 %v258
    %543 = vmatpush2.msra.mxu0 %v257
    %544 = vmatprep.subr.mxu0 %v256
    %545 = vmatpush2.msra.mxu0 %v255
    %546 = vmatprep.subr.mxu0 %v254
    %547 = vmatpush2.msra.mxu0 %v253
    %548 = vmatprep.subr.mxu0 %v252
    %549 = vmatpush2.msra.mxu0 %v251
    %550 = vmatprep.subr.mxu0 %v250
    %551 = vmatpush2.msra.mxu0 %v249
    %552 = vmatprep.subr.mxu0 %v248
    %553 = vmatpush2.msra.mxu0 %v247
    %554 = vmatprep.subr.mxu0 %v246
    %555 = vmatpush2.msra.mxu0 %v245
    %556 = vmatprep.subr.mxu0 %v244
    %557 = vmatpush2.msra.mxu0 %v243
    %558 = vmatprep.subr.mxu0 %v242
    %559 = vmatpush2.msra.mxu0 %v241
    %560 = vmatprep.subr.mxu0 %v240
    %561 = vmatpush2.msra.mxu0 %v239
    %562 = vmatprep.subr.mxu0 %v238
    %563 = vmatpush2.msra.mxu0 %v237
    %564 = vmatprep.subr.mxu0 %v236
    %565 = vmatpush2.msra.mxu0 %v235
    %566 = vmatprep.subr.mxu0 %v234
    %567 = vmatpush2.msra.mxu0 %v233
    %568 = vmatprep.subr.mxu0 %v232
    %569 = vmatpush2.msra.mxu0 %v231
    %570 = vmatprep.subr.mxu0 %v230
    %571 = vmatpush2.msra.mxu0 %v229
    %572 = vmatprep.mubr.f32.mxu0 %v70
    %573 = vmatmul.mubr.f32.gmra.mxu0 %v69
    %v574 = vpop.f32.mrf.mxu0
    %v575 = vadd.f32 %v452, %v574
    %v576 = vpop.f32.mrf.mxu0
    %v577 = vadd.f32 %v456, %v576
    %578 = vmatprep.mubr.f32.mxu0 %v78
    %579 = vmatmul.mubr.f32.gmra.mxu0 %v77
    %v580 = vpop.f32.mrf.mxu0
    %v581 = vadd.f32 %v452, %v580
    %v582 = vpop.f32.mrf.mxu0
    %v583 = vadd.f32 %v456, %v582
    %584 = vmatprep.mubr.f32.mxu0 %v86
    %585 = vmatmul.mubr.f32.gmra.mxu0 %v85
    %v586 = vpop.f32.mrf.mxu0
    %v587 = vadd.f32 %v452, %v586
    %v588 = vpop.f32.mrf.mxu0
    %v589 = vadd.f32 %v456, %v588
    %590 = vmatprep.mubr.f32.mxu0 %v94
    %591 = vmatmul.mubr.f32.gmra.mxu0 %v93
    %v592 = vpop.f32.mrf.mxu0
    %v593 = vadd.f32 %v452, %v592
    %v594 = vpop.f32.mrf.mxu0
    %v595 = vadd.f32 %v456, %v594
    %596 = vmatprep.mubr.f32.mxu0 %v102
    %597 = vmatmul.mubr.f32.gmra.mxu0 %v101
    %v598 = vpop.f32.mrf.mxu0
    %v599 = vadd.f32 %v452, %v598
    %v600 = vpop.f32.mrf.mxu0
    %v601 = vadd.f32 %v456, %v600
    %602 = vmatprep.mubr.f32.mxu0 %v110
    %603 = vmatmul.mubr.f32.gmra.mxu0 %v109
    %v604 = vpop.f32.mrf.mxu0
    %v605 = vadd.f32 %v452, %v604
    %v606 = vpop.f32.mrf.mxu0
    %v607 = vadd.f32 %v456, %v606
    %608 = vmatprep.mubr.f32.mxu0 %v118
    %609 = vmatmul.mubr.f32.gmra.mxu0 %v117
    %v610 = vpop.f32.mrf.mxu0
    %v611 = vadd.f32 %v452, %v610
    %v612 = vpop.f32.mrf.mxu0
    %v613 = vadd.f32 %v456, %v612
    %614 = vmatprep.mubr.f32.mxu0 %v126
    %615 = vmatmul.mubr.f32.gmra.mxu0 %v125
    %v616 = vpop.f32.mrf.mxu0
    %v617 = vadd.f32 %v452, %v616
    %v618 = vpop.f32.mrf.mxu0
    %v619 = vadd.f32 %v456, %v618
    %620 = vmatprep.mubr.f32.mxu0 %v134
    %621 = vmatmul.mubr.f32.gmra.mxu0 %v133
    %v622 = vpop.f32.mrf.mxu0
    %v623 = vadd.f32 %v452, %v622
    %v624 = vpop.f32.mrf.mxu0
    %v625 = vadd.f32 %v456, %v624
    %626 = vmatprep.mubr.f32.mxu0 %v142
    %627 = vmatmul.mubr.f32.gmra.mxu0 %v141
    %v628 = vpop.f32.mrf.mxu0
    %v629 = vadd.f32 %v452, %v628
    %v630 = vpop.f32.mrf.mxu0
    %v631 = vadd.f32 %v456, %v630
    %632 = vmatprep.mubr.f32.mxu0 %v150
    %633 = vmatmul.mubr.f32.gmra.mxu0 %v149
    %v634 = vpop.f32.mrf.mxu0
    %v635 = vadd.f32 %v452, %v634
    %v636 = vpop.f32.mrf.mxu0
    %v637 = vadd.f32 %v456, %v636
    %638 = vmatprep.mubr.f32.mxu0 %v158
    %639 = vmatmul.mubr.f32.gmra.mxu0 %v157
    %v640 = vpop.f32.mrf.mxu0
    %v641 = vadd.f32 %v452, %v640
    %v642 = vpop.f32.mrf.mxu0
    %v643 = vadd.f32 %v456, %v642
    %644 = vmatprep.mubr.f32.mxu0 %v166
    %645 = vmatmul.mubr.f32.gmra.mxu0 %v165
    %v646 = vpop.f32.mrf.mxu0
    %v647 = vadd.f32 %v452, %v646
    %v648 = vpop.f32.mrf.mxu0
    %v649 = vadd.f32 %v456, %v648
    %650 = vmatprep.mubr.f32.mxu0 %v174
    %651 = vmatmul.mubr.f32.gmra.mxu0 %v173
    %v652 = vpop.f32.mrf.mxu0
    %v653 = vadd.f32 %v452, %v652
    %v654 = vpop.f32.mrf.mxu0
    %v655 = vadd.f32 %v456, %v654
    %656 = vmatprep.mubr.f32.mxu0 %v182
    %657 = vmatmul.mubr.f32.gmra.mxu0 %v181
    %v658 = vpop.f32.mrf.mxu0
    %v659 = vadd.f32 %v452, %v658
    %v660 = vpop.f32.mrf.mxu0
    %v661 = vadd.f32 %v456, %v660
    %662 = vmatprep.mubr.f32.mxu0 %v190
    %663 = vmatmul.mubr.f32.gmra.mxu0 %v189
    %v664 = vpop.f32.mrf.mxu0
    %v665 = vadd.f32 %v452, %v664
    %v666 = vpop.f32.mrf.mxu0
    %v667 = vadd.f32 %v456, %v666
    %668 = vdwg.mxu0
    %669 = vmatprep.subr.mxu0 %v292
    %670 = vmatpush1.msra.mxu0 %v291
    %671 = vmatprep.subr.mxu0 %v290
    %672 = vmatpush1.msra.mxu0 %v289
    %673 = vmatprep.subr.mxu0 %v288
    %674 = vmatpush1.msra.mxu0 %v287
    %675 = vmatprep.subr.mxu0 %v286
    %676 = vmatpush1.msra.mxu0 %v285
    %677 = vmatprep.subr.mxu0 %v284
    %678 = vmatpush1.msra.mxu0 %v283
    %679 = vmatprep.subr.mxu0 %v282
    %680 = vmatpush1.msra.mxu0 %v281
    %681 = vmatprep.subr.mxu0 %v280
    %682 = vmatpush1.msra.mxu0 %v279
    %683 = vmatprep.subr.mxu0 %v278
    %684 = vmatpush1.msra.mxu0 %v277
    %685 = vmatprep.subr.mxu0 %v276
    %686 = vmatpush1.msra.mxu0 %v275
    %687 = vmatprep.subr.mxu0 %v274
    %688 = vmatpush1.msra.mxu0 %v273
    %689 = vmatprep.subr.mxu0 %v272
    %690 = vmatpush1.msra.mxu0 %v271
    %691 = vmatprep.subr.mxu0 %v270
    %692 = vmatpush1.msra.mxu0 %v269
    %693 = vmatprep.subr.mxu0 %v268
    %694 = vmatpush1.msra.mxu0 %v267
    %695 = vmatprep.subr.mxu0 %v266
    %696 = vmatpush1.msra.mxu0 %v265
    %697 = vmatprep.subr.mxu0 %v264
    %698 = vmatpush1.msra.mxu0 %v263
    %699 = vmatprep.subr.mxu0 %v262
    %700 = vmatpush1.msra.mxu0 %v261
    %701 = vmatprep.subr.mxu0 %v324
    %702 = vmatpush2.msra.mxu0 %v323
    %703 = vmatprep.subr.mxu0 %v322
    %704 = vmatpush2.msra.mxu0 %v321
    %705 = vmatprep.subr.mxu0 %v320
    %706 = vmatpush2.msra.mxu0 %v319
    %707 = vmatprep.subr.mxu0 %v318
    %708 = vmatpush2.msra.mxu0 %v317
    %709 = vmatprep.subr.mxu0 %v316
    %710 = vmatpush2.msra.mxu0 %v315
    %711 = vmatprep.subr.mxu0 %v314
    %712 = vmatpush2.msra.mxu0 %v313
    %713 = vmatprep.subr.mxu0 %v312
    %714 = vmatpush2.msra.mxu0 %v311
    %715 = vmatprep.subr.mxu0 %v310
    %716 = vmatpush2.msra.mxu0 %v309
    %717 = vmatprep.subr.mxu0 %v308
    %718 = vmatpush2.msra.mxu0 %v307
    %719 = vmatprep.subr.mxu0 %v306
    %720 = vmatpush2.msra.mxu0 %v305
    %721 = vmatprep.subr.mxu0 %v304
    %722 = vmatpush2.msra.mxu0 %v303
    %723 = vmatprep.subr.mxu0 %v302
    %724 = vmatpush2.msra.mxu0 %v301
    %725 = vmatprep.subr.mxu0 %v300
    %726 = vmatpush2.msra.mxu0 %v299
    %727 = vmatprep.subr.mxu0 %v298
    %728 = vmatpush2.msra.mxu0 %v297
    %729 = vmatprep.subr.mxu0 %v296
    %730 = vmatpush2.msra.mxu0 %v295
    %731 = vmatprep.subr.mxu0 %v294
    %732 = vmatpush2.msra.mxu0 %v293
    %733 = vmatprep.mubr.f32.mxu0 %v72
    %734 = vmatmul.mubr.f32.gmra.mxu0 %v71
    %v735 = vpop.f32.mrf.mxu0
    %v736 = vadd.f32 %v575, %v735
    %v737 = vpop.f32.mrf.mxu0
    %v738 = vadd.f32 %v577, %v737
    %739 = vmatprep.mubr.f32.mxu0 %v80
    %740 = vmatmul.mubr.f32.gmra.mxu0 %v79
    %v741 = vpop.f32.mrf.mxu0
    %v742 = vadd.f32 %v581, %v741
    %v743 = vpop.f32.mrf.mxu0
    %v744 = vadd.f32 %v583, %v743
    %745 = vmatprep.mubr.f32.mxu0 %v88
    %746 = vmatmul.mubr.f32.gmra.mxu0 %v87
    %v747 = vpop.f32.mrf.mxu0
    %v748 = vadd.f32 %v587, %v747
    %v749 = vpop.f32.mrf.mxu0
    %v750 = vadd.f32 %v589, %v749
    %751 = vmatprep.mubr.f32.mxu0 %v96
    %752 = vmatmul.mubr.f32.gmra.mxu0 %v95
    %v753 = vpop.f32.mrf.mxu0
    %v754 = vadd.f32 %v593, %v753
    %v755 = vpop.f32.mrf.mxu0
    %v756 = vadd.f32 %v595, %v755
    %757 = vmatprep.mubr.f32.mxu0 %v104
    %758 = vmatmul.mubr.f32.gmra.mxu0 %v103
    %v759 = vpop.f32.mrf.mxu0
    %v760 = vadd.f32 %v599, %v759
    %v761 = vpop.f32.mrf.mxu0
    %v762 = vadd.f32 %v601, %v761
    %763 = vmatprep.mubr.f32.mxu0 %v112
    %764 = vmatmul.mubr.f32.gmra.mxu0 %v111
    %v765 = vpop.f32.mrf.mxu0
    %v766 = vadd.f32 %v605, %v765
    %v767 = vpop.f32.mrf.mxu0
    %v768 = vadd.f32 %v607, %v767
    %769 = vmatprep.mubr.f32.mxu0 %v120
    %770 = vmatmul.mubr.f32.gmra.mxu0 %v119
    %v771 = vpop.f32.mrf.mxu0
    %v772 = vadd.f32 %v611, %v771
    %v773 = vpop.f32.mrf.mxu0
    %v774 = vadd.f32 %v613, %v773
    %775 = vmatprep.mubr.f32.mxu0 %v128
    %776 = vmatmul.mubr.f32.gmra.mxu0 %v127
    %v777 = vpop.f32.mrf.mxu0
    %v778 = vadd.f32 %v617, %v777
    %v779 = vpop.f32.mrf.mxu0
    %v780 = vadd.f32 %v619, %v779
    %781 = vmatprep.mubr.f32.mxu0 %v136
    %782 = vmatmul.mubr.f32.gmra.mxu0 %v135
    %v783 = vpop.f32.mrf.mxu0
    %v784 = vadd.f32 %v623, %v783
    %v785 = vpop.f32.mrf.mxu0
    %v786 = vadd.f32 %v625, %v785
    %787 = vmatprep.mubr.f32.mxu0 %v144
    %788 = vmatmul.mubr.f32.gmra.mxu0 %v143
    %v789 = vpop.f32.mrf.mxu0
    %v790 = vadd.f32 %v629, %v789
    %v791 = vpop.f32.mrf.mxu0
    %v792 = vadd.f32 %v631, %v791
    %793 = vmatprep.mubr.f32.mxu0 %v152
    %794 = vmatmul.mubr.f32.gmra.mxu0 %v151
    %v795 = vpop.f32.mrf.mxu0
    %v796 = vadd.f32 %v635, %v795
    %v797 = vpop.f32.mrf.mxu0
    %v798 = vadd.f32 %v637, %v797
    %799 = vmatprep.mubr.f32.mxu0 %v160
    %800 = vmatmul.mubr.f32.gmra.mxu0 %v159
    %v801 = vpop.f32.mrf.mxu0
    %v802 = vadd.f32 %v641, %v801
    %v803 = vpop.f32.mrf.mxu0
    %v804 = vadd.f32 %v643, %v803
    %805 = vmatprep.mubr.f32.mxu0 %v168
    %806 = vmatmul.mubr.f32.gmra.mxu0 %v167
    %v807 = vpop.f32.mrf.mxu0
    %v808 = vadd.f32 %v647, %v807
    %v809 = vpop.f32.mrf.mxu0
    %v810 = vadd.f32 %v649, %v809
    %811 = vmatprep.mubr.f32.mxu0 %v176
    %812 = vmatmul.mubr.f32.gmra.mxu0 %v175
    %v813 = vpop.f32.mrf.mxu0
    %v814 = vadd.f32 %v653, %v813
    %v815 = vpop.f32.mrf.mxu0
    %v816 = vadd.f32 %v655, %v815
    %817 = vmatprep.mubr.f32.mxu0 %v184
    %818 = vmatmul.mubr.f32.gmra.mxu0 %v183
    %v819 = vpop.f32.mrf.mxu0
    %v820 = vadd.f32 %v659, %v819
    %v821 = vpop.f32.mrf.mxu0
    %v822 = vadd.f32 %v661, %v821
    %823 = vmatprep.mubr.f32.mxu0 %v192
    %824 = vmatmul.mubr.f32.gmra.mxu0 %v191
    %v825 = vpop.f32.mrf.mxu0
    %v826 = vadd.f32 %v665, %v825
    %v827 = vpop.f32.mrf.mxu0
    %v828 = vadd.f32 %v667, %v827
    %829 = vdwg.mxu0
    %830 = vmatprep.subr.mxu0 %v356
    %831 = vmatpush1.msra.mxu0 %v355
    %832 = vmatprep.subr.mxu0 %v354
    %833 = vmatpush1.msra.mxu0 %v353
    %834 = vmatprep.subr.mxu0 %v352
    %835 = vmatpush1.msra.mxu0 %v351
    %836 = vmatprep.subr.mxu0 %v350
    %837 = vmatpush1.msra.mxu0 %v349
    %838 = vmatprep.subr.mxu0 %v348
    %839 = vmatpush1.msra.mxu0 %v347
    %840 = vmatprep.subr.mxu0 %v346
    %841 = vmatpush1.msra.mxu0 %v345
    %842 = vmatprep.subr.mxu0 %v344
    %843 = vmatpush1.msra.mxu0 %v343
    %844 = vmatprep.subr.mxu0 %v342
    %845 = vmatpush1.msra.mxu0 %v341
    %846 = vmatprep.subr.mxu0 %v340
    %847 = vmatpush1.msra.mxu0 %v339
    %848 = vmatprep.subr.mxu0 %v338
    %849 = vmatpush1.msra.mxu0 %v337
    %850 = vmatprep.subr.mxu0 %v336
    %851 = vmatpush1.msra.mxu0 %v335
    %852 = vmatprep.subr.mxu0 %v334
    %853 = vmatpush1.msra.mxu0 %v333
    %854 = vmatprep.subr.mxu0 %v332
    %855 = vmatpush1.msra.mxu0 %v331
    %856 = vmatprep.subr.mxu0 %v330
    %857 = vmatpush1.msra.mxu0 %v329
    %858 = vmatprep.subr.mxu0 %v328
    %859 = vmatpush1.msra.mxu0 %v327
    %860 = vmatprep.subr.mxu0 %v326
    %861 = vmatpush1.msra.mxu0 %v325
    %862 = vmatprep.subr.mxu0 %v388
    %863 = vmatpush2.msra.mxu0 %v387
    %864 = vmatprep.subr.mxu0 %v386
    %865 = vmatpush2.msra.mxu0 %v385
    %866 = vmatprep.subr.mxu0 %v384
    %867 = vmatpush2.msra.mxu0 %v383
    %868 = vmatprep.subr.mxu0 %v382
    %869 = vmatpush2.msra.mxu0 %v381
    %870 = vmatprep.subr.mxu0 %v380
    %871 = vmatpush2.msra.mxu0 %v379
    %872 = vmatprep.subr.mxu0 %v378
    %873 = vmatpush2.msra.mxu0 %v377
    %874 = vmatprep.subr.mxu0 %v376
    %875 = vmatpush2.msra.mxu0 %v375
    %876 = vmatprep.subr.mxu0 %v374
    %877 = vmatpush2.msra.mxu0 %v373
    %878 = vmatprep.subr.mxu0 %v372
    %879 = vmatpush2.msra.mxu0 %v371
    %880 = vmatprep.subr.mxu0 %v370
    %881 = vmatpush2.msra.mxu0 %v369
    %882 = vmatprep.subr.mxu0 %v368
    %883 = vmatpush2.msra.mxu0 %v367
    %884 = vmatprep.subr.mxu0 %v366
    %885 = vmatpush2.msra.mxu0 %v365
    %886 = vmatprep.subr.mxu0 %v364
    %887 = vmatpush2.msra.mxu0 %v363
    %888 = vmatprep.subr.mxu0 %v362
    %889 = vmatpush2.msra.mxu0 %v361
    %890 = vmatprep.subr.mxu0 %v360
    %891 = vmatpush2.msra.mxu0 %v359
    %892 = vmatprep.subr.mxu0 %v358
    %893 = vmatpush2.msra.mxu0 %v357
    %894 = vmatprep.mubr.f32.mxu0 %v74
    %895 = vmatmul.mubr.f32.gmra.mxu0 %v73
    %v896 = vpop.f32.mrf.mxu0
    %v897 = vadd.f32 %v736, %v896
    %v898 = vpop.f32.mrf.mxu0
    %v899 = vadd.f32 %v738, %v898
    %900 = vmatprep.mubr.f32.mxu0 %v82
    %901 = vmatmul.mubr.f32.gmra.mxu0 %v81
    %v902 = vpop.f32.mrf.mxu0
    %v903 = vadd.f32 %v742, %v902
    %v904 = vpop.f32.mrf.mxu0
    %v905 = vadd.f32 %v744, %v904
    %906 = vmatprep.mubr.f32.mxu0 %v90
    %907 = vmatmul.mubr.f32.gmra.mxu0 %v89
    %v908 = vpop.f32.mrf.mxu0
    %v909 = vadd.f32 %v748, %v908
    %v910 = vpop.f32.mrf.mxu0
    %v911 = vadd.f32 %v750, %v910
    %912 = vmatprep.mubr.f32.mxu0 %v98
    %913 = vmatmul.mubr.f32.gmra.mxu0 %v97
    %v914 = vpop.f32.mrf.mxu0
    %v915 = vadd.f32 %v754, %v914
    %v916 = vpop.f32.mrf.mxu0
    %v917 = vadd.f32 %v756, %v916
    %918 = vmatprep.mubr.f32.mxu0 %v106
    %919 = vmatmul.mubr.f32.gmra.mxu0 %v105
    %v920 = vpop.f32.mrf.mxu0
    %v921 = vadd.f32 %v760, %v920
    %v922 = vpop.f32.mrf.mxu0
    %v923 = vadd.f32 %v762, %v922
    %924 = vmatprep.mubr.f32.mxu0 %v114
    %925 = vmatmul.mubr.f32.gmra.mxu0 %v113
    %v926 = vpop.f32.mrf.mxu0
    %v927 = vadd.f32 %v766, %v926
    %v928 = vpop.f32.mrf.mxu0
    %v929 = vadd.f32 %v768, %v928
    %930 = vmatprep.mubr.f32.mxu0 %v122
    %931 = vmatmul.mubr.f32.gmra.mxu0 %v121
    %v932 = vpop.f32.mrf.mxu0
    %v933 = vadd.f32 %v772, %v932
    %v934 = vpop.f32.mrf.mxu0
    %v935 = vadd.f32 %v774, %v934
    %936 = vmatprep.mubr.f32.mxu0 %v130
    %937 = vmatmul.mubr.f32.gmra.mxu0 %v129
    %v938 = vpop.f32.mrf.mxu0
    %v939 = vadd.f32 %v778, %v938
    %v940 = vpop.f32.mrf.mxu0
    %v941 = vadd.f32 %v780, %v940
    %942 = vmatprep.mubr.f32.mxu0 %v138
    %943 = vmatmul.mubr.f32.gmra.mxu0 %v137
    %v944 = vpop.f32.mrf.mxu0
    %v945 = vadd.f32 %v784, %v944
    %v946 = vpop.f32.mrf.mxu0
    %v947 = vadd.f32 %v786, %v946
    %948 = vmatprep.mubr.f32.mxu0 %v146
    %949 = vmatmul.mubr.f32.gmra.mxu0 %v145
    %v950 = vpop.f32.mrf.mxu0
    %v951 = vadd.f32 %v790, %v950
    %v952 = vpop.f32.mrf.mxu0
    %v953 = vadd.f32 %v792, %v952
    %954 = vmatprep.mubr.f32.mxu0 %v154
    %955 = vmatmul.mubr.f32.gmra.mxu0 %v153
    %v956 = vpop.f32.mrf.mxu0
    %v957 = vadd.f32 %v796, %v956
    %v958 = vpop.f32.mrf.mxu0
    %v959 = vadd.f32 %v798, %v958
    %960 = vmatprep.mubr.f32.mxu0 %v162
    %961 = vmatmul.mubr.f32.gmra.mxu0 %v161
    %v962 = vpop.f32.mrf.mxu0
    %v963 = vadd.f32 %v802, %v962
    %v964 = vpop.f32.mrf.mxu0
    %v965 = vadd.f32 %v804, %v964
    %966 = vmatprep.mubr.f32.mxu0 %v170
    %967 = vmatmul.mubr.f32.gmra.mxu0 %v169
    %v968 = vpop.f32.mrf.mxu0
    %v969 = vadd.f32 %v808, %v968
    %v970 = vpop.f32.mrf.mxu0
    %v971 = vadd.f32 %v810, %v970
    %972 = vmatprep.mubr.f32.mxu0 %v178
    %973 = vmatmul.mubr.f32.gmra.mxu0 %v177
    %v974 = vpop.f32.mrf.mxu0
    %v975 = vadd.f32 %v814, %v974
    %v976 = vpop.f32.mrf.mxu0
    %v977 = vadd.f32 %v816, %v976
    %978 = vmatprep.mubr.f32.mxu0 %v186
    %979 = vmatmul.mubr.f32.gmra.mxu0 %v185
    %v980 = vpop.f32.mrf.mxu0
    %v981 = vadd.f32 %v820, %v980
    %v982 = vpop.f32.mrf.mxu0
    %v983 = vadd.f32 %v822, %v982
    %984 = vmatprep.mubr.f32.mxu0 %v194
    %985 = vmatmul.mubr.f32.gmra.mxu0 %v193
    %v986 = vpop.f32.mrf.mxu0
    %v987 = vadd.f32 %v826, %v986
    %v988 = vpop.f32.mrf.mxu0
    %v989 = vadd.f32 %v828, %v988
    %990 = vdwg.mxu0
    %991 = vmatprep.subr.mxu0 %v420
    %992 = vmatpush1.msra.mxu0 %v419
    %993 = vmatprep.subr.mxu0 %v418
    %994 = vmatpush1.msra.mxu0 %v417
    %995 = vmatprep.subr.mxu0 %v416
    %996 = vmatpush1.msra.mxu0 %v415
    %997 = vmatprep.subr.mxu0 %v414
    %998 = vmatpush1.msra.mxu0 %v413
    %999 = vmatprep.subr.mxu0 %v412
    %1000 = vmatpush1.msra.mxu0 %v411
    %1001 = vmatprep.subr.mxu0 %v410
    %1002 = vmatpush1.msra.mxu0 %v409
    %1003 = vmatprep.subr.mxu0 %v408
    %1004 = vmatpush1.msra.mxu0 %v407
    %1005 = vmatprep.subr.mxu0 %v406
    %1006 = vmatpush1.msra.mxu0 %v405
    %1007 = vmatprep.subr.mxu0 %v404
    %1008 = vmatpush1.msra.mxu0 %v403
    %1009 = vmatprep.subr.mxu0 %v402
    %1010 = vmatpush1.msra.mxu0 %v401
    %1011 = vmatprep.subr.mxu0 %v400
    %1012 = vmatpush1.msra.mxu0 %v399
    %1013 = vmatprep.subr.mxu0 %v398
    %1014 = vmatpush1.msra.mxu0 %v397
    %1015 = vmatprep.subr.mxu0 %v396
    %1016 = vmatpush1.msra.mxu0 %v395
    %1017 = vmatprep.subr.mxu0 %v394
    %1018 = vmatpush1.msra.mxu0 %v393
    %1019 = vmatprep.subr.mxu0 %v392
    %1020 = vmatpush1.msra.mxu0 %v391
    %1021 = vmatprep.subr.mxu0 %v390
    %1022 = vmatpush1.msra.mxu0 %v389
    %1023 = vmatprep.subr.mxu0 0.0
    %1024 = vmatpush2.msra.mxu0 0.0
    %1025 = vmatprep.subr.mxu0 0.0
    %1026 = vmatpush2.msra.mxu0 0.0
    %1027 = vmatprep.subr.mxu0 0.0
    %1028 = vmatpush2.msra.mxu0 0.0
    %1029 = vmatprep.subr.mxu0 %v446
    %1030 = vmatpush2.msra.mxu0 %v445
    %1031 = vmatprep.subr.mxu0 %v444
    %1032 = vmatpush2.msra.mxu0 %v443
    %1033 = vmatprep.subr.mxu0 %v442
    %1034 = vmatpush2.msra.mxu0 %v441
    %1035 = vmatprep.subr.mxu0 %v440
    %1036 = vmatpush2.msra.mxu0 %v439
    %1037 = vmatprep.subr.mxu0 %v438
    %1038 = vmatpush2.msra.mxu0 %v437
    %1039 = vmatprep.subr.mxu0 %v436
    %1040 = vmatpush2.msra.mxu0 %v435
    %1041 = vmatprep.subr.mxu0 %v434
    %1042 = vmatpush2.msra.mxu0 %v433
    %1043 = vmatprep.subr.mxu0 %v432
    %1044 = vmatpush2.msra.mxu0 %v431
    %1045 = vmatprep.subr.mxu0 %v430
    %1046 = vmatpush2.msra.mxu0 %v429
    %1047 = vmatprep.subr.mxu0 %v428
    %1048 = vmatpush2.msra.mxu0 %v427
    %1049 = vmatprep.subr.mxu0 %v426
    %1050 = vmatpush2.msra.mxu0 %v425
    %1051 = vmatprep.subr.mxu0 %v424
    %1052 = vmatpush2.msra.mxu0 %v423
    %1053 = vmatprep.subr.mxu0 %v422
    %1054 = vmatpush2.msra.mxu0 %v421
    %1055 = vmatprep.mubr.f32.mxu0 %v461
    %1056 = vmatmul.mubr.f32.gmra.mxu0 %v75
    %v1057 = vpop.f32.mrf.mxu0
    %v1058 = vadd.f32 %v897, %v1057
    %v1059 = vpop.f32.mrf.mxu0
    %v1060 = vadd.f32 %v899, %v1059
    %1061 = vmatprep.mubr.f32.mxu0 %v464
    %1062 = vmatmul.mubr.f32.gmra.mxu0 %v83
    %v1063 = vpop.f32.mrf.mxu0
    %v1064 = vadd.f32 %v903, %v1063
    %v1065 = vpop.f32.mrf.mxu0
    %v1066 = vadd.f32 %v905, %v1065
    %1067 = vmatprep.mubr.f32.mxu0 %v467
    %1068 = vmatmul.mubr.f32.gmra.mxu0 %v91
    %v1069 = vpop.f32.mrf.mxu0
    %v1070 = vadd.f32 %v909, %v1069
    %v1071 = vpop.f32.mrf.mxu0
    %v1072 = vadd.f32 %v911, %v1071
    %1073 = vmatprep.mubr.f32.mxu0 %v470
    %1074 = vmatmul.mubr.f32.gmra.mxu0 %v99
    %v1075 = vpop.f32.mrf.mxu0
    %v1076 = vadd.f32 %v915, %v1075
    %v1077 = vpop.f32.mrf.mxu0
    %v1078 = vadd.f32 %v917, %v1077
    %1079 = vmatprep.mubr.f32.mxu0 %v473
    %1080 = vmatmul.mubr.f32.gmra.mxu0 %v107
    %v1081 = vpop.f32.mrf.mxu0
    %v1082 = vadd.f32 %v921, %v1081
    %v1083 = vpop.f32.mrf.mxu0
    %v1084 = vadd.f32 %v923, %v1083
    %1085 = vmatprep.mubr.f32.mxu0 %v476
    %1086 = vmatmul.mubr.f32.gmra.mxu0 %v115
    %v1087 = vpop.f32.mrf.mxu0
    %v1088 = vadd.f32 %v927, %v1087
    %v1089 = vpop.f32.mrf.mxu0
    %v1090 = vadd.f32 %v929, %v1089
    %1091 = vmatprep.mubr.f32.mxu0 %v479
    %1092 = vmatmul.mubr.f32.gmra.mxu0 %v123
    %v1093 = vpop.f32.mrf.mxu0
    %v1094 = vadd.f32 %v933, %v1093
    %v1095 = vpop.f32.mrf.mxu0
    %v1096 = vadd.f32 %v935, %v1095
    %1097 = vmatprep.mubr.f32.mxu0 %v482
    %1098 = vmatmul.mubr.f32.gmra.mxu0 %v131
    %v1099 = vpop.f32.mrf.mxu0
    %v1100 = vadd.f32 %v939, %v1099
    %v1101 = vpop.f32.mrf.mxu0
    %v1102 = vadd.f32 %v941, %v1101
    %1103 = vmatprep.mubr.f32.mxu0 %v485
    %1104 = vmatmul.mubr.f32.gmra.mxu0 %v139
    %v1105 = vpop.f32.mrf.mxu0
    %v1106 = vadd.f32 %v945, %v1105
    %v1107 = vpop.f32.mrf.mxu0
    %v1108 = vadd.f32 %v947, %v1107
    %1109 = vmatprep.mubr.f32.mxu0 %v488
    %1110 = vmatmul.mubr.f32.gmra.mxu0 %v147
    %v1111 = vpop.f32.mrf.mxu0
    %v1112 = vadd.f32 %v951, %v1111
    %v1113 = vpop.f32.mrf.mxu0
    %v1114 = vadd.f32 %v953, %v1113
    %1115 = vmatprep.mubr.f32.mxu0 %v491
    %1116 = vmatmul.mubr.f32.gmra.mxu0 %v155
    %v1117 = vpop.f32.mrf.mxu0
    %v1118 = vadd.f32 %v957, %v1117
    %v1119 = vpop.f32.mrf.mxu0
    %v1120 = vadd.f32 %v959, %v1119
    %1121 = vmatprep.mubr.f32.mxu0 %v494
    %1122 = vmatmul.mubr.f32.gmra.mxu0 %v163
    %v1123 = vpop.f32.mrf.mxu0
    %v1124 = vadd.f32 %v963, %v1123
    %v1125 = vpop.f32.mrf.mxu0
    %v1126 = vadd.f32 %v965, %v1125
    %1127 = vmatprep.mubr.f32.mxu0 %v497
    %1128 = vmatmul.mubr.f32.gmra.mxu0 %v171
    %v1129 = vpop.f32.mrf.mxu0
    %v1130 = vadd.f32 %v969, %v1129
    %v1131 = vpop.f32.mrf.mxu0
    %v1132 = vadd.f32 %v971, %v1131
    %1133 = vmatprep.mubr.f32.mxu0 %v500
    %1134 = vmatmul.mubr.f32.gmra.mxu0 %v179
    %v1135 = vpop.f32.mrf.mxu0
    %v1136 = vadd.f32 %v975, %v1135
    %v1137 = vpop.f32.mrf.mxu0
    %v1138 = vadd.f32 %v977, %v1137
    %1139 = vmatprep.mubr.f32.mxu0 %v503
    %1140 = vmatmul.mubr.f32.gmra.mxu0 %v187
    %v1141 = vpop.f32.mrf.mxu0
    %v1142 = vadd.f32 %v981, %v1141
    %v1143 = vpop.f32.mrf.mxu0
    %v1144 = vadd.f32 %v983, %v1143
    %1145 = vmatprep.mubr.f32.mxu0 %v506
    %1146 = vmatmul.mubr.f32.gmra.mxu0 %v195
    %v1147 = vpop.f32.mrf.mxu0
    %v1148 = vadd.f32 %v987, %v1147
    %v1149 = vpop.f32.mrf.mxu0
    %v1150 = vadd.f32 %v989, %v1149
    %1151 = vdwg.mxu0
    %v1152 = vadd.f32 %v1058, %v1064
    %v1153 = vadd.f32 %v1152, %v1070
    %v1154 = vadd.f32 %v1153, %v1076
    %v1155 = vadd.f32 %v1154, %v1082
    %v1156 = vadd.f32 %v1155, %v1088
    %v1157 = vadd.f32 %v1156, %v1094
    %v1158 = vadd.f32 %v1157, %v1100
    %v1159 = vadd.f32 %v1158, %v1106
    %v1160 = vadd.f32 %v1159, %v1112
    %v1161 = vadd.f32 %v1160, %v1118
    %v1162 = vadd.f32 %v1161, %v1124
    %v1163 = vadd.f32 %v1162, %v1130
    %v1164 = vadd.f32 %v1163, %v1136
    %v1165 = vadd.f32 %v1164, %v1142
    %v1166 = vadd.f32 %v1165, %v1148
    %v1167 = vrot.slane %v1166, 4
    %v1168 = vadd.f32 %v1166, %v1167
    %v1169 = vrot.slane %v1168, 2
    %v1170 = vadd.f32 %v1168, %v1169
    %v1171 = vrot.slane %v1170, 1
    %v1172 = vadd.f32 %v1170, %v1171
    %v1173 = vadd.f32 %v1060, %v1066
    %v1174 = vadd.f32 %v1173, %v1072
    %v1175 = vadd.f32 %v1174, %v1078
    %v1176 = vadd.f32 %v1175, %v1084
    %v1177 = vadd.f32 %v1176, %v1090
    %v1178 = vadd.f32 %v1177, %v1096
    %v1179 = vadd.f32 %v1178, %v1102
    %v1180 = vadd.f32 %v1179, %v1108
    %v1181 = vadd.f32 %v1180, %v1114
    %v1182 = vadd.f32 %v1181, %v1120
    %v1183 = vadd.f32 %v1182, %v1126
    %v1184 = vadd.f32 %v1183, %v1132
    %v1185 = vadd.f32 %v1184, %v1138
    %v1186 = vadd.f32 %v1185, %v1144
    %v1187 = vadd.f32 %v1186, %v1150
    %v1188 = vrot.slane %v1187, 4
    %v1189 = vadd.f32 %v1187, %v1188
    %v1190 = vrot.slane %v1189, 2
    %v1191 = vadd.f32 %v1189, %v1190
    %v1192 = vrot.slane %v1191, 1
    %v1193 = vadd.f32 %v1191, %v1192
    %v1194 = vrcp.pop 128.0
    %v1195 = vmul.f32 %v1172, %v1194
    %v1196 = vmul.f32 %v1193, %v1194
    %v1197 = vsub.f32 %v1058, %v1195
    %v1198 = vsub.f32 %v1060, %v1196
    %v1199 = vsub.f32 %v1064, %v1195
    %v1200 = vsub.f32 %v1066, %v1196
    %v1201 = vsub.f32 %v1070, %v1195
    %v1202 = vsub.f32 %v1072, %v1196
    %v1203 = vsub.f32 %v1076, %v1195
    %v1204 = vsub.f32 %v1078, %v1196
    %v1205 = vsub.f32 %v1082, %v1195
    %v1206 = vsub.f32 %v1084, %v1196
    %v1207 = vsub.f32 %v1088, %v1195
    %v1208 = vsub.f32 %v1090, %v1196
    %v1209 = vsub.f32 %v1094, %v1195
    %v1210 = vsub.f32 %v1096, %v1196
    %v1211 = vsub.f32 %v1100, %v1195
    %v1212 = vsub.f32 %v1102, %v1196
    %v1213 = vsub.f32 %v1106, %v1195
    %v1214 = vsub.f32 %v1108, %v1196
    %v1215 = vsub.f32 %v1112, %v1195
    %v1216 = vsub.f32 %v1114, %v1196
    %v1217 = vsub.f32 %v1118, %v1195
    %v1218 = vsub.f32 %v1120, %v1196
    %v1219 = vsub.f32 %v1124, %v1195
    %v1220 = vsub.f32 %v1126, %v1196
    %v1221 = vsub.f32 %v1130, %v1195
    %v1222 = vsub.f32 %v1132, %v1196
    %v1223 = vsub.f32 %v1136, %v1195
    %v1224 = vsub.f32 %v1138, %v1196
    %v1225 = vsub.f32 %v1142, %v1195
    %v1226 = vsub.f32 %v1144, %v1196
    %v1227 = vsub.f32 %v1148, %v1195
    %v1228 = vsub.f32 %v1150, %v1196
    %v1229 = vmul.f32 %v1197, %v1197
    %v1230 = vmul.f32 %v1198, %v1198
    %v1231 = vmul.f32 %v1199, %v1199
    %v1232 = vmul.f32 %v1200, %v1200
    %v1233 = vmul.f32 %v1201, %v1201
    %v1234 = vmul.f32 %v1202, %v1202
    %v1235 = vmul.f32 %v1203, %v1203
    %v1236 = vmul.f32 %v1204, %v1204
    %v1237 = vmul.f32 %v1205, %v1205
    %v1238 = vmul.f32 %v1206, %v1206
    %v1239 = vmul.f32 %v1207, %v1207
    %v1240 = vmul.f32 %v1208, %v1208
    %v1241 = vmul.f32 %v1209, %v1209
    %v1242 = vmul.f32 %v1210, %v1210
    %v1243 = vmul.f32 %v1211, %v1211
    %v1244 = vmul.f32 %v1212, %v1212
    %v1245 = vmul.f32 %v1213, %v1213
    %v1246 = vmul.f32 %v1214, %v1214
    %v1247 = vmul.f32 %v1215, %v1215
    %v1248 = vmul.f32 %v1216, %v1216
    %v1249 = vmul.f32 %v1217, %v1217
    %v1250 = vmul.f32 %v1218, %v1218
    %v1251 = vmul.f32 %v1219, %v1219
    %v1252 = vmul.f32 %v1220, %v1220
    %v1253 = vmul.f32 %v1221, %v1221
    %v1254 = vmul.f32 %v1222, %v1222
    %v1255 = vmul.f32 %v1223, %v1223
    %v1256 = vmul.f32 %v1224, %v1224
    %v1257 = vmul.f32 %v1225, %v1225
    %v1258 = vmul.f32 %v1226, %v1226
    %v1259 = vmul.f32 %v1227, %v1227
    %v1260 = vmul.f32 %v1228, %v1228
    %v1261 = vadd.f32 %v1229, %v1231
    %v1262 = vadd.f32 %v1261, %v1233
    %v1263 = vadd.f32 %v1262, %v1235
    %v1264 = vadd.f32 %v1263, %v1237
    %v1265 = vadd.f32 %v1264, %v1239
    %v1266 = vadd.f32 %v1265, %v1241
    %v1267 = vadd.f32 %v1266, %v1243
    %v1268 = vadd.f32 %v1267, %v1245
    %v1269 = vadd.f32 %v1268, %v1247
    %v1270 = vadd.f32 %v1269, %v1249
    %v1271 = vadd.f32 %v1270, %v1251
    %v1272 = vadd.f32 %v1271, %v1253
    %v1273 = vadd.f32 %v1272, %v1255
    %v1274 = vadd.f32 %v1273, %v1257
    %v1275 = vadd.f32 %v1274, %v1259
    %v1276 = vrot.slane %v1275, 4
    %v1277 = vadd.f32 %v1275, %v1276
    %v1278 = vrot.slane %v1277, 2
    %v1279 = vadd.f32 %v1277, %v1278
    %v1280 = vrot.slane %v1279, 1
    %v1281 = vadd.f32 %v1279, %v1280
    %v1282 = vadd.f32 %v1230, %v1232
    %v1283 = vadd.f32 %v1282, %v1234
    %v1284 = vadd.f32 %v1283, %v1236
    %v1285 = vadd.f32 %v1284, %v1238
    %v1286 = vadd.f32 %v1285, %v1240
    %v1287 = vadd.f32 %v1286, %v1242
    %v1288 = vadd.f32 %v1287, %v1244
    %v1289 = vadd.f32 %v1288, %v1246
    %v1290 = vadd.f32 %v1289, %v1248
    %v1291 = vadd.f32 %v1290, %v1250
    %v1292 = vadd.f32 %v1291, %v1252
    %v1293 = vadd.f32 %v1292, %v1254
    %v1294 = vadd.f32 %v1293, %v1256
    %v1295 = vadd.f32 %v1294, %v1258
    %v1296 = vadd.f32 %v1295, %v1260
    %v1297 = vrot.slane %v1296, 4
    %v1298 = vadd.f32 %v1296, %v1297
    %v1299 = vrot.slane %v1298, 2
    %v1300 = vadd.f32 %v1298, %v1299
    %v1301 = vrot.slane %v1300, 1
    %v1302 = vadd.f32 %v1300, %v1301
    %v1303 = vmul.f32 %v1281, %v1194
    %v1304 = vmul.f32 %v1302, %v1194
    %v1305 = vld [vmem:[%s3] sm:$0x3]
    %v1306 = vadd.f32 %v1303, 1e-05
    %v1307 = vadd.f32 %v1304, 1e-05
    %v1308 = vrsqrt.pop %v1306
    %v1309 = vrsqrt.pop %v1307
    %v1312 = vcombine.low %v1308, %v1309
    %v1314 = vunpack.c.l.s4 1966171168
    %v1315 = vunpack.c.0.s8 %v1314
    %v1316 = vlaneseq
    %v1317 = vshrl.u32 %v1316, 7
    %v1318 = vsub.s32 %v1315, %v1317
    %v1319 = vrot.slane %v1312, %v1318
    %v1321 = vunpack.c.l.s4 1966171168
    %v1322 = vunpack.c.0.s8 %v1321
    %v1323 = vlaneseq
    %v1324 = vshrl.u32 %v1323, 7
    %v1325 = vsub.s32 %v1322, %v1324
    %v1326 = vrot.slane %v1319, %v1325
    %v1328 = vmul.f32 %v1305, %v1326
    %v1330 = vlaneseq
    %v1331 = vshrl.u32 %v1330, 7
    %v1332 = vsub.s32 0, %v1331
    %v1333 = vrot.slane %v1328, %v1332
    %v1334 = vlaneseq
    %v1335 = vshrl.u32 %v1334, 7
    %v1336 = vsub.s32 1, %v1335
    %v1337 = vrot.slane %v1328, %v1336
    %v1340 = vmul.f32 %v1197, %v1333
    %v1341 = vmul.f32 %v1198, %v1337
    %v1342 = vmul.f32 %v1199, %v1333
    %v1343 = vmul.f32 %v1200, %v1337
    %v1344 = vmul.f32 %v1201, %v1333
    %v1345 = vmul.f32 %v1202, %v1337
    %v1346 = vmul.f32 %v1203, %v1333
    %v1347 = vmul.f32 %v1204, %v1337
    %v1348 = vmul.f32 %v1205, %v1333
    %v1349 = vmul.f32 %v1206, %v1337
    %v1350 = vmul.f32 %v1207, %v1333
    %v1351 = vmul.f32 %v1208, %v1337
    %v1352 = vmul.f32 %v1209, %v1333
    %v1353 = vmul.f32 %v1210, %v1337
    %v1354 = vmul.f32 %v1211, %v1333
    %v1355 = vmul.f32 %v1212, %v1337
    %v1356 = vmul.f32 %v1213, %v1333
    %v1357 = vmul.f32 %v1214, %v1337
    %v1358 = vmul.f32 %v1215, %v1333
    %v1359 = vmul.f32 %v1216, %v1337
    %v1360 = vmul.f32 %v1217, %v1333
    %v1361 = vmul.f32 %v1218, %v1337
    %v1362 = vmul.f32 %v1219, %v1333
    %v1363 = vmul.f32 %v1220, %v1337
    %v1364 = vmul.f32 %v1221, %v1333
    %v1365 = vmul.f32 %v1222, %v1337
    %v1366 = vmul.f32 %v1223, %v1333
    %v1367 = vmul.f32 %v1224, %v1337
    %v1368 = vmul.f32 %v1225, %v1333
    %v1369 = vmul.f32 %v1226, %v1337
    %v1370 = vmul.f32 %v1227, %v1333
    %v1371 = vmul.f32 %v1228, %v1337
    %v1372 = vld [vmem:[%s4] sm:$0x3]
    %v1374 = vlaneseq
    %v1375 = vshrl.u32 %v1374, 7
    %v1376 = vsub.s32 0, %v1375
    %v1377 = vrot.slane %v1372, %v1376
    %v1378 = vlaneseq
    %v1379 = vshrl.u32 %v1378, 7
    %v1380 = vsub.s32 1, %v1379
    %v1381 = vrot.slane %v1372, %v1380
    %v1384 = vadd.f32 %v1340, %v1377
    %v1385 = vadd.f32 %v1341, %v1381
    %v1386 = vadd.f32 %v1342, %v1377
    %v1387 = vadd.f32 %v1343, %v1381
    %v1388 = vadd.f32 %v1344, %v1377
    %v1389 = vadd.f32 %v1345, %v1381
    %v1390 = vadd.f32 %v1346, %v1377
    %v1391 = vadd.f32 %v1347, %v1381
    %v1392 = vadd.f32 %v1348, %v1377
    %v1393 = vadd.f32 %v1349, %v1381
    %v1394 = vadd.f32 %v1350, %v1377
    %v1395 = vadd.f32 %v1351, %v1381
    %v1396 = vadd.f32 %v1352, %v1377
    %v1397 = vadd.f32 %v1353, %v1381
    %v1398 = vadd.f32 %v1354, %v1377
    %v1399 = vadd.f32 %v1355, %v1381
    %v1400 = vadd.f32 %v1356, %v1377
    %v1401 = vadd.f32 %v1357, %v1381
    %v1402 = vadd.f32 %v1358, %v1377
    %v1403 = vadd.f32 %v1359, %v1381
    %v1404 = vadd.f32 %v1360, %v1377
    %v1405 = vadd.f32 %v1361, %v1381
    %v1406 = vadd.f32 %v1362, %v1377
    %v1407 = vadd.f32 %v1363, %v1381
    %v1408 = vadd.f32 %v1364, %v1377
    %v1409 = vadd.f32 %v1365, %v1381
    %v1410 = vadd.f32 %v1366, %v1377
    %v1411 = vadd.f32 %v1367, %v1381
    %v1412 = vadd.f32 %v1368, %v1377
    %v1413 = vadd.f32 %v1369, %v1381
    %v1414 = vadd.f32 %v1370, %v1377
    %v1415 = vadd.f32 %v1371, %v1381
    %v1416 = vld [vmem:[#allocation5] sm:$0xff]
    %v1417 = vld [vmem:[#allocation5 + $0x8] sm:$0xff]
    %v1418 = vld [vmem:[#allocation5 + $0x10] sm:$0xff]
    %v1419 = vld [vmem:[#allocation5 + $0x18] sm:$0xff]
    %v1420 = vld [vmem:[#allocation5 + $0x20] sm:$0xff]
    %v1421 = vld [vmem:[#allocation5 + $0x28] sm:$0xff]
    %v1422 = vld [vmem:[#allocation5 + $0x30] sm:$0xff]
    %v1423 = vld [vmem:[#allocation5 + $0x38] sm:$0xff]
    %v1424 = vld [vmem:[#allocation5 + $0x40] sm:$0x1]
    %v1425 = vld [vmem:[#allocation5 + $0x48] sm:$0x1]
    %v1426 = vld [vmem:[#allocation5 + $0x50] sm:$0x1]
    %v1427 = vld [vmem:[#allocation5 + $0x58] sm:$0x1]
    %v1428 = vld [vmem:[#allocation5 + $0x60] sm:$0x1]
    %v1429 = vld [vmem:[#allocation5 + $0x68] sm:$0x1]
    %v1430 = vld [vmem:[#allocation5 + $0x70] sm:$0x1]
    %v1431 = vld [vmem:[#allocation5 + $0x78] sm:$0x1]
    %v1432 = vld [vmem:[#allocation7] sm:$0xff]
    %v1433 = vld [vmem:[#allocation7 + $0x8] sm:$0xff]
    %v1434 = vld [vmem:[#allocation7 + $0x10] sm:$0x1]
    %v1435 = vld [vmem:[#allocation7 + $0x18] sm:$0x1]
    %1436 = vmatprep.subr.mxu0 0.0
    %1437 = vmatpush1.xpose.msra.mxu0 0.0
    %1438 = vmatprep.subr.mxu0 0.0
    %1439 = vmatpush1.xpose.msra.mxu0 0.0
    %1440 = vmatprep.subr.mxu0 0.0
    %1441 = vmatpush1.xpose.msra.mxu0 0.0
    %1442 = vmatprep.subr.mxu0 0.0
    %1443 = vmatpush1.xpose.msra.mxu0 0.0
    %1444 = vmatprep.subr.mxu0 0.0
    %1445 = vmatpush1.xpose.msra.mxu0 0.0
    %1446 = vmatprep.subr.mxu0 0.0
    %1447 = vmatpush1.xpose.msra.mxu0 0.0
    %1448 = vmatprep.subr.mxu0 0.0
    %1449 = vmatpush1.xpose.msra.mxu0 0.0
    %1450 = vmatprep.subr.mxu0 0.0
    %1451 = vmatpush1.xpose.msra.mxu0 0.0
    %1452 = vmatprep.subr.mxu0 0.0
    %1453 = vmatpush1.xpose.msra.mxu0 0.0
    %1454 = vmatprep.subr.mxu0 0.0
    %1455 = vmatpush1.xpose.msra.mxu0 0.0
    %1456 = vmatprep.subr.mxu0 0.0
    %1457 = vmatpush1.xpose.msra.mxu0 0.0
    %1458 = vmatprep.subr.mxu0 0.0
    %1459 = vmatpush1.xpose.msra.mxu0 0.0
    %1460 = vmatprep.subr.mxu0 0.0
    %1461 = vmatpush1.xpose.msra.mxu0 0.0
    %1462 = vmatprep.subr.mxu0 0.0
    %1463 = vmatpush1.xpose.msra.mxu0 0.0
    %1464 = vmatprep.subr.mxu0 %v1435
    %1465 = vmatpush1.xpose.msra.mxu0 %v1434
    %1466 = vmatprep.subr.mxu0 %v1433
    %1467 = vmatpush1.xpose.msra.mxu0 %v1432
    %1468 = vmatprep.subr.mxu0 0.0
    %1469 = vmatpush2.xpose.msra.mxu0 0.0
    %1470 = vmatprep.subr.mxu0 0.0
    %1471 = vmatpush2.xpose.msra.mxu0 0.0
    %1472 = vmatprep.subr.mxu0 0.0
    %1473 = vmatpush2.xpose.msra.mxu0 0.0
    %1474 = vmatprep.subr.mxu0 0.0
    %1475 = vmatpush2.xpose.msra.mxu0 0.0
    %1476 = vmatprep.subr.mxu0 0.0
    %1477 = vmatpush2.xpose.msra.mxu0 0.0
    %1478 = vmatprep.subr.mxu0 0.0
    %1479 = vmatpush2.xpose.msra.mxu0 0.0
    %1480 = vmatprep.subr.mxu0 0.0
    %1481 = vmatpush2.xpose.msra.mxu0 0.0
    %1482 = vmatprep.subr.mxu0 0.0
    %1483 = vmatpush2.xpose.msra.mxu0 0.0
    %1484 = vmatprep.subr.mxu0 0.0
    %1485 = vmatpush2.xpose.msra.mxu0 0.0
    %1486 = vmatprep.subr.mxu0 0.0
    %1487 = vmatpush2.xpose.msra.mxu0 0.0
    %1488 = vmatprep.subr.mxu0 0.0
    %1489 = vmatpush2.xpose.msra.mxu0 0.0
    %1490 = vmatprep.subr.mxu0 0.0
    %1491 = vmatpush2.xpose.msra.mxu0 0.0
    %1492 = vmatprep.subr.mxu0 0.0
    %1493 = vmatpush2.xpose.msra.mxu0 0.0
    %1494 = vmatprep.subr.mxu0 0.0
    %1495 = vmatpush2.xpose.msra.mxu0 0.0
    %1496 = vmatprep.subr.mxu0 0.0
    %1497 = vmatpush2.xpose.msra.mxu0 0.0
    %1498 = vmatprep.subr.mxu0 0.0
    %1499 = vmatpush2.xpose.msra.mxu0 0.0
    %1500 = vmatprep.mubr.f32.mxu0 %v1385
    %1501 = vmatmul.mubr.f32.gmra.mxu0 %v1384
    %v1502 = vpop.f32.mrf.mxu0
    %v1503 = vadd.f32 0.0, %v1502
    %v1504 = vpop.f32.mrf.mxu0
    %1505 = vmatprep.mubr.f32.mxu0 %v1387
    %1506 = vmatmul.mubr.f32.gmra.mxu0 %v1386
    %v1507 = vpop.f32.mrf.mxu0
    %v1508 = vadd.f32 0.0, %v1507
    %v1509 = vpop.f32.mrf.mxu0
    %1510 = vmatprep.mubr.f32.mxu0 %v1389
    %1511 = vmatmul.mubr.f32.gmra.mxu0 %v1388
    %v1512 = vpop.f32.mrf.mxu0
    %v1513 = vadd.f32 0.0, %v1512
    %v1514 = vpop.f32.mrf.mxu0
    %1515 = vmatprep.mubr.f32.mxu0 %v1391
    %1516 = vmatmul.mubr.f32.gmra.mxu0 %v1390
    %v1517 = vpop.f32.mrf.mxu0
    %v1518 = vadd.f32 0.0, %v1517
    %v1519 = vpop.f32.mrf.mxu0
    %1520 = vmatprep.mubr.f32.mxu0 %v1393
    %1521 = vmatmul.mubr.f32.gmra.mxu0 %v1392
    %v1522 = vpop.f32.mrf.mxu0
    %v1523 = vadd.f32 0.0, %v1522
    %v1524 = vpop.f32.mrf.mxu0
    %1525 = vmatprep.mubr.f32.mxu0 %v1395
    %1526 = vmatmul.mubr.f32.gmra.mxu0 %v1394
    %v1527 = vpop.f32.mrf.mxu0
    %v1528 = vadd.f32 0.0, %v1527
    %v1529 = vpop.f32.mrf.mxu0
    %1530 = vmatprep.mubr.f32.mxu0 %v1397
    %1531 = vmatmul.mubr.f32.gmra.mxu0 %v1396
    %v1532 = vpop.f32.mrf.mxu0
    %v1533 = vadd.f32 0.0, %v1532
    %v1534 = vpop.f32.mrf.mxu0
    %1535 = vmatprep.mubr.f32.mxu0 %v1399
    %1536 = vmatmul.mubr.f32.gmra.mxu0 %v1398
    %v1537 = vpop.f32.mrf.mxu0
    %v1538 = vadd.f32 0.0, %v1537
    %v1539 = vpop.f32.mrf.mxu0
    %1540 = vmatprep.mubr.f32.mxu0 %v1401
    %1541 = vmatmul.mubr.f32.gmra.mxu0 %v1400
    %v1542 = vpop.f32.mrf.mxu0
    %v1543 = vadd.f32 0.0, %v1542
    %v1544 = vpop.f32.mrf.mxu0
    %1545 = vmatprep.mubr.f32.mxu0 %v1403
    %1546 = vmatmul.mubr.f32.gmra.mxu0 %v1402
    %v1547 = vpop.f32.mrf.mxu0
    %v1548 = vadd.f32 0.0, %v1547
    %v1549 = vpop.f32.mrf.mxu0
    %1550 = vmatprep.mubr.f32.mxu0 %v1405
    %1551 = vmatmul.mubr.f32.gmra.mxu0 %v1404
    %v1552 = vpop.f32.mrf.mxu0
    %v1553 = vadd.f32 0.0, %v1552
    %v1554 = vpop.f32.mrf.mxu0
    %1555 = vmatprep.mubr.f32.mxu0 %v1407
    %1556 = vmatmul.mubr.f32.gmra.mxu0 %v1406
    %v1557 = vpop.f32.mrf.mxu0
    %v1558 = vadd.f32 0.0, %v1557
    %v1559 = vpop.f32.mrf.mxu0
    %1560 = vmatprep.mubr.f32.mxu0 %v1409
    %1561 = vmatmul.mubr.f32.gmra.mxu0 %v1408
    %v1562 = vpop.f32.mrf.mxu0
    %v1563 = vadd.f32 0.0, %v1562
    %v1564 = vpop.f32.mrf.mxu0
    %1565 = vmatprep.mubr.f32.mxu0 %v1411
    %1566 = vmatmul.mubr.f32.gmra.mxu0 %v1410
    %v1567 = vpop.f32.mrf.mxu0
    %v1568 = vadd.f32 0.0, %v1567
    %v1569 = vpop.f32.mrf.mxu0
    %1570 = vmatprep.mubr.f32.mxu0 %v1413
    %1571 = vmatmul.mubr.f32.gmra.mxu0 %v1412
    %v1572 = vpop.f32.mrf.mxu0
    %v1573 = vadd.f32 0.0, %v1572
    %v1574 = vpop.f32.mrf.mxu0
    %1575 = vmatprep.mubr.f32.mxu0 %v1415
    %1576 = vmatmul.mubr.f32.gmra.mxu0 %v1414
    %v1577 = vpop.f32.mrf.mxu0
    %v1578 = vadd.f32 0.0, %v1577
    %v1579 = vpop.f32.mrf.mxu0
    %1580 = vdwg.mxu0
    %v1582 = vsel %vm459, %v1423, 0
    %v1585 = vsel %vm459, %v1431, 0
    %1587 = vmatprep.subr.mxu0 0.0
    %1588 = vmatpush1.xpose.msra.mxu0 0.0
    %1589 = vmatprep.subr.mxu0 0.0
    %1590 = vmatpush1.xpose.msra.mxu0 0.0
    %1591 = vmatprep.subr.mxu0 0.0
    %1592 = vmatpush1.xpose.msra.mxu0 0.0
    %1593 = vmatprep.subr.mxu0 0.0
    %1594 = vmatpush1.xpose.msra.mxu0 0.0
    %1595 = vmatprep.subr.mxu0 0.0
    %1596 = vmatpush1.xpose.msra.mxu0 0.0
    %1597 = vmatprep.subr.mxu0 0.0
    %1598 = vmatpush1.xpose.msra.mxu0 0.0
    %1599 = vmatprep.subr.mxu0 0.0
    %1600 = vmatpush1.xpose.msra.mxu0 0.0
    %1601 = vmatprep.subr.mxu0 0.0
    %1602 = vmatpush1.xpose.msra.mxu0 0.0
    %1603 = vmatprep.subr.mxu0 0.0
    %1604 = vmatpush1.xpose.msra.mxu0 0.0
    %1605 = vmatprep.subr.mxu0 0.0
    %1606 = vmatpush1.xpose.msra.mxu0 0.0
    %1607 = vmatprep.subr.mxu0 0.0
    %1608 = vmatpush1.xpose.msra.mxu0 0.0
    %1609 = vmatprep.subr.mxu0 0.0
    %1610 = vmatpush1.xpose.msra.mxu0 0.0
    %1611 = vmatprep.subr.mxu0 0.0
    %1612 = vmatpush1.xpose.msra.mxu0 0.0
    %1613 = vmatprep.subr.mxu0 0.0
    %1614 = vmatpush1.xpose.msra.mxu0 0.0
    %1615 = vmatprep.subr.mxu0 %v1425
    %1616 = vmatpush1.xpose.msra.mxu0 %v1424
    %1617 = vmatprep.subr.mxu0 %v1417
    %1618 = vmatpush1.xpose.msra.mxu0 %v1416
    %1619 = vmatprep.subr.mxu0 0.0
    %1620 = vmatpush2.xpose.msra.mxu0 0.0
    %1621 = vmatprep.subr.mxu0 0.0
    %1622 = vmatpush2.xpose.msra.mxu0 0.0
    %1623 = vmatprep.subr.mxu0 0.0
    %1624 = vmatpush2.xpose.msra.mxu0 0.0
    %1625 = vmatprep.subr.mxu0 0.0
    %1626 = vmatpush2.xpose.msra.mxu0 0.0
    %1627 = vmatprep.subr.mxu0 0.0
    %1628 = vmatpush2.xpose.msra.mxu0 0.0
    %1629 = vmatprep.subr.mxu0 0.0
    %1630 = vmatpush2.xpose.msra.mxu0 0.0
    %1631 = vmatprep.subr.mxu0 0.0
    %1632 = vmatpush2.xpose.msra.mxu0 0.0
    %1633 = vmatprep.subr.mxu0 0.0
    %1634 = vmatpush2.xpose.msra.mxu0 0.0
    %1635 = vmatprep.subr.mxu0 0.0
    %1636 = vmatpush2.xpose.msra.mxu0 0.0
    %1637 = vmatprep.subr.mxu0 0.0
    %1638 = vmatpush2.xpose.msra.mxu0 0.0
    %1639 = vmatprep.subr.mxu0 0.0
    %1640 = vmatpush2.xpose.msra.mxu0 0.0
    %1641 = vmatprep.subr.mxu0 0.0
    %1642 = vmatpush2.xpose.msra.mxu0 0.0
    %1643 = vmatprep.subr.mxu0 0.0
    %1644 = vmatpush2.xpose.msra.mxu0 0.0
    %1645 = vmatprep.subr.mxu0 0.0
    %1646 = vmatpush2.xpose.msra.mxu0 0.0
    %1647 = vmatprep.subr.mxu0 0.0
    %1648 = vmatpush2.xpose.msra.mxu0 0.0
    %1649 = vmatprep.subr.mxu0 0.0
    %1650 = vmatpush2.xpose.msra.mxu0 0.0
    %1651 = vmatprep.mubr.f32.mxu0 %v70
    %1652 = vmatmul.mubr.f32.gmra.mxu0 %v69
    %v1653 = vpop.f32.mrf.mxu0
    %v1654 = vadd.f32 %v1503, %v1653
    %v1655 = vpop.f32.mrf.mxu0
    %1656 = vmatprep.mubr.f32.mxu0 %v78
    %1657 = vmatmul.mubr.f32.gmra.mxu0 %v77
    %v1658 = vpop.f32.mrf.mxu0
    %v1659 = vadd.f32 %v1508, %v1658
    %v1660 = vpop.f32.mrf.mxu0
    %1661 = vmatprep.mubr.f32.mxu0 %v86
    %1662 = vmatmul.mubr.f32.gmra.mxu0 %v85
    %v1663 = vpop.f32.mrf.mxu0
    %v1664 = vadd.f32 %v1513, %v1663
    %v1665 = vpop.f32.mrf.mxu0
    %1666 = vmatprep.mubr.f32.mxu0 %v94
    %1667 = vmatmul.mubr.f32.gmra.mxu0 %v93
    %v1668 = vpop.f32.mrf.mxu0
    %v1669 = vadd.f32 %v1518, %v1668
    %v1670 = vpop.f32.mrf.mxu0
    %1671 = vmatprep.mubr.f32.mxu0 %v102
    %1672 = vmatmul.mubr.f32.gmra.mxu0 %v101
    %v1673 = vpop.f32.mrf.mxu0
    %v1674 = vadd.f32 %v1523, %v1673
    %v1675 = vpop.f32.mrf.mxu0
    %1676 = vmatprep.mubr.f32.mxu0 %v110
    %1677 = vmatmul.mubr.f32.gmra.mxu0 %v109
    %v1678 = vpop.f32.mrf.mxu0
    %v1679 = vadd.f32 %v1528, %v1678
    %v1680 = vpop.f32.mrf.mxu0
    %1681 = vmatprep.mubr.f32.mxu0 %v118
    %1682 = vmatmul.mubr.f32.gmra.mxu0 %v117
    %v1683 = vpop.f32.mrf.mxu0
    %v1684 = vadd.f32 %v1533, %v1683
    %v1685 = vpop.f32.mrf.mxu0
    %1686 = vmatprep.mubr.f32.mxu0 %v126
    %1687 = vmatmul.mubr.f32.gmra.mxu0 %v125
    %v1688 = vpop.f32.mrf.mxu0
    %v1689 = vadd.f32 %v1538, %v1688
    %v1690 = vpop.f32.mrf.mxu0
    %1691 = vmatprep.mubr.f32.mxu0 %v134
    %1692 = vmatmul.mubr.f32.gmra.mxu0 %v133
    %v1693 = vpop.f32.mrf.mxu0
    %v1694 = vadd.f32 %v1543, %v1693
    %v1695 = vpop.f32.mrf.mxu0
    %1696 = vmatprep.mubr.f32.mxu0 %v142
    %1697 = vmatmul.mubr.f32.gmra.mxu0 %v141
    %v1698 = vpop.f32.mrf.mxu0
    %v1699 = vadd.f32 %v1548, %v1698
    %v1700 = vpop.f32.mrf.mxu0
    %1701 = vmatprep.mubr.f32.mxu0 %v150
    %1702 = vmatmul.mubr.f32.gmra.mxu0 %v149
    %v1703 = vpop.f32.mrf.mxu0
    %v1704 = vadd.f32 %v1553, %v1703
    %v1705 = vpop.f32.mrf.mxu0
    %1706 = vmatprep.mubr.f32.mxu0 %v158
    %1707 = vmatmul.mubr.f32.gmra.mxu0 %v157
    %v1708 = vpop.f32.mrf.mxu0
    %v1709 = vadd.f32 %v1558, %v1708
    %v1710 = vpop.f32.mrf.mxu0
    %1711 = vmatprep.mubr.f32.mxu0 %v166
    %1712 = vmatmul.mubr.f32.gmra.mxu0 %v165
    %v1713 = vpop.f32.mrf.mxu0
    %v1714 = vadd.f32 %v1563, %v1713
    %v1715 = vpop.f32.mrf.mxu0
    %1716 = vmatprep.mubr.f32.mxu0 %v174
    %1717 = vmatmul.mubr.f32.gmra.mxu0 %v173
    %v1718 = vpop.f32.mrf.mxu0
    %v1719 = vadd.f32 %v1568, %v1718
    %v1720 = vpop.f32.mrf.mxu0
    %1721 = vmatprep.mubr.f32.mxu0 %v182
    %1722 = vmatmul.mubr.f32.gmra.mxu0 %v181
    %v1723 = vpop.f32.mrf.mxu0
    %v1724 = vadd.f32 %v1573, %v1723
    %v1725 = vpop.f32.mrf.mxu0
    %1726 = vmatprep.mubr.f32.mxu0 %v190
    %1727 = vmatmul.mubr.f32.gmra.mxu0 %v189
    %v1728 = vpop.f32.mrf.mxu0
    %v1729 = vadd.f32 %v1578, %v1728
    %v1730 = vpop.f32.mrf.mxu0
    %1731 = vdwg.mxu0
    %1732 = vmatprep.subr.mxu0 0.0
    %1733 = vmatpush1.xpose.msra.mxu0 0.0
    %1734 = vmatprep.subr.mxu0 0.0
    %1735 = vmatpush1.xpose.msra.mxu0 0.0
    %1736 = vmatprep.subr.mxu0 0.0
    %1737 = vmatpush1.xpose.msra.mxu0 0.0
    %1738 = vmatprep.subr.mxu0 0.0
    %1739 = vmatpush1.xpose.msra.mxu0 0.0
    %1740 = vmatprep.subr.mxu0 0.0
    %1741 = vmatpush1.xpose.msra.mxu0 0.0
    %1742 = vmatprep.subr.mxu0 0.0
    %1743 = vmatpush1.xpose.msra.mxu0 0.0
    %1744 = vmatprep.subr.mxu0 0.0
    %1745 = vmatpush1.xpose.msra.mxu0 0.0
    %1746 = vmatprep.subr.mxu0 0.0
    %1747 = vmatpush1.xpose.msra.mxu0 0.0
    %1748 = vmatprep.subr.mxu0 0.0
    %1749 = vmatpush1.xpose.msra.mxu0 0.0
    %1750 = vmatprep.subr.mxu0 0.0
    %1751 = vmatpush1.xpose.msra.mxu0 0.0
    %1752 = vmatprep.subr.mxu0 0.0
    %1753 = vmatpush1.xpose.msra.mxu0 0.0
    %1754 = vmatprep.subr.mxu0 0.0
    %1755 = vmatpush1.xpose.msra.mxu0 0.0
    %1756 = vmatprep.subr.mxu0 0.0
    %1757 = vmatpush1.xpose.msra.mxu0 0.0
    %1758 = vmatprep.subr.mxu0 0.0
    %1759 = vmatpush1.xpose.msra.mxu0 0.0
    %1760 = vmatprep.subr.mxu0 %v1427
    %1761 = vmatpush1.xpose.msra.mxu0 %v1426
    %1762 = vmatprep.subr.mxu0 %v1419
    %1763 = vmatpush1.xpose.msra.mxu0 %v1418
    %1764 = vmatprep.subr.mxu0 0.0
    %1765 = vmatpush2.xpose.msra.mxu0 0.0
    %1766 = vmatprep.subr.mxu0 0.0
    %1767 = vmatpush2.xpose.msra.mxu0 0.0
    %1768 = vmatprep.subr.mxu0 0.0
    %1769 = vmatpush2.xpose.msra.mxu0 0.0
    %1770 = vmatprep.subr.mxu0 0.0
    %1771 = vmatpush2.xpose.msra.mxu0 0.0
    %1772 = vmatprep.subr.mxu0 0.0
    %1773 = vmatpush2.xpose.msra.mxu0 0.0
    %1774 = vmatprep.subr.mxu0 0.0
    %1775 = vmatpush2.xpose.msra.mxu0 0.0
    %1776 = vmatprep.subr.mxu0 0.0
    %1777 = vmatpush2.xpose.msra.mxu0 0.0
    %1778 = vmatprep.subr.mxu0 0.0
    %1779 = vmatpush2.xpose.msra.mxu0 0.0
    %1780 = vmatprep.subr.mxu0 0.0
    %1781 = vmatpush2.xpose.msra.mxu0 0.0
    %1782 = vmatprep.subr.mxu0 0.0
    %1783 = vmatpush2.xpose.msra.mxu0 0.0
    %1784 = vmatprep.subr.mxu0 0.0
    %1785 = vmatpush2.xpose.msra.mxu0 0.0
    %1786 = vmatprep.subr.mxu0 0.0
    %1787 = vmatpush2.xpose.msra.mxu0 0.0
    %1788 = vmatprep.subr.mxu0 0.0
    %1789 = vmatpush2.xpose.msra.mxu0 0.0
    %1790 = vmatprep.subr.mxu0 0.0
    %1791 = vmatpush2.xpose.msra.mxu0 0.0
    %1792 = vmatprep.subr.mxu0 0.0
    %1793 = vmatpush2.xpose.msra.mxu0 0.0
    %1794 = vmatprep.subr.mxu0 0.0
    %1795 = vmatpush2.xpose.msra.mxu0 0.0
    %1796 = vmatprep.mubr.f32.mxu0 %v72
    %1797 = vmatmul.mubr.f32.gmra.mxu0 %v71
    %v1798 = vpop.f32.mrf.mxu0
    %v1799 = vadd.f32 %v1654, %v1798
    %v1800 = vpop.f32.mrf.mxu0
    %1801 = vmatprep.mubr.f32.mxu0 %v80
    %1802 = vmatmul.mubr.f32.gmra.mxu0 %v79
    %v1803 = vpop.f32.mrf.mxu0
    %v1804 = vadd.f32 %v1659, %v1803
    %v1805 = vpop.f32.mrf.mxu0
    %1806 = vmatprep.mubr.f32.mxu0 %v88
    %1807 = vmatmul.mubr.f32.gmra.mxu0 %v87
    %v1808 = vpop.f32.mrf.mxu0
    %v1809 = vadd.f32 %v1664, %v1808
    %v1810 = vpop.f32.mrf.mxu0
    %1811 = vmatprep.mubr.f32.mxu0 %v96
    %1812 = vmatmul.mubr.f32.gmra.mxu0 %v95
    %v1813 = vpop.f32.mrf.mxu0
    %v1814 = vadd.f32 %v1669, %v1813
    %v1815 = vpop.f32.mrf.mxu0
    %1816 = vmatprep.mubr.f32.mxu0 %v104
    %1817 = vmatmul.mubr.f32.gmra.mxu0 %v103
    %v1818 = vpop.f32.mrf.mxu0
    %v1819 = vadd.f32 %v1674, %v1818
    %v1820 = vpop.f32.mrf.mxu0
    %1821 = vmatprep.mubr.f32.mxu0 %v112
    %1822 = vmatmul.mubr.f32.gmra.mxu0 %v111
    %v1823 = vpop.f32.mrf.mxu0
    %v1824 = vadd.f32 %v1679, %v1823
    %v1825 = vpop.f32.mrf.mxu0
    %1826 = vmatprep.mubr.f32.mxu0 %v120
    %1827 = vmatmul.mubr.f32.gmra.mxu0 %v119
    %v1828 = vpop.f32.mrf.mxu0
    %v1829 = vadd.f32 %v1684, %v1828
    %v1830 = vpop.f32.mrf.mxu0
    %1831 = vmatprep.mubr.f32.mxu0 %v128
    %1832 = vmatmul.mubr.f32.gmra.mxu0 %v127
    %v1833 = vpop.f32.mrf.mxu0
    %v1834 = vadd.f32 %v1689, %v1833
    %v1835 = vpop.f32.mrf.mxu0
    %1836 = vmatprep.mubr.f32.mxu0 %v136
    %1837 = vmatmul.mubr.f32.gmra.mxu0 %v135
    %v1838 = vpop.f32.mrf.mxu0
    %v1839 = vadd.f32 %v1694, %v1838
    %v1840 = vpop.f32.mrf.mxu0
    %1841 = vmatprep.mubr.f32.mxu0 %v144
    %1842 = vmatmul.mubr.f32.gmra.mxu0 %v143
    %v1843 = vpop.f32.mrf.mxu0
    %v1844 = vadd.f32 %v1699, %v1843
    %v1845 = vpop.f32.mrf.mxu0
    %1846 = vmatprep.mubr.f32.mxu0 %v152
    %1847 = vmatmul.mubr.f32.gmra.mxu0 %v151
    %v1848 = vpop.f32.mrf.mxu0
    %v1849 = vadd.f32 %v1704, %v1848
    %v1850 = vpop.f32.mrf.mxu0
    %1851 = vmatprep.mubr.f32.mxu0 %v160
    %1852 = vmatmul.mubr.f32.gmra.mxu0 %v159
    %v1853 = vpop.f32.mrf.mxu0
    %v1854 = vadd.f32 %v1709, %v1853
    %v1855 = vpop.f32.mrf.mxu0
    %1856 = vmatprep.mubr.f32.mxu0 %v168
    %1857 = vmatmul.mubr.f32.gmra.mxu0 %v167
    %v1858 = vpop.f32.mrf.mxu0
    %v1859 = vadd.f32 %v1714, %v1858
    %v1860 = vpop.f32.mrf.mxu0
    %1861 = vmatprep.mubr.f32.mxu0 %v176
    %1862 = vmatmul.mubr.f32.gmra.mxu0 %v175
    %v1863 = vpop.f32.mrf.mxu0
    %v1864 = vadd.f32 %v1719, %v1863
    %v1865 = vpop.f32.mrf.mxu0
    %1866 = vmatprep.mubr.f32.mxu0 %v184
    %1867 = vmatmul.mubr.f32.gmra.mxu0 %v183
    %v1868 = vpop.f32.mrf.mxu0
    %v1869 = vadd.f32 %v1724, %v1868
    %v1870 = vpop.f32.mrf.mxu0
    %1871 = vmatprep.mubr.f32.mxu0 %v192
    %1872 = vmatmul.mubr.f32.gmra.mxu0 %v191
    %v1873 = vpop.f32.mrf.mxu0
    %v1874 = vadd.f32 %v1729, %v1873
    %v1875 = vpop.f32.mrf.mxu0
    %1876 = vdwg.mxu0
    %1877 = vmatprep.subr.mxu0 0.0
    %1878 = vmatpush1.xpose.msra.mxu0 0.0
    %1879 = vmatprep.subr.mxu0 0.0
    %1880 = vmatpush1.xpose.msra.mxu0 0.0
    %1881 = vmatprep.subr.mxu0 0.0
    %1882 = vmatpush1.xpose.msra.mxu0 0.0
    %1883 = vmatprep.subr.mxu0 0.0
    %1884 = vmatpush1.xpose.msra.mxu0 0.0
    %1885 = vmatprep.subr.mxu0 0.0
    %1886 = vmatpush1.xpose.msra.mxu0 0.0
    %1887 = vmatprep.subr.mxu0 0.0
    %1888 = vmatpush1.xpose.msra.mxu0 0.0
    %1889 = vmatprep.subr.mxu0 0.0
    %1890 = vmatpush1.xpose.msra.mxu0 0.0
    %1891 = vmatprep.subr.mxu0 0.0
    %1892 = vmatpush1.xpose.msra.mxu0 0.0
    %1893 = vmatprep.subr.mxu0 0.0
    %1894 = vmatpush1.xpose.msra.mxu0 0.0
    %1895 = vmatprep.subr.mxu0 0.0
    %1896 = vmatpush1.xpose.msra.mxu0 0.0
    %1897 = vmatprep.subr.mxu0 0.0
    %1898 = vmatpush1.xpose.msra.mxu0 0.0
    %1899 = vmatprep.subr.mxu0 0.0
    %1900 = vmatpush1.xpose.msra.mxu0 0.0
    %1901 = vmatprep.subr.mxu0 0.0
    %1902 = vmatpush1.xpose.msra.mxu0 0.0
    %1903 = vmatprep.subr.mxu0 0.0
    %1904 = vmatpush1.xpose.msra.mxu0 0.0
    %1905 = vmatprep.subr.mxu0 %v1429
    %1906 = vmatpush1.xpose.msra.mxu0 %v1428
    %1907 = vmatprep.subr.mxu0 %v1421
    %1908 = vmatpush1.xpose.msra.mxu0 %v1420
    %1909 = vmatprep.subr.mxu0 0.0
    %1910 = vmatpush2.xpose.msra.mxu0 0.0
    %1911 = vmatprep.subr.mxu0 0.0
    %1912 = vmatpush2.xpose.msra.mxu0 0.0
    %1913 = vmatprep.subr.mxu0 0.0
    %1914 = vmatpush2.xpose.msra.mxu0 0.0
    %1915 = vmatprep.subr.mxu0 0.0
    %1916 = vmatpush2.xpose.msra.mxu0 0.0
    %1917 = vmatprep.subr.mxu0 0.0
    %1918 = vmatpush2.xpose.msra.mxu0 0.0
    %1919 = vmatprep.subr.mxu0 0.0
    %1920 = vmatpush2.xpose.msra.mxu0 0.0
    %1921 = vmatprep.subr.mxu0 0.0
    %1922 = vmatpush2.xpose.msra.mxu0 0.0
    %1923 = vmatprep.subr.mxu0 0.0
    %1924 = vmatpush2.xpose.msra.mxu0 0.0
    %1925 = vmatprep.subr.mxu0 0.0
    %1926 = vmatpush2.xpose.msra.mxu0 0.0
    %1927 = vmatprep.subr.mxu0 0.0
    %1928 = vmatpush2.xpose.msra.mxu0 0.0
    %1929 = vmatprep.subr.mxu0 0.0
    %1930 = vmatpush2.xpose.msra.mxu0 0.0
    %1931 = vmatprep.subr.mxu0 0.0
    %1932 = vmatpush2.xpose.msra.mxu0 0.0
    %1933 = vmatprep.subr.mxu0 0.0
    %1934 = vmatpush2.xpose.msra.mxu0 0.0
    %1935 = vmatprep.subr.mxu0 0.0
    %1936 = vmatpush2.xpose.msra.mxu0 0.0
    %1937 = vmatprep.subr.mxu0 0.0
    %1938 = vmatpush2.xpose.msra.mxu0 0.0
    %1939 = vmatprep.subr.mxu0 0.0
    %1940 = vmatpush2.xpose.msra.mxu0 0.0
    %1941 = vmatprep.mubr.f32.mxu0 %v74
    %1942 = vmatmul.mubr.f32.gmra.mxu0 %v73
    %v1943 = vpop.f32.mrf.mxu0
    %v1944 = vadd.f32 %v1799, %v1943
    %v1945 = vpop.f32.mrf.mxu0
    %1946 = vmatprep.mubr.f32.mxu0 %v82
    %1947 = vmatmul.mubr.f32.gmra.mxu0 %v81
    %v1948 = vpop.f32.mrf.mxu0
    %v1949 = vadd.f32 %v1804, %v1948
    %v1950 = vpop.f32.mrf.mxu0
    %1951 = vmatprep.mubr.f32.mxu0 %v90
    %1952 = vmatmul.mubr.f32.gmra.mxu0 %v89
    %v1953 = vpop.f32.mrf.mxu0
    %v1954 = vadd.f32 %v1809, %v1953
    %v1955 = vpop.f32.mrf.mxu0
    %1956 = vmatprep.mubr.f32.mxu0 %v98
    %1957 = vmatmul.mubr.f32.gmra.mxu0 %v97
    %v1958 = vpop.f32.mrf.mxu0
    %v1959 = vadd.f32 %v1814, %v1958
    %v1960 = vpop.f32.mrf.mxu0
    %1961 = vmatprep.mubr.f32.mxu0 %v106
    %1962 = vmatmul.mubr.f32.gmra.mxu0 %v105
    %v1963 = vpop.f32.mrf.mxu0
    %v1964 = vadd.f32 %v1819, %v1963
    %v1965 = vpop.f32.mrf.mxu0
    %1966 = vmatprep.mubr.f32.mxu0 %v114
    %1967 = vmatmul.mubr.f32.gmra.mxu0 %v113
    %v1968 = vpop.f32.mrf.mxu0
    %v1969 = vadd.f32 %v1824, %v1968
    %v1970 = vpop.f32.mrf.mxu0
    %1971 = vmatprep.mubr.f32.mxu0 %v122
    %1972 = vmatmul.mubr.f32.gmra.mxu0 %v121
    %v1973 = vpop.f32.mrf.mxu0
    %v1974 = vadd.f32 %v1829, %v1973
    %v1975 = vpop.f32.mrf.mxu0
    %1976 = vmatprep.mubr.f32.mxu0 %v130
    %1977 = vmatmul.mubr.f32.gmra.mxu0 %v129
    %v1978 = vpop.f32.mrf.mxu0
    %v1979 = vadd.f32 %v1834, %v1978
    %v1980 = vpop.f32.mrf.mxu0
    %1981 = vmatprep.mubr.f32.mxu0 %v138
    %1982 = vmatmul.mubr.f32.gmra.mxu0 %v137
    %v1983 = vpop.f32.mrf.mxu0
    %v1984 = vadd.f32 %v1839, %v1983
    %v1985 = vpop.f32.mrf.mxu0
    %1986 = vmatprep.mubr.f32.mxu0 %v146
    %1987 = vmatmul.mubr.f32.gmra.mxu0 %v145
    %v1988 = vpop.f32.mrf.mxu0
    %v1989 = vadd.f32 %v1844, %v1988
    %v1990 = vpop.f32.mrf.mxu0
    %1991 = vmatprep.mubr.f32.mxu0 %v154
    %1992 = vmatmul.mubr.f32.gmra.mxu0 %v153
    %v1993 = vpop.f32.mrf.mxu0
    %v1994 = vadd.f32 %v1849, %v1993
    %v1995 = vpop.f32.mrf.mxu0
    %1996 = vmatprep.mubr.f32.mxu0 %v162
    %1997 = vmatmul.mubr.f32.gmra.mxu0 %v161
    %v1998 = vpop.f32.mrf.mxu0
    %v1999 = vadd.f32 %v1854, %v1998
    %v2000 = vpop.f32.mrf.mxu0
    %2001 = vmatprep.mubr.f32.mxu0 %v170
    %2002 = vmatmul.mubr.f32.gmra.mxu0 %v169
    %v2003 = vpop.f32.mrf.mxu0
    %v2004 = vadd.f32 %v1859, %v2003
    %v2005 = vpop.f32.mrf.mxu0
    %2006 = vmatprep.mubr.f32.mxu0 %v178
    %2007 = vmatmul.mubr.f32.gmra.mxu0 %v177
    %v2008 = vpop.f32.mrf.mxu0
    %v2009 = vadd.f32 %v1864, %v2008
    %v2010 = vpop.f32.mrf.mxu0
    %2011 = vmatprep.mubr.f32.mxu0 %v186
    %2012 = vmatmul.mubr.f32.gmra.mxu0 %v185
    %v2013 = vpop.f32.mrf.mxu0
    %v2014 = vadd.f32 %v1869, %v2013
    %v2015 = vpop.f32.mrf.mxu0
    %2016 = vmatprep.mubr.f32.mxu0 %v194
    %2017 = vmatmul.mubr.f32.gmra.mxu0 %v193
    %v2018 = vpop.f32.mrf.mxu0
    %v2019 = vadd.f32 %v1874, %v2018
    %v2020 = vpop.f32.mrf.mxu0
    %2021 = vdwg.mxu0
    %2022 = vmatprep.subr.mxu0 0.0
    %2023 = vmatpush1.xpose.msra.mxu0 0.0
    %2024 = vmatprep.subr.mxu0 0.0
    %2025 = vmatpush1.xpose.msra.mxu0 0.0
    %2026 = vmatprep.subr.mxu0 0.0
    %2027 = vmatpush1.xpose.msra.mxu0 0.0
    %2028 = vmatprep.subr.mxu0 0.0
    %2029 = vmatpush1.xpose.msra.mxu0 0.0
    %2030 = vmatprep.subr.mxu0 0.0
    %2031 = vmatpush1.xpose.msra.mxu0 0.0
    %2032 = vmatprep.subr.mxu0 0.0
    %2033 = vmatpush1.xpose.msra.mxu0 0.0
    %2034 = vmatprep.subr.mxu0 0.0
    %2035 = vmatpush1.xpose.msra.mxu0 0.0
    %2036 = vmatprep.subr.mxu0 0.0
    %2037 = vmatpush1.xpose.msra.mxu0 0.0
    %2038 = vmatprep.subr.mxu0 0.0
    %2039 = vmatpush1.xpose.msra.mxu0 0.0
    %2040 = vmatprep.subr.mxu0 0.0
    %2041 = vmatpush1.xpose.msra.mxu0 0.0
    %2042 = vmatprep.subr.mxu0 0.0
    %2043 = vmatpush1.xpose.msra.mxu0 0.0
    %2044 = vmatprep.subr.mxu0 0.0
    %2045 = vmatpush1.xpose.msra.mxu0 0.0
    %2046 = vmatprep.subr.mxu0 0.0
    %2047 = vmatpush1.xpose.msra.mxu0 0.0
    %2048 = vmatprep.subr.mxu0 0.0
    %2049 = vmatpush1.xpose.msra.mxu0 0.0
    %2050 = vmatprep.subr.mxu0 %v1585
    %2051 = vmatpush1.xpose.msra.mxu0 %v1430
    %2052 = vmatprep.subr.mxu0 %v1582
    %2053 = vmatpush1.xpose.msra.mxu0 %v1422
    %2054 = vmatprep.subr.mxu0 0.0
    %2055 = vmatpush2.xpose.msra.mxu0 0.0
    %2056 = vmatprep.subr.mxu0 0.0
    %2057 = vmatpush2.xpose.msra.mxu0 0.0
    %2058 = vmatprep.subr.mxu0 0.0
    %2059 = vmatpush2.xpose.msra.mxu0 0.0
    %2060 = vmatprep.subr.mxu0 0.0
    %2061 = vmatpush2.xpose.msra.mxu0 0.0
    %2062 = vmatprep.subr.mxu0 0.0
    %2063 = vmatpush2.xpose.msra.mxu0 0.0
    %2064 = vmatprep.subr.mxu0 0.0
    %2065 = vmatpush2.xpose.msra.mxu0 0.0
    %2066 = vmatprep.subr.mxu0 0.0
    %2067 = vmatpush2.xpose.msra.mxu0 0.0
    %2068 = vmatprep.subr.mxu0 0.0
    %2069 = vmatpush2.xpose.msra.mxu0 0.0
    %2070 = vmatprep.subr.mxu0 0.0
    %2071 = vmatpush2.xpose.msra.mxu0 0.0
    %2072 = vmatprep.subr.mxu0 0.0
    %2073 = vmatpush2.xpose.msra.mxu0 0.0
    %2074 = vmatprep.subr.mxu0 0.0
    %2075 = vmatpush2.xpose.msra.mxu0 0.0
    %2076 = vmatprep.subr.mxu0 0.0
    %2077 = vmatpush2.xpose.msra.mxu0 0.0
    %2078 = vmatprep.subr.mxu0 0.0
    %2079 = vmatpush2.xpose.msra.mxu0 0.0
    %2080 = vmatprep.subr.mxu0 0.0
    %2081 = vmatpush2.xpose.msra.mxu0 0.0
    %2082 = vmatprep.subr.mxu0 0.0
    %2083 = vmatpush2.xpose.msra.mxu0 0.0
    %2084 = vmatprep.subr.mxu0 0.0
    %2085 = vmatpush2.xpose.msra.mxu0 0.0
    %2086 = vmatprep.mubr.f32.mxu0 %v461
    %2087 = vmatmul.mubr.f32.gmra.mxu0 %v75
    %v2088 = vpop.f32.mrf.mxu0
    %v2089 = vadd.f32 %v1944, %v2088
    %v2090 = vpop.f32.mrf.mxu0
    %2091 = vmatprep.mubr.f32.mxu0 %v464
    %2092 = vmatmul.mubr.f32.gmra.mxu0 %v83
    %v2093 = vpop.f32.mrf.mxu0
    %v2094 = vadd.f32 %v1949, %v2093
    %v2095 = vpop.f32.mrf.mxu0
    %2096 = vmatprep.mubr.f32.mxu0 %v467
    %2097 = vmatmul.mubr.f32.gmra.mxu0 %v91
    %v2098 = vpop.f32.mrf.mxu0
    %v2099 = vadd.f32 %v1954, %v2098
    %v2100 = vpop.f32.mrf.mxu0
    %2101 = vmatprep.mubr.f32.mxu0 %v470
    %2102 = vmatmul.mubr.f32.gmra.mxu0 %v99
    %v2103 = vpop.f32.mrf.mxu0
    %v2104 = vadd.f32 %v1959, %v2103
    %v2105 = vpop.f32.mrf.mxu0
    %2106 = vmatprep.mubr.f32.mxu0 %v473
    %2107 = vmatmul.mubr.f32.gmra.mxu0 %v107
    %v2108 = vpop.f32.mrf.mxu0
    %v2109 = vadd.f32 %v1964, %v2108
    %v2110 = vpop.f32.mrf.mxu0
    %2111 = vmatprep.mubr.f32.mxu0 %v476
    %2112 = vmatmul.mubr.f32.gmra.mxu0 %v115
    %v2113 = vpop.f32.mrf.mxu0
    %v2114 = vadd.f32 %v1969, %v2113
    %v2115 = vpop.f32.mrf.mxu0
    %2116 = vmatprep.mubr.f32.mxu0 %v479
    %2117 = vmatmul.mubr.f32.gmra.mxu0 %v123
    %v2118 = vpop.f32.mrf.mxu0
    %v2119 = vadd.f32 %v1974, %v2118
    %v2120 = vpop.f32.mrf.mxu0
    %2121 = vmatprep.mubr.f32.mxu0 %v482
    %2122 = vmatmul.mubr.f32.gmra.mxu0 %v131
    %v2123 = vpop.f32.mrf.mxu0
    %v2124 = vadd.f32 %v1979, %v2123
    %v2125 = vpop.f32.mrf.mxu0
    %2126 = vmatprep.mubr.f32.mxu0 %v485
    %2127 = vmatmul.mubr.f32.gmra.mxu0 %v139
    %v2128 = vpop.f32.mrf.mxu0
    %v2129 = vadd.f32 %v1984, %v2128
    %v2130 = vpop.f32.mrf.mxu0
    %2131 = vmatprep.mubr.f32.mxu0 %v488
    %2132 = vmatmul.mubr.f32.gmra.mxu0 %v147
    %v2133 = vpop.f32.mrf.mxu0
    %v2134 = vadd.f32 %v1989, %v2133
    %v2135 = vpop.f32.mrf.mxu0
    %2136 = vmatprep.mubr.f32.mxu0 %v491
    %2137 = vmatmul.mubr.f32.gmra.mxu0 %v155
    %v2138 = vpop.f32.mrf.mxu0
    %v2139 = vadd.f32 %v1994, %v2138
    %v2140 = vpop.f32.mrf.mxu0
    %2141 = vmatprep.mubr.f32.mxu0 %v494
    %2142 = vmatmul.mubr.f32.gmra.mxu0 %v163
    %v2143 = vpop.f32.mrf.mxu0
    %v2144 = vadd.f32 %v1999, %v2143
    %v2145 = vpop.f32.mrf.mxu0
    %2146 = vmatprep.mubr.f32.mxu0 %v497
    %2147 = vmatmul.mubr.f32.gmra.mxu0 %v171
    %v2148 = vpop.f32.mrf.mxu0
    %v2149 = vadd.f32 %v2004, %v2148
    %v2150 = vpop.f32.mrf.mxu0
    %2151 = vmatprep.mubr.f32.mxu0 %v500
    %2152 = vmatmul.mubr.f32.gmra.mxu0 %v179
    %v2153 = vpop.f32.mrf.mxu0
    %v2154 = vadd.f32 %v2009, %v2153
    %v2155 = vpop.f32.mrf.mxu0
    %2156 = vmatprep.mubr.f32.mxu0 %v503
    %2157 = vmatmul.mubr.f32.gmra.mxu0 %v187
    %v2158 = vpop.f32.mrf.mxu0
    %v2159 = vadd.f32 %v2014, %v2158
    %v2160 = vpop.f32.mrf.mxu0
    %2161 = vmatprep.mubr.f32.mxu0 %v506
    %2162 = vmatmul.mubr.f32.gmra.mxu0 %v195
    %v2163 = vpop.f32.mrf.mxu0
    %v2164 = vadd.f32 %v2019, %v2163
    %v2165 = vpop.f32.mrf.mxu0
    %2166 = vdwg.mxu0
    %v2179 = vrot.slane %v2089, 1
    %v2180 = vrot.slane %v2094, 1
    %v2181 = vrot.slane %v2099, 1
    %v2182 = vrot.slane %v2104, 1
    %v2183 = vrot.slane %v2109, 1
    %v2184 = vrot.slane %v2114, 1
    %v2185 = vrot.slane %v2129, 1
    %v2186 = vrot.slane %v2134, 1
    %v2187 = vrot.slane %v2139, 1
    %v2188 = vrot.slane %v2144, 1
    %v2189 = vrot.slane %v2149, 1
    %v2190 = vrot.slane %v2154, 1
    %2191 = vrot.lane.b32.xlu0 %v2179, 127
    %v2192 = vpop.permute.xlu0 %2191
    %2193 = vrot.lane.b32.xlu0 %v2180, 127
    %v2194 = vpop.permute.xlu0 %2193
    %2195 = vrot.lane.b32.xlu0 %v2181, 127
    %v2196 = vpop.permute.xlu0 %2195
    %2197 = vrot.lane.b32.xlu0 %v2182, 127
    %v2198 = vpop.permute.xlu0 %2197
    %2199 = vrot.lane.b32.xlu0 %v2183, 127
    %v2200 = vpop.permute.xlu0 %2199
    %2201 = vrot.lane.b32.xlu0 %v2184, 127
    %v2202 = vpop.permute.xlu0 %2201
    %2203 = vrot.lane.b32.xlu0 %v2185, 127
    %v2204 = vpop.permute.xlu0 %2203
    %2205 = vrot.lane.b32.xlu0 %v2186, 127
    %v2206 = vpop.permute.xlu0 %2205
    %2207 = vrot.lane.b32.xlu0 %v2187, 127
    %v2208 = vpop.permute.xlu0 %2207
    %2209 = vrot.lane.b32.xlu0 %v2188, 127
    %v2210 = vpop.permute.xlu0 %2209
    %2211 = vrot.lane.b32.xlu0 %v2189, 127
    %v2212 = vpop.permute.xlu0 %2211
    %2213 = vrot.lane.b32.xlu0 %v2190, 127
    %v2214 = vpop.permute.xlu0 %2213
    %v2227 = vadd.f32 %v2089, %v2192
    %v2228 = vadd.f32 %v2094, %v2194
    %v2229 = vadd.f32 %v2099, %v2196
    %v2230 = vadd.f32 %v2104, %v2198
    %v2231 = vadd.f32 %v2109, %v2200
    %v2232 = vadd.f32 %v2114, %v2202
    %v2233 = vadd.f32 %v2129, %v2204
    %v2234 = vadd.f32 %v2134, %v2206
    %v2235 = vadd.f32 %v2139, %v2208
    %v2236 = vadd.f32 %v2144, %v2210
    %v2237 = vadd.f32 %v2149, %v2212
    %v2238 = vadd.f32 %v2154, %v2214
    %v2239 = vrot.slane %v2089, 2
    %v2240 = vrot.slane %v2094, 2
    %v2241 = vrot.slane %v2099, 2
    %v2242 = vrot.slane %v2104, 2
    %v2243 = vrot.slane %v2109, 2
    %v2244 = vrot.slane %v2114, 2
    %v2245 = vrot.slane %v2129, 2
    %v2246 = vrot.slane %v2134, 2
    %v2247 = vrot.slane %v2139, 2
    %v2248 = vrot.slane %v2144, 2
    %v2249 = vrot.slane %v2149, 2
    %v2250 = vrot.slane %v2154, 2
    %2251 = vrot.lane.b32.xlu0 %v2239, 126
    %v2252 = vpop.permute.xlu0 %2251
    %2253 = vrot.lane.b32.xlu0 %v2240, 126
    %v2254 = vpop.permute.xlu0 %2253
    %2255 = vrot.lane.b32.xlu0 %v2241, 126
    %v2256 = vpop.permute.xlu0 %2255
    %2257 = vrot.lane.b32.xlu0 %v2242, 126
    %v2258 = vpop.permute.xlu0 %2257
    %2259 = vrot.lane.b32.xlu0 %v2243, 126
    %v2260 = vpop.permute.xlu0 %2259
    %2261 = vrot.lane.b32.xlu0 %v2244, 126
    %v2262 = vpop.permute.xlu0 %2261
    %2263 = vrot.lane.b32.xlu0 %v2245, 126
    %v2264 = vpop.permute.xlu0 %2263
    %2265 = vrot.lane.b32.xlu0 %v2246, 126
    %v2266 = vpop.permute.xlu0 %2265
    %2267 = vrot.lane.b32.xlu0 %v2247, 126
    %v2268 = vpop.permute.xlu0 %2267
    %2269 = vrot.lane.b32.xlu0 %v2248, 126
    %v2270 = vpop.permute.xlu0 %2269
    %2271 = vrot.lane.b32.xlu0 %v2249, 126
    %v2272 = vpop.permute.xlu0 %2271
    %2273 = vrot.lane.b32.xlu0 %v2250, 126
    %v2274 = vpop.permute.xlu0 %2273
    %v2287 = vadd.f32 %v2227, %v2252
    %v2288 = vadd.f32 %v2228, %v2254
    %v2289 = vadd.f32 %v2229, %v2256
    %v2290 = vadd.f32 %v2230, %v2258
    %v2291 = vadd.f32 %v2231, %v2260
    %v2292 = vadd.f32 %v2232, %v2262
    %v2293 = vadd.f32 %v2233, %v2264
    %v2294 = vadd.f32 %v2234, %v2266
    %v2295 = vadd.f32 %v2235, %v2268
    %v2296 = vadd.f32 %v2236, %v2270
    %v2297 = vadd.f32 %v2237, %v2272
    %v2298 = vadd.f32 %v2238, %v2274
    %2301 = vrot.lane.b32.xlu0 %v2094, 125
    %v2302 = vpop.permute.xlu0 %2301
    %2303 = vrot.lane.b32.xlu0 %v2099, 125
    %v2304 = vpop.permute.xlu0 %2303
    %2305 = vrot.lane.b32.xlu0 %v2104, 125
    %v2306 = vpop.permute.xlu0 %2305
    %2307 = vrot.lane.b32.xlu0 %v2109, 125
    %v2308 = vpop.permute.xlu0 %2307
    %2309 = vrot.lane.b32.xlu0 %v2114, 125
    %v2310 = vpop.permute.xlu0 %2309
    %2311 = vrot.lane.b32.xlu0 %v2119, 125
    %v2312 = vpop.permute.xlu0 %2311
    %2313 = vrot.lane.b32.xlu0 %v2134, 125
    %v2314 = vpop.permute.xlu0 %2313
    %2315 = vrot.lane.b32.xlu0 %v2139, 125
    %v2316 = vpop.permute.xlu0 %2315
    %2317 = vrot.lane.b32.xlu0 %v2144, 125
    %v2318 = vpop.permute.xlu0 %2317
    %2319 = vrot.lane.b32.xlu0 %v2149, 125
    %v2320 = vpop.permute.xlu0 %2319
    %2321 = vrot.lane.b32.xlu0 %v2154, 125
    %v2322 = vpop.permute.xlu0 %2321
    %2323 = vrot.lane.b32.xlu0 %v2159, 125
    %v2324 = vpop.permute.xlu0 %2323
    %v2337 = vadd.f32 %v2287, %v2302
    %v2338 = vadd.f32 %v2288, %v2304
    %v2339 = vadd.f32 %v2289, %v2306
    %v2340 = vadd.f32 %v2290, %v2308
    %v2341 = vadd.f32 %v2291, %v2310
    %v2342 = vadd.f32 %v2292, %v2312
    %v2343 = vadd.f32 %v2293, %v2314
    %v2344 = vadd.f32 %v2294, %v2316
    %v2345 = vadd.f32 %v2295, %v2318
    %v2346 = vadd.f32 %v2296, %v2320
    %v2347 = vadd.f32 %v2297, %v2322
    %v2348 = vadd.f32 %v2298, %v2324
    %v2349 = vrot.slane %v2119, 1
    %v2350 = vrot.slane %v2159, 1
    %2351 = vrot.lane.b32.xlu0 %v2180, 124
    %v2352 = vpop.permute.xlu0 %2351
    %2353 = vrot.lane.b32.xlu0 %v2181, 124
    %v2354 = vpop.permute.xlu0 %2353
    %2355 = vrot.lane.b32.xlu0 %v2182, 124
    %v2356 = vpop.permute.xlu0 %2355
    %2357 = vrot.lane.b32.xlu0 %v2183, 124
    %v2358 = vpop.permute.xlu0 %2357
    %2359 = vrot.lane.b32.xlu0 %v2184, 124
    %v2360 = vpop.permute.xlu0 %2359
    %2361 = vrot.lane.b32.xlu0 %v2349, 124
    %v2362 = vpop.permute.xlu0 %2361
    %2363 = vrot.lane.b32.xlu0 %v2186, 124
    %v2364 = vpop.permute.xlu0 %2363
    %2365 = vrot.lane.b32.xlu0 %v2187, 124
    %v2366 = vpop.permute.xlu0 %2365
    %2367 = vrot.lane.b32.xlu0 %v2188, 124
    %v2368 = vpop.permute.xlu0 %2367
    %2369 = vrot.lane.b32.xlu0 %v2189, 124
    %v2370 = vpop.permute.xlu0 %2369
    %2371 = vrot.lane.b32.xlu0 %v2190, 124
    %v2372 = vpop.permute.xlu0 %2371
    %2373 = vrot.lane.b32.xlu0 %v2350, 124
    %v2374 = vpop.permute.xlu0 %2373
    %v2387 = vadd.f32 %v2337, %v2352
    %v2388 = vadd.f32 %v2338, %v2354
    %v2389 = vadd.f32 %v2339, %v2356
    %v2390 = vadd.f32 %v2340, %v2358
    %v2391 = vadd.f32 %v2341, %v2360
    %v2392 = vadd.f32 %v2342, %v2362
    %v2393 = vadd.f32 %v2343, %v2364
    %v2394 = vadd.f32 %v2344, %v2366
    %v2395 = vadd.f32 %v2345, %v2368
    %v2396 = vadd.f32 %v2346, %v2370
    %v2397 = vadd.f32 %v2347, %v2372
    %v2398 = vadd.f32 %v2348, %v2374
    %v2399 = vrot.slane %v2119, 2
    %v2400 = vrot.slane %v2159, 2
    %2401 = vrot.lane.b32.xlu0 %v2240, 123
    %v2402 = vpop.permute.xlu0 %2401
    %2403 = vrot.lane.b32.xlu0 %v2241, 123
    %v2404 = vpop.permute.xlu0 %2403
    %2405 = vrot.lane.b32.xlu0 %v2242, 123
    %v2406 = vpop.permute.xlu0 %2405
    %2407 = vrot.lane.b32.xlu0 %v2243, 123
    %v2408 = vpop.permute.xlu0 %2407
    %2409 = vrot.lane.b32.xlu0 %v2244, 123
    %v2410 = vpop.permute.xlu0 %2409
    %2411 = vrot.lane.b32.xlu0 %v2399, 123
    %v2412 = vpop.permute.xlu0 %2411
    %2413 = vrot.lane.b32.xlu0 %v2246, 123
    %v2414 = vpop.permute.xlu0 %2413
    %2415 = vrot.lane.b32.xlu0 %v2247, 123
    %v2416 = vpop.permute.xlu0 %2415
    %2417 = vrot.lane.b32.xlu0 %v2248, 123
    %v2418 = vpop.permute.xlu0 %2417
    %2419 = vrot.lane.b32.xlu0 %v2249, 123
    %v2420 = vpop.permute.xlu0 %2419
    %2421 = vrot.lane.b32.xlu0 %v2250, 123
    %v2422 = vpop.permute.xlu0 %2421
    %2423 = vrot.lane.b32.xlu0 %v2400, 123
    %v2424 = vpop.permute.xlu0 %2423
    %v2437 = vadd.f32 %v2387, %v2402
    %v2438 = vadd.f32 %v2388, %v2404
    %v2439 = vadd.f32 %v2389, %v2406
    %v2440 = vadd.f32 %v2390, %v2408
    %v2441 = vadd.f32 %v2391, %v2410
    %v2442 = vadd.f32 %v2392, %v2412
    %v2443 = vadd.f32 %v2393, %v2414
    %v2444 = vadd.f32 %v2394, %v2416
    %v2445 = vadd.f32 %v2395, %v2418
    %v2446 = vadd.f32 %v2396, %v2420
    %v2447 = vadd.f32 %v2397, %v2422
    %v2448 = vadd.f32 %v2398, %v2424
    %2451 = vrot.lane.b32.xlu0 %v2099, 122
    %v2452 = vpop.permute.xlu0 %2451
    %2453 = vrot.lane.b32.xlu0 %v2104, 122
    %v2454 = vpop.permute.xlu0 %2453
    %2455 = vrot.lane.b32.xlu0 %v2109, 122
    %v2456 = vpop.permute.xlu0 %2455
    %2457 = vrot.lane.b32.xlu0 %v2114, 122
    %v2458 = vpop.permute.xlu0 %2457
    %2459 = vrot.lane.b32.xlu0 %v2119, 122
    %v2460 = vpop.permute.xlu0 %2459
    %2461 = vrot.lane.b32.xlu0 %v2124, 122
    %v2462 = vpop.permute.xlu0 %2461
    %2463 = vrot.lane.b32.xlu0 %v2139, 122
    %v2464 = vpop.permute.xlu0 %2463
    %2465 = vrot.lane.b32.xlu0 %v2144, 122
    %v2466 = vpop.permute.xlu0 %2465
    %2467 = vrot.lane.b32.xlu0 %v2149, 122
    %v2468 = vpop.permute.xlu0 %2467
    %2469 = vrot.lane.b32.xlu0 %v2154, 122
    %v2470 = vpop.permute.xlu0 %2469
    %2471 = vrot.lane.b32.xlu0 %v2159, 122
    %v2472 = vpop.permute.xlu0 %2471
    %2473 = vrot.lane.b32.xlu0 %v2164, 122
    %v2474 = vpop.permute.xlu0 %2473
    %v2487 = vadd.f32 %v2437, %v2452
    %v2488 = vadd.f32 %v2438, %v2454
    %v2489 = vadd.f32 %v2439, %v2456
    %v2490 = vadd.f32 %v2440, %v2458
    %v2491 = vadd.f32 %v2441, %v2460
    %v2492 = vadd.f32 %v2442, %v2462
    %v2493 = vadd.f32 %v2443, %v2464
    %v2494 = vadd.f32 %v2444, %v2466
    %v2495 = vadd.f32 %v2445, %v2468
    %v2496 = vadd.f32 %v2446, %v2470
    %v2497 = vadd.f32 %v2447, %v2472
    %v2498 = vadd.f32 %v2448, %v2474
    %v2499 = vrot.slane %v2124, 1
    %v2500 = vrot.slane %v2164, 1
    %2501 = vrot.lane.b32.xlu0 %v2181, 121
    %v2502 = vpop.permute.xlu0 %2501
    %2503 = vrot.lane.b32.xlu0 %v2182, 121
    %v2504 = vpop.permute.xlu0 %2503
    %2505 = vrot.lane.b32.xlu0 %v2183, 121
    %v2506 = vpop.permute.xlu0 %2505
    %2507 = vrot.lane.b32.xlu0 %v2184, 121
    %v2508 = vpop.permute.xlu0 %2507
    %2509 = vrot.lane.b32.xlu0 %v2349, 121
    %v2510 = vpop.permute.xlu0 %2509
    %2511 = vrot.lane.b32.xlu0 %v2499, 121
    %v2512 = vpop.permute.xlu0 %2511
    %2513 = vrot.lane.b32.xlu0 %v2187, 121
    %v2514 = vpop.permute.xlu0 %2513
    %2515 = vrot.lane.b32.xlu0 %v2188, 121
    %v2516 = vpop.permute.xlu0 %2515
    %2517 = vrot.lane.b32.xlu0 %v2189, 121
    %v2518 = vpop.permute.xlu0 %2517
    %2519 = vrot.lane.b32.xlu0 %v2190, 121
    %v2520 = vpop.permute.xlu0 %2519
    %2521 = vrot.lane.b32.xlu0 %v2350, 121
    %v2522 = vpop.permute.xlu0 %2521
    %2523 = vrot.lane.b32.xlu0 %v2500, 121
    %v2524 = vpop.permute.xlu0 %2523
    %v2537 = vadd.f32 %v2487, %v2502
    %v2538 = vadd.f32 %v2488, %v2504
    %v2539 = vadd.f32 %v2489, %v2506
    %v2540 = vadd.f32 %v2490, %v2508
    %v2541 = vadd.f32 %v2491, %v2510
    %v2542 = vadd.f32 %v2492, %v2512
    %v2543 = vadd.f32 %v2493, %v2514
    %v2544 = vadd.f32 %v2494, %v2516
    %v2545 = vadd.f32 %v2495, %v2518
    %v2546 = vadd.f32 %v2496, %v2520
    %v2547 = vadd.f32 %v2497, %v2522
    %v2548 = vadd.f32 %v2498, %v2524
    %v2549 = vrot.slane %v2124, 2
    %v2550 = vrot.slane %v2164, 2
    %2551 = vrot.lane.b32.xlu0 %v2241, 120
    %v2552 = vpop.permute.xlu0 %2551
    %2553 = vrot.lane.b32.xlu0 %v2242, 120
    %v2554 = vpop.permute.xlu0 %2553
    %2555 = vrot.lane.b32.xlu0 %v2243, 120
    %v2556 = vpop.permute.xlu0 %2555
    %2557 = vrot.lane.b32.xlu0 %v2244, 120
    %v2558 = vpop.permute.xlu0 %2557
    %2559 = vrot.lane.b32.xlu0 %v2399, 120
    %v2560 = vpop.permute.xlu0 %2559
    %2561 = vrot.lane.b32.xlu0 %v2549, 120
    %v2562 = vpop.permute.xlu0 %2561
    %2563 = vrot.lane.b32.xlu0 %v2247, 120
    %v2564 = vpop.permute.xlu0 %2563
    %2565 = vrot.lane.b32.xlu0 %v2248, 120
    %v2566 = vpop.permute.xlu0 %2565
    %2567 = vrot.lane.b32.xlu0 %v2249, 120
    %v2568 = vpop.permute.xlu0 %2567
    %2569 = vrot.lane.b32.xlu0 %v2250, 120
    %v2570 = vpop.permute.xlu0 %2569
    %2571 = vrot.lane.b32.xlu0 %v2400, 120
    %v2572 = vpop.permute.xlu0 %2571
    %2573 = vrot.lane.b32.xlu0 %v2550, 120
    %v2574 = vpop.permute.xlu0 %2573
    %v2587 = vadd.f32 %v2537, %v2552
    %v2588 = vadd.f32 %v2538, %v2554
    %v2589 = vadd.f32 %v2539, %v2556
    %v2590 = vadd.f32 %v2540, %v2558
    %v2591 = vadd.f32 %v2541, %v2560
    %v2592 = vadd.f32 %v2542, %v2562
    %v2593 = vadd.f32 %v2543, %v2564
    %v2594 = vadd.f32 %v2544, %v2566
    %v2595 = vadd.f32 %v2545, %v2568
    %v2596 = vadd.f32 %v2546, %v2570
    %v2597 = vadd.f32 %v2547, %v2572
    %v2598 = vadd.f32 %v2548, %v2574
    %v2599 = vld [vmem:[#allocation2] sm:$0x1]
    %v2601 = vlaneseq
    %v2602 = vshrl.u32 %v2601, 7
    %v2603 = vsub.s32 0, %v2602
    %v2604 = vrot.slane %v2599, %v2603
    %v2606 = vadd.f32 %v2587, %v2604
    %v2607 = vadd.f32 %v2588, %v2604
    %v2608 = vadd.f32 %v2589, %v2604
    %v2609 = vadd.f32 %v2590, %v2604
    %v2610 = vadd.f32 %v2591, %v2604
    %v2611 = vadd.f32 %v2592, %v2604
    %v2612 = vadd.f32 %v2593, %v2604
    %v2613 = vadd.f32 %v2594, %v2604
    %v2614 = vadd.f32 %v2595, %v2604
    %v2615 = vadd.f32 %v2596, %v2604
    %v2616 = vadd.f32 %v2597, %v2604
    %v2617 = vadd.f32 %v2598, %v2604
    %vm2618 = vcmask 5120
    %v2619 = vsel %vm2618, %v2606, 0.0
    %v2620 = vrot.slane %v2619, 4
    %v2621 = vadd.f32 %v2619, %v2620
    %v2622 = vrot.slane %v2621, 2
    %v2623 = vadd.f32 %v2621, %v2622
    %v2624 = vrot.slane %v2623, 1
    %v2625 = vadd.f32 %v2623, %v2624
    %v2626 = vsel %vm2618, %v2607, 0.0
    %v2627 = vrot.slane %v2626, 4
    %v2628 = vadd.f32 %v2626, %v2627
    %v2629 = vrot.slane %v2628, 2
    %v2630 = vadd.f32 %v2628, %v2629
    %v2631 = vrot.slane %v2630, 1
    %v2632 = vadd.f32 %v2630, %v2631
    %v2633 = vsel %vm2618, %v2608, 0.0
    %v2634 = vrot.slane %v2633, 4
    %v2635 = vadd.f32 %v2633, %v2634
    %v2636 = vrot.slane %v2635, 2
    %v2637 = vadd.f32 %v2635, %v2636
    %v2638 = vrot.slane %v2637, 1
    %v2639 = vadd.f32 %v2637, %v2638
    %v2640 = vsel %vm2618, %v2609, 0.0
    %v2641 = vrot.slane %v2640, 4
    %v2642 = vadd.f32 %v2640, %v2641
    %v2643 = vrot.slane %v2642, 2
    %v2644 = vadd.f32 %v2642, %v2643
    %v2645 = vrot.slane %v2644, 1
    %v2646 = vadd.f32 %v2644, %v2645
    %v2647 = vsel %vm2618, %v2610, 0.0
    %v2648 = vrot.slane %v2647, 4
    %v2649 = vadd.f32 %v2647, %v2648
    %v2650 = vrot.slane %v2649, 2
    %v2651 = vadd.f32 %v2649, %v2650
    %v2652 = vrot.slane %v2651, 1
    %v2653 = vadd.f32 %v2651, %v2652
    %v2654 = vsel %vm2618, %v2611, 0.0
    %v2655 = vrot.slane %v2654, 4
    %v2656 = vadd.f32 %v2654, %v2655
    %v2657 = vrot.slane %v2656, 2
    %v2658 = vadd.f32 %v2656, %v2657
    %v2659 = vrot.slane %v2658, 1
    %v2660 = vadd.f32 %v2658, %v2659
    %v2661 = vsel %vm2618, %v2612, 0.0
    %v2662 = vrot.slane %v2661, 4
    %v2663 = vadd.f32 %v2661, %v2662
    %v2664 = vrot.slane %v2663, 2
    %v2665 = vadd.f32 %v2663, %v2664
    %v2666 = vrot.slane %v2665, 1
    %v2667 = vadd.f32 %v2665, %v2666
    %v2668 = vsel %vm2618, %v2613, 0.0
    %v2669 = vrot.slane %v2668, 4
    %v2670 = vadd.f32 %v2668, %v2669
    %v2671 = vrot.slane %v2670, 2
    %v2672 = vadd.f32 %v2670, %v2671
    %v2673 = vrot.slane %v2672, 1
    %v2674 = vadd.f32 %v2672, %v2673
    %v2675 = vsel %vm2618, %v2614, 0.0
    %v2676 = vrot.slane %v2675, 4
    %v2677 = vadd.f32 %v2675, %v2676
    %v2678 = vrot.slane %v2677, 2
    %v2679 = vadd.f32 %v2677, %v2678
    %v2680 = vrot.slane %v2679, 1
    %v2681 = vadd.f32 %v2679, %v2680
    %v2682 = vsel %vm2618, %v2615, 0.0
    %v2683 = vrot.slane %v2682, 4
    %v2684 = vadd.f32 %v2682, %v2683
    %v2685 = vrot.slane %v2684, 2
    %v2686 = vadd.f32 %v2684, %v2685
    %v2687 = vrot.slane %v2686, 1
    %v2688 = vadd.f32 %v2686, %v2687
    %v2689 = vsel %vm2618, %v2616, 0.0
    %v2690 = vrot.slane %v2689, 4
    %v2691 = vadd.f32 %v2689, %v2690
    %v2692 = vrot.slane %v2691, 2
    %v2693 = vadd.f32 %v2691, %v2692
    %v2694 = vrot.slane %v2693, 1
    %v2695 = vadd.f32 %v2693, %v2694
    %v2696 = vsel %vm2618, %v2617, 0.0
    %v2697 = vrot.slane %v2696, 4
    %v2698 = vadd.f32 %v2696, %v2697
    %v2699 = vrot.slane %v2698, 2
    %v2700 = vadd.f32 %v2698, %v2699
    %v2701 = vrot.slane %v2700, 1
    %v2702 = vadd.f32 %v2700, %v2701
    %v2703 = vrcp.pop 6.0
    %v2704 = vmul.f32 %v2625, %v2703
    %v2705 = vmul.f32 %v2632, %v2703
    %v2706 = vmul.f32 %v2639, %v2703
    %v2707 = vmul.f32 %v2646, %v2703
    %v2708 = vmul.f32 %v2653, %v2703
    %v2709 = vmul.f32 %v2660, %v2703
    %v2710 = vmul.f32 %v2667, %v2703
    %v2711 = vmul.f32 %v2674, %v2703
    %v2712 = vmul.f32 %v2681, %v2703
    %v2713 = vmul.f32 %v2688, %v2703
    %v2714 = vmul.f32 %v2695, %v2703
    %v2715 = vmul.f32 %v2702, %v2703
    %vm2716 = vcmask 7168
    %v2717 = vsel %vm2716, %v2704, 0.0
    %v2718 = vsel %vm2716, %v2705, 0.0
    %v2719 = vadd.f32 %v2717, %v2718
    %v2720 = vsel %vm2716, %v2706, 0.0
    %v2721 = vadd.f32 %v2719, %v2720
    %v2722 = vsel %vm2716, %v2707, 0.0
    %v2723 = vadd.f32 %v2721, %v2722
    %v2724 = vsel %vm2716, %v2708, 0.0
    %v2725 = vadd.f32 %v2723, %v2724
    %v2726 = vsel %vm2716, %v2709, 0.0
    %v2727 = vadd.f32 %v2725, %v2726
    %v2728 = vsel %vm2716, %v2710, 0.0
    %v2729 = vsel %vm2716, %v2711, 0.0
    %v2730 = vadd.f32 %v2728, %v2729
    %v2731 = vsel %vm2716, %v2712, 0.0
    %v2732 = vadd.f32 %v2730, %v2731
    %v2733 = vsel %vm2716, %v2713, 0.0
    %v2734 = vadd.f32 %v2732, %v2733
    %v2735 = vsel %vm2716, %v2714, 0.0
    %v2736 = vadd.f32 %v2734, %v2735
    %v2737 = vsel %vm2716, %v2715, 0.0
    %v2738 = vadd.f32 %v2736, %v2737
    %v2739 = vmul.f32 %v2727, %v2703
    %v2740 = vmul.f32 %v2738, %v2703
    %v2741 = vsel %vm2716, %v2739, 0.0
    %v2742 = vsel %vm2716, %v2740, 0.0
    %v2743 = vadd.f32 %v2741, %v2742
    %v2744 = vrcp.pop 2.0
    %v2745 = vmul.f32 %v2743, %v2744
    %v2746 = vsub.f32 %v2606, %v2745
    %v2747 = vsub.f32 %v2607, %v2745
    %v2748 = vsub.f32 %v2608, %v2745
    %v2749 = vsub.f32 %v2609, %v2745
    %v2750 = vsub.f32 %v2610, %v2745
    %v2751 = vsub.f32 %v2611, %v2745
    %v2752 = vsub.f32 %v2612, %v2745
    %v2753 = vsub.f32 %v2613, %v2745
    %v2754 = vsub.f32 %v2614, %v2745
    %v2755 = vsub.f32 %v2615, %v2745
    %v2756 = vsub.f32 %v2616, %v2745
    %v2757 = vsub.f32 %v2617, %v2745
    %v2758 = vmul.f32 %v2746, %v2746
    %v2759 = vmul.f32 %v2747, %v2747
    %v2760 = vmul.f32 %v2748, %v2748
    %v2761 = vmul.f32 %v2749, %v2749
    %v2762 = vmul.f32 %v2750, %v2750
    %v2763 = vmul.f32 %v2751, %v2751
    %v2764 = vmul.f32 %v2752, %v2752
    %v2765 = vmul.f32 %v2753, %v2753
    %v2766 = vmul.f32 %v2754, %v2754
    %v2767 = vmul.f32 %v2755, %v2755
    %v2768 = vmul.f32 %v2756, %v2756
    %v2769 = vmul.f32 %v2757, %v2757
    %v2770 = vsel %vm2618, %v2758, 0.0
    %v2771 = vrot.slane %v2770, 4
    %v2772 = vadd.f32 %v2770, %v2771
    %v2773 = vrot.slane %v2772, 2
    %v2774 = vadd.f32 %v2772, %v2773
    %v2775 = vrot.slane %v2774, 1
    %v2776 = vadd.f32 %v2774, %v2775
    %v2777 = vsel %vm2618, %v2759, 0.0
    %v2778 = vrot.slane %v2777, 4
    %v2779 = vadd.f32 %v2777, %v2778
    %v2780 = vrot.slane %v2779, 2
    %v2781 = vadd.f32 %v2779, %v2780
    %v2782 = vrot.slane %v2781, 1
    %v2783 = vadd.f32 %v2781, %v2782
    %v2784 = vsel %vm2618, %v2760, 0.0
    %v2785 = vrot.slane %v2784, 4
    %v2786 = vadd.f32 %v2784, %v2785
    %v2787 = vrot.slane %v2786, 2
    %v2788 = vadd.f32 %v2786, %v2787
    %v2789 = vrot.slane %v2788, 1
    %v2790 = vadd.f32 %v2788, %v2789
    %v2791 = vsel %vm2618, %v2761, 0.0
    %v2792 = vrot.slane %v2791, 4
    %v2793 = vadd.f32 %v2791, %v2792
    %v2794 = vrot.slane %v2793, 2
    %v2795 = vadd.f32 %v2793, %v2794
    %v2796 = vrot.slane %v2795, 1
    %v2797 = vadd.f32 %v2795, %v2796
    %v2798 = vsel %vm2618, %v2762, 0.0
    %v2799 = vrot.slane %v2798, 4
    %v2800 = vadd.f32 %v2798, %v2799
    %v2801 = vrot.slane %v2800, 2
    %v2802 = vadd.f32 %v2800, %v2801
    %v2803 = vrot.slane %v2802, 1
    %v2804 = vadd.f32 %v2802, %v2803
    %v2805 = vsel %vm2618, %v2763, 0.0
    %v2806 = vrot.slane %v2805, 4
    %v2807 = vadd.f32 %v2805, %v2806
    %v2808 = vrot.slane %v2807, 2
    %v2809 = vadd.f32 %v2807, %v2808
    %v2810 = vrot.slane %v2809, 1
    %v2811 = vadd.f32 %v2809, %v2810
    %v2812 = vsel %vm2618, %v2764, 0.0
    %v2813 = vrot.slane %v2812, 4
    %v2814 = vadd.f32 %v2812, %v2813
    %v2815 = vrot.slane %v2814, 2
    %v2816 = vadd.f32 %v2814, %v2815
    %v2817 = vrot.slane %v2816, 1
    %v2818 = vadd.f32 %v2816, %v2817
    %v2819 = vsel %vm2618, %v2765, 0.0
    %v2820 = vrot.slane %v2819, 4
    %v2821 = vadd.f32 %v2819, %v2820
    %v2822 = vrot.slane %v2821, 2
    %v2823 = vadd.f32 %v2821, %v2822
    %v2824 = vrot.slane %v2823, 1
    %v2825 = vadd.f32 %v2823, %v2824
    %v2826 = vsel %vm2618, %v2766, 0.0
    %v2827 = vrot.slane %v2826, 4
    %v2828 = vadd.f32 %v2826, %v2827
    %v2829 = vrot.slane %v2828, 2
    %v2830 = vadd.f32 %v2828, %v2829
    %v2831 = vrot.slane %v2830, 1
    %v2832 = vadd.f32 %v2830, %v2831
    %v2833 = vsel %vm2618, %v2767, 0.0
    %v2834 = vrot.slane %v2833, 4
    %v2835 = vadd.f32 %v2833, %v2834
    %v2836 = vrot.slane %v2835, 2
    %v2837 = vadd.f32 %v2835, %v2836
    %v2838 = vrot.slane %v2837, 1
    %v2839 = vadd.f32 %v2837, %v2838
    %v2840 = vsel %vm2618, %v2768, 0.0
    %v2841 = vrot.slane %v2840, 4
    %v2842 = vadd.f32 %v2840, %v2841
    %v2843 = vrot.slane %v2842, 2
    %v2844 = vadd.f32 %v2842, %v2843
    %v2845 = vrot.slane %v2844, 1
    %v2846 = vadd.f32 %v2844, %v2845
    %v2847 = vsel %vm2618, %v2769, 0.0
    %v2848 = vrot.slane %v2847, 4
    %v2849 = vadd.f32 %v2847, %v2848
    %v2850 = vrot.slane %v2849, 2
    %v2851 = vadd.f32 %v2849, %v2850
    %v2852 = vrot.slane %v2851, 1
    %v2853 = vadd.f32 %v2851, %v2852
    %v2854 = vmul.f32 %v2776, %v2703
    %v2855 = vmul.f32 %v2783, %v2703
    %v2856 = vmul.f32 %v2790, %v2703
    %v2857 = vmul.f32 %v2797, %v2703
    %v2858 = vmul.f32 %v2804, %v2703
    %v2859 = vmul.f32 %v2811, %v2703
    %v2860 = vmul.f32 %v2818, %v2703
    %v2861 = vmul.f32 %v2825, %v2703
    %v2862 = vmul.f32 %v2832, %v2703
    %v2863 = vmul.f32 %v2839, %v2703
    %v2864 = vmul.f32 %v2846, %v2703
    %v2865 = vmul.f32 %v2853, %v2703
    %v2866 = vsel %vm2716, %v2854, 0.0
    %v2867 = vsel %vm2716, %v2855, 0.0
    %v2868 = vadd.f32 %v2866, %v2867
    %v2869 = vsel %vm2716, %v2856, 0.0
    %v2870 = vadd.f32 %v2868, %v2869
    %v2871 = vsel %vm2716, %v2857, 0.0
    %v2872 = vadd.f32 %v2870, %v2871
    %v2873 = vsel %vm2716, %v2858, 0.0
    %v2874 = vadd.f32 %v2872, %v2873
    %v2875 = vsel %vm2716, %v2859, 0.0
    %v2876 = vadd.f32 %v2874, %v2875
    %v2877 = vsel %vm2716, %v2860, 0.0
    %v2878 = vsel %vm2716, %v2861, 0.0
    %v2879 = vadd.f32 %v2877, %v2878
    %v2880 = vsel %vm2716, %v2862, 0.0
    %v2881 = vadd.f32 %v2879, %v2880
    %v2882 = vsel %vm2716, %v2863, 0.0
    %v2883 = vadd.f32 %v2881, %v2882
    %v2884 = vsel %vm2716, %v2864, 0.0
    %v2885 = vadd.f32 %v2883, %v2884
    %v2886 = vsel %vm2716, %v2865, 0.0
    %v2887 = vadd.f32 %v2885, %v2886
    %v2888 = vmul.f32 %v2876, %v2703
    %v2889 = vmul.f32 %v2887, %v2703
    %v2890 = vsel %vm2716, %v2888, 0.0
    %v2891 = vsel %vm2716, %v2889, 0.0
    %v2892 = vadd.f32 %v2890, %v2891
    %v2893 = vmul.f32 %v2892, %v2744
    %v2894 = vld [vmem:[#allocation3] sm:$0x1]
    %v2895 = vadd.f32 %v2893, 1e-05
    %v2896 = vrsqrt.pop %v2895
    %v2897 = vmul.f32 %v2894, %v2896
    %v2899 = vlaneseq
    %v2900 = vshrl.u32 %v2899, 7
    %v2901 = vsub.s32 0, %v2900
    %v2902 = vrot.slane %v2897, %v2901
    %v2904 = vmul.f32 %v2746, %v2902
    %v2905 = vmul.f32 %v2747, %v2902
    %v2906 = vmul.f32 %v2748, %v2902
    %v2907 = vmul.f32 %v2749, %v2902
    %v2908 = vmul.f32 %v2750, %v2902
    %v2909 = vmul.f32 %v2751, %v2902
    %v2910 = vmul.f32 %v2752, %v2902
    %v2911 = vmul.f32 %v2753, %v2902
    %v2912 = vmul.f32 %v2754, %v2902
    %v2913 = vmul.f32 %v2755, %v2902
    %v2914 = vmul.f32 %v2756, %v2902
    %v2915 = vmul.f32 %v2757, %v2902
    %v2916 = vld [vmem:[#allocation4] sm:$0x1]
    %v2918 = vlaneseq
    %v2919 = vshrl.u32 %v2918, 7
    %v2920 = vsub.s32 0, %v2919
    %v2921 = vrot.slane %v2916, %v2920
    %v2923 = vadd.f32 %v2904, %v2921
    %v2924 = vadd.f32 %v2905, %v2921
    %v2925 = vadd.f32 %v2906, %v2921
    %v2926 = vadd.f32 %v2907, %v2921
    %v2927 = vadd.f32 %v2908, %v2921
    %v2928 = vadd.f32 %v2909, %v2921
    %v2929 = vadd.f32 %v2910, %v2921
    %v2930 = vadd.f32 %v2911, %v2921
    %v2931 = vadd.f32 %v2912, %v2921
    %v2932 = vadd.f32 %v2913, %v2921
    %v2933 = vadd.f32 %v2914, %v2921
    %v2934 = vadd.f32 %v2915, %v2921
    %v2935 = vsel %vm2618, %v2923, -inf
    %v2936 = vrot.slane %v2935, 4
    %v2937 = vmax.f32 %v2935, %v2936
    %v2938 = vrot.slane %v2937, 2
    %v2939 = vmax.f32 %v2937, %v2938
    %v2940 = vrot.slane %v2939, 1
    %v2941 = vmax.f32 %v2939, %v2940
    %v2942 = vsel %vm2618, %v2924, -inf
    %v2943 = vrot.slane %v2942, 4
    %v2944 = vmax.f32 %v2942, %v2943
    %v2945 = vrot.slane %v2944, 2
    %v2946 = vmax.f32 %v2944, %v2945
    %v2947 = vrot.slane %v2946, 1
    %v2948 = vmax.f32 %v2946, %v2947
    %v2949 = vsel %vm2618, %v2925, -inf
    %v2950 = vrot.slane %v2949, 4
    %v2951 = vmax.f32 %v2949, %v2950
    %v2952 = vrot.slane %v2951, 2
    %v2953 = vmax.f32 %v2951, %v2952
    %v2954 = vrot.slane %v2953, 1
    %v2955 = vmax.f32 %v2953, %v2954
    %v2956 = vsel %vm2618, %v2926, -inf
    %v2957 = vrot.slane %v2956, 4
    %v2958 = vmax.f32 %v2956, %v2957
    %v2959 = vrot.slane %v2958, 2
    %v2960 = vmax.f32 %v2958, %v2959
    %v2961 = vrot.slane %v2960, 1
    %v2962 = vmax.f32 %v2960, %v2961
    %v2963 = vsel %vm2618, %v2927, -inf
    %v2964 = vrot.slane %v2963, 4
    %v2965 = vmax.f32 %v2963, %v2964
    %v2966 = vrot.slane %v2965, 2
    %v2967 = vmax.f32 %v2965, %v2966
    %v2968 = vrot.slane %v2967, 1
    %v2969 = vmax.f32 %v2967, %v2968
    %v2970 = vsel %vm2618, %v2928, -inf
    %v2971 = vrot.slane %v2970, 4
    %v2972 = vmax.f32 %v2970, %v2971
    %v2973 = vrot.slane %v2972, 2
    %v2974 = vmax.f32 %v2972, %v2973
    %v2975 = vrot.slane %v2974, 1
    %v2976 = vmax.f32 %v2974, %v2975
    %v2977 = vsel %vm2618, %v2929, -inf
    %v2978 = vrot.slane %v2977, 4
    %v2979 = vmax.f32 %v2977, %v2978
    %v2980 = vrot.slane %v2979, 2
    %v2981 = vmax.f32 %v2979, %v2980
    %v2982 = vrot.slane %v2981, 1
    %v2983 = vmax.f32 %v2981, %v2982
    %v2984 = vsel %vm2618, %v2930, -inf
    %v2985 = vrot.slane %v2984, 4
    %v2986 = vmax.f32 %v2984, %v2985
    %v2987 = vrot.slane %v2986, 2
    %v2988 = vmax.f32 %v2986, %v2987
    %v2989 = vrot.slane %v2988, 1
    %v2990 = vmax.f32 %v2988, %v2989
    %v2991 = vsel %vm2618, %v2931, -inf
    %v2992 = vrot.slane %v2991, 4
    %v2993 = vmax.f32 %v2991, %v2992
    %v2994 = vrot.slane %v2993, 2
    %v2995 = vmax.f32 %v2993, %v2994
    %v2996 = vrot.slane %v2995, 1
    %v2997 = vmax.f32 %v2995, %v2996
    %v2998 = vsel %vm2618, %v2932, -inf
    %v2999 = vrot.slane %v2998, 4
    %v3000 = vmax.f32 %v2998, %v2999
    %v3001 = vrot.slane %v3000, 2
    %v3002 = vmax.f32 %v3000, %v3001
    %v3003 = vrot.slane %v3002, 1
    %v3004 = vmax.f32 %v3002, %v3003
    %v3005 = vsel %vm2618, %v2933, -inf
    %v3006 = vrot.slane %v3005, 4
    %v3007 = vmax.f32 %v3005, %v3006
    %v3008 = vrot.slane %v3007, 2
    %v3009 = vmax.f32 %v3007, %v3008
    %v3010 = vrot.slane %v3009, 1
    %v3011 = vmax.f32 %v3009, %v3010
    %v3012 = vsel %vm2618, %v2934, -inf
    %v3013 = vrot.slane %v3012, 4
    %v3014 = vmax.f32 %v3012, %v3013
    %v3015 = vrot.slane %v3014, 2
    %v3016 = vmax.f32 %v3014, %v3015
    %v3017 = vrot.slane %v3016, 1
    %v3018 = vmax.f32 %v3016, %v3017
    %v3019 = vsub.f32 %v2923, %v2941
    %v3020 = vsub.f32 %v2924, %v2948
    %v3021 = vsub.f32 %v2925, %v2955
    %v3022 = vsub.f32 %v2926, %v2962
    %v3023 = vsub.f32 %v2927, %v2969
    %v3024 = vsub.f32 %v2928, %v2976
    %v3025 = vsub.f32 %v2929, %v2983
    %v3026 = vsub.f32 %v2930, %v2990
    %v3027 = vsub.f32 %v2931, %v2997
    %v3028 = vsub.f32 %v2932, %v3004
    %v3029 = vsub.f32 %v2933, %v3011
    %v3030 = vsub.f32 %v2934, %v3018
    %v3031 = vmul.f32 %v3019, 1.442695
    %v3032 = vpow.pop %v3031
    %v3033 = vmul.f32 %v3020, 1.442695
    %v3034 = vpow.pop %v3033
    %v3035 = vmul.f32 %v3021, 1.442695
    %v3036 = vpow.pop %v3035
    %v3037 = vmul.f32 %v3022, 1.442695
    %v3038 = vpow.pop %v3037
    %v3039 = vmul.f32 %v3023, 1.442695
    %v3040 = vpow.pop %v3039
    %v3041 = vmul.f32 %v3024, 1.442695
    %v3042 = vpow.pop %v3041
    %v3043 = vmul.f32 %v3025, 1.442695
    %v3044 = vpow.pop %v3043
    %v3045 = vmul.f32 %v3026, 1.442695
    %v3046 = vpow.pop %v3045
    %v3047 = vmul.f32 %v3027, 1.442695
    %v3048 = vpow.pop %v3047
    %v3049 = vmul.f32 %v3028, 1.442695
    %v3050 = vpow.pop %v3049
    %v3051 = vmul.f32 %v3029, 1.442695
    %v3052 = vpow.pop %v3051
    %v3053 = vmul.f32 %v3030, 1.442695
    %v3054 = vpow.pop %v3053
    %v3055 = vsel %vm2618, %v3032, 0.0
    %v3056 = vrot.slane %v3055, 4
    %v3057 = vadd.f32 %v3055, %v3056
    %v3058 = vrot.slane %v3057, 2
    %v3059 = vadd.f32 %v3057, %v3058
    %v3060 = vrot.slane %v3059, 1
    %v3061 = vadd.f32 %v3059, %v3060
    %v3062 = vsel %vm2618, %v3034, 0.0
    %v3063 = vrot.slane %v3062, 4
    %v3064 = vadd.f32 %v3062, %v3063
    %v3065 = vrot.slane %v3064, 2
    %v3066 = vadd.f32 %v3064, %v3065
    %v3067 = vrot.slane %v3066, 1
    %v3068 = vadd.f32 %v3066, %v3067
    %v3069 = vsel %vm2618, %v3036, 0.0
    %v3070 = vrot.slane %v3069, 4
    %v3071 = vadd.f32 %v3069, %v3070
    %v3072 = vrot.slane %v3071, 2
    %v3073 = vadd.f32 %v3071, %v3072
    %v3074 = vrot.slane %v3073, 1
    %v3075 = vadd.f32 %v3073, %v3074
    %v3076 = vsel %vm2618, %v3038, 0.0
    %v3077 = vrot.slane %v3076, 4
    %v3078 = vadd.f32 %v3076, %v3077
    %v3079 = vrot.slane %v3078, 2
    %v3080 = vadd.f32 %v3078, %v3079
    %v3081 = vrot.slane %v3080, 1
    %v3082 = vadd.f32 %v3080, %v3081
    %v3083 = vsel %vm2618, %v3040, 0.0
    %v3084 = vrot.slane %v3083, 4
    %v3085 = vadd.f32 %v3083, %v3084
    %v3086 = vrot.slane %v3085, 2
    %v3087 = vadd.f32 %v3085, %v3086
    %v3088 = vrot.slane %v3087, 1
    %v3089 = vadd.f32 %v3087, %v3088
    %v3090 = vsel %vm2618, %v3042, 0.0
    %v3091 = vrot.slane %v3090, 4
    %v3092 = vadd.f32 %v3090, %v3091
    %v3093 = vrot.slane %v3092, 2
    %v3094 = vadd.f32 %v3092, %v3093
    %v3095 = vrot.slane %v3094, 1
    %v3096 = vadd.f32 %v3094, %v3095
    %v3097 = vsel %vm2618, %v3044, 0.0
    %v3098 = vrot.slane %v3097, 4
    %v3099 = vadd.f32 %v3097, %v3098
    %v3100 = vrot.slane %v3099, 2
    %v3101 = vadd.f32 %v3099, %v3100
    %v3102 = vrot.slane %v3101, 1
    %v3103 = vadd.f32 %v3101, %v3102
    %v3104 = vsel %vm2618, %v3046, 0.0
    %v3105 = vrot.slane %v3104, 4
    %v3106 = vadd.f32 %v3104, %v3105
    %v3107 = vrot.slane %v3106, 2
    %v3108 = vadd.f32 %v3106, %v3107
    %v3109 = vrot.slane %v3108, 1
    %v3110 = vadd.f32 %v3108, %v3109
    %v3111 = vsel %vm2618, %v3048, 0.0
    %v3112 = vrot.slane %v3111, 4
    %v3113 = vadd.f32 %v3111, %v3112
    %v3114 = vrot.slane %v3113, 2
    %v3115 = vadd.f32 %v3113, %v3114
    %v3116 = vrot.slane %v3115, 1
    %v3117 = vadd.f32 %v3115, %v3116
    %v3118 = vsel %vm2618, %v3050, 0.0
    %v3119 = vrot.slane %v3118, 4
    %v3120 = vadd.f32 %v3118, %v3119
    %v3121 = vrot.slane %v3120, 2
    %v3122 = vadd.f32 %v3120, %v3121
    %v3123 = vrot.slane %v3122, 1
    %v3124 = vadd.f32 %v3122, %v3123
    %v3125 = vsel %vm2618, %v3052, 0.0
    %v3126 = vrot.slane %v3125, 4
    %v3127 = vadd.f32 %v3125, %v3126
    %v3128 = vrot.slane %v3127, 2
    %v3129 = vadd.f32 %v3127, %v3128
    %v3130 = vrot.slane %v3129, 1
    %v3131 = vadd.f32 %v3129, %v3130
    %v3132 = vsel %vm2618, %v3054, 0.0
    %v3133 = vrot.slane %v3132, 4
    %v3134 = vadd.f32 %v3132, %v3133
    %v3135 = vrot.slane %v3134, 2
    %v3136 = vadd.f32 %v3134, %v3135
    %v3137 = vrot.slane %v3136, 1
    %v3138 = vadd.f32 %v3136, %v3137
    %v3139 = vrcp.pop %v3061
    %v3140 = vmul.f32 %v3032, %v3139
    %v3141 = vrcp.pop %v3068
    %v3142 = vmul.f32 %v3034, %v3141
    %v3143 = vrcp.pop %v3075
    %v3144 = vmul.f32 %v3036, %v3143
    %v3145 = vrcp.pop %v3082
    %v3146 = vmul.f32 %v3038, %v3145
    %v3147 = vrcp.pop %v3089
    %v3148 = vmul.f32 %v3040, %v3147
    %v3149 = vrcp.pop %v3096
    %v3150 = vmul.f32 %v3042, %v3149
    %v3151 = vrcp.pop %v3103
    %v3152 = vmul.f32 %v3044, %v3151
    %v3153 = vrcp.pop %v3110
    %v3154 = vmul.f32 %v3046, %v3153
    %v3155 = vrcp.pop %v3117
    %v3156 = vmul.f32 %v3048, %v3155
    %v3157 = vrcp.pop %v3124
    %v3158 = vmul.f32 %v3050, %v3157
    %v3159 = vrcp.pop %v3131
    %v3160 = vmul.f32 %v3052, %v3159
    %v3161 = vrcp.pop %v3138
    %v3162 = vmul.f32 %v3054, %v3161
    %3163 = vst.msk [vmem:[%s10] sm:$0x3f] %vm2618, %v3140
    %3164 = vst.msk [vmem:[%s10 + $0x8] sm:$0x3f] %vm2618, %v3142
    %3165 = vst.msk [vmem:[%s10 + $0x10] sm:$0x3f] %vm2618, %v3144
    %3166 = vst.msk [vmem:[%s10 + $0x18] sm:$0x3f] %vm2618, %v3146
    %3167 = vst.msk [vmem:[%s10 + $0x20] sm:$0x3f] %vm2618, %v3148
    %3168 = vst.msk [vmem:[%s10 + $0x28] sm:$0x3f] %vm2618, %v3150
    %3169 = vst.msk [vmem:[%s10 + $0x30] sm:$0x3f] %vm2618, %v3152
    %3170 = vst.msk [vmem:[%s10 + $0x38] sm:$0x3f] %vm2618, %v3154
    %3171 = vst.msk [vmem:[%s10 + $0x40] sm:$0x3f] %vm2618, %v3156
    %3172 = vst.msk [vmem:[%s10 + $0x48] sm:$0x3f] %vm2618, %v3158
    %3173 = vst.msk [vmem:[%s10 + $0x50] sm:$0x3f] %vm2618, %v3160
    %3174 = vst.msk [vmem:[%s10 + $0x58] sm:$0x3f] %vm2618, %v3162
    // Predicated region
    $region50: #{tpu_custom_call.1} parent=1 // pred_check
      _
    $region51: #{tpu_custom_call.1} parent=1 // pred_check_branch
      %3176 = sbr.rel (0) target = $region53
    $region52: #{tpu_custom_call.1} parent=1 // pred_region
      _
    $region53: #{tpu_custom_call.1} parent=1 // pred_fallthru
      _
    // Predicated region
    $region54: #{tpu_custom_call.1} parent=1 // pred_check
      _
    $region55: #{tpu_custom_call.1} parent=1 // pred_check_branch
      %3178 = sbr.rel (0) target = $region57
    $region56: #{tpu_custom_call.1} parent=1 // pred_region
      _
    $region57: #{tpu_custom_call.1} parent=1 // pred_fallthru
      _
    %3179 = vsyncpa [#allocation6], 1
    %3180 = vsyncpa [#allocation8], 1

</llo_original>
